<compile_context>
chip_gen: v7x
topology: tpu7x:2x2x1
jax: 0.10.0
libtpu: 0.0.40
codegen_flags: <defaults>
</compile_context>

<pallas_src>
import numpy as np
import jax
import jax.numpy as jnp
from jax.experimental import pallas as pl
from jax.experimental.pallas import tpu as pltpu

# Architecture constants (forced by the PyTorch module: the flatten to 333 features).
L_IN = 16000                 # input length
STRIDES = (2, 2, 2, 2, 3)    # conv strides
P0 = 48                      # product of all strides -> number of input phases
M = 334                      # lanes per polyphase plane: 48 * 334 = 16032 >= 16000
L_FEAT = 333                 # features after the last conv (the .view(-1, 333))
BN_EPS = 1e-5


# ----------------------------- kernel ---------------------------------------

def _shift_left(A):
    """a_next[:, j] = A[:, j+1]; the last lane reads zeros (beyond the padded signal)."""
    return jnp.concatenate([A[:, 1:], jnp.zeros_like(A[:, :1])], axis=1)


def _conv_step(A, wm_ref, wc_ref, b_ref):
    """One folded Conv1d(+bias)+ReLU layer in the polyphase basis.

    A : (C_in*P_in, M) activations; lane j holds time indices [P_in*j, P_in*(j+1)).
    wm: (C_out*P_out, C_in*P_in) taps that stay inside lane j.
    wc: same shape, taps that spill into lane j+1 (the stride/kernel "carry").
    b : (C_out*P_out, 1) per-row bias (folded BN shift), broadcast over lanes.
    """
    z = jnp.dot(wm_ref[...], A, preferred_element_type=jnp.float32)
    z = z + jnp.dot(wc_ref[...], _shift_left(A), preferred_element_type=jnp.float32)
    return jnp.maximum(z + b_ref[...], 0.0)


def catsdogs_kernel(a0_ref,
                    wm1, wc1, b1, wm2, wc2, b2, wm3, wc3, b3,
                    wm4, wc4, b4, wm5, b5,
                    l1w, l1b, l2w, l2b,
                    out_ref):
    # TODO(synk): nn.Dropout(0.5) layers are identity under eval-mode semantics.
    A = a0_ref[0]                      # (48, 334)  polyphase input
    A = _conv_step(A, wm1, wc1, b1)    # (192, 334) conv1 (+BN1 folded) + ReLU
    A = _conv_step(A, wm2, wc2, b2)    # (96, 334)  conv2 + ReLU
    A = _conv_step(A, wm3, wc3, b3)    # (48, 334)  conv3 (+BN2 folded in) + ReLU
    A = _conv_step(A, wm4, wc4, b4)    # (48, 334)  conv4 (+BN3 folded in) + ReLU
    # conv5 (stride 3, P_in=3 -> P_out=1, +BN4 folded): taps never cross a lane.
    z = jnp.dot(wm5[...], A, preferred_element_type=jnp.float32) + b5[...]
    f = jnp.maximum(z, 0.0)            # (1, 334); lane 333 is padding (zero row in l1w)
    h = jnp.maximum(
        jnp.dot(f, l1w[...], preferred_element_type=jnp.float32) + l1b[...], 0.0)
    y = jnp.dot(h, l2w[...], preferred_element_type=jnp.float32) + l2b[...]
    out_ref[0] = y                     # (1, 1)


# ------------------------ host-side weight folding --------------------------

def _polyphase_matrices(W, stride, p_in):
    """Express a kernel-3 strided Conv1d as (W_main, W_carry) in the polyphase basis."""
    c_out, c_in, K = W.shape
    p_out = p_in // stride
    wm = np.zeros((c_out * p_out, c_in * p_in), np.float32)
    wc = np.zeros((c_out * p_out, c_in * p_in), np.float32)
    for co in range(c_out):
        for po in range(p_out):
            r = co * p_out + po
            for ci in range(c_in):
                for k in range(K):
                    q = stride * po + k
                    if q < p_in:
                        wm[r, ci * p_in + q] += W[co, ci, k]
                    else:  # tap crosses into the next lane
                        wc[r, ci * p_in + (q - p_in)] += W[co, ci, k]
    return wm, wc


def _build_constants(params):
    """Fold eval-mode BatchNorm into conv weights/biases, build all kernel operands."""
    W = [np.asarray(params[f"W{i}"], np.float32) for i in range(1, 6)]
    scale, shift = [], []
    for i in range(1, 5):
        g, b, m, v = (np.asarray(t, np.float32) for t in params[f"bn{i}"])
        s = g / np.sqrt(v + BN_EPS)
        scale.append(s)
        shift.append(b - m * s)
    # BN1 sits between conv1 and its ReLU -> scale conv1's output channels, bias = shift.
    # BN2..BN4 sit after a ReLU -> fold into the *next* conv's input channels; the BN
    # shift becomes a per-output-channel bias of that conv.
    W_eff = [W[0] * scale[0][:, None, None],
             W[1],
             W[2] * scale[1][None, :, None],
             W[3] * scale[2][None, :, None],
             W[4] * scale[3][None, :, None]]
    b_eff = [shift[0],
             np.zeros(W[1].shape[0], np.float32),
             (W[2] * shift[1][None, :, None]).sum(axis=(1, 2)),
             (W[3] * shift[2][None, :, None]).sum(axis=(1, 2)),
             (W[4] * shift[3][None, :, None]).sum(axis=(1, 2))]

    mats = []
    p_in = P0
    for Wl, bl, s in zip(W_eff, b_eff, STRIDES):
        p_out = p_in // s
        wm, wc = _polyphase_matrices(Wl, s, p_in)
        brow = np.repeat(bl.astype(np.float32), p_out).reshape(-1, 1)
        mats.append((wm, wc, brow))
        p_in = p_out

    (wm1, wc1, b1), (wm2, wc2, b2), (wm3, wc3, b3), (wm4, wc4, b4), (wm5, _, b5) = mats

    # Linear head: pre-transpose, and zero-pad Linear1's input dim 333 -> 334 so the
    # (meaningless) padding lane of the conv output contributes exactly zero.
    l1w = np.concatenate([np.asarray(params["L1w"], np.float32).T,
                          np.zeros((M - L_FEAT, 100), np.float32)], axis=0)   # (334, 100)
    l1b = np.asarray(params["L1b"], np.float32).reshape(1, -1)                # (1, 100)
    l2w = np.asarray(params["L2w"], np.float32).T                             # (100, 1)
    l2b = np.asarray(params["L2b"], np.float32).reshape(1, 1)                 # (1, 1)

    consts = (wm1, wc1, b1, wm2, wc2, b2, wm3, wc3, b3, wm4, wc4, b4, wm5, b5,
              l1w, l1b, l2w, l2b)
    return tuple(jnp.asarray(c) for c in consts)


@jax.jit
def _forward_device(x, consts):
    """Device part: polyphase layout transform + the fused Pallas kernel."""
    N = x.shape[0]
    # Host/XLA-side layout plumbing: space-to-depth transform of the input,
    # x[n, 0, 48*j + p] -> a0[n, p, j], zero-padded 16000 -> 48*334.
    xpad = jnp.pad(x[:, 0, :].astype(jnp.float32), ((0, 0), (0, P0 * M - L_IN)))
    a0 = jnp.transpose(xpad.reshape(N, M, P0), (0, 2, 1))          # (N, 48, 334)

    in_specs = [pl.BlockSpec((1, P0, M), lambda b: (b, 0, 0))]
    in_specs += [pl.BlockSpec(c.shape, lambda b: (0, 0)) for c in consts]

    out = pl.pallas_call(
        catsdogs_kernel,
        out_shape=jax.ShapeDtypeStruct((N, 1, 1), jnp.float32),
        grid_spec=pltpu.PrefetchScalarGridSpec(
            num_scalar_prefetch=0,
            grid=(N,),
            in_specs=in_specs,
            out_specs=pl.BlockSpec((1, 1, 1), lambda b: (b, 0, 0)),
        ),
        compiler_params=pltpu.CompilerParams(dimension_semantics=("parallel",)),
    )(a0, *consts)
    return out.reshape(N, 1)


def cats_dogs_forward(x, params):
    """Eval-mode forward of CatsDogsModel.  x: (N, 1, 16000) -> (N, 1)."""
    assert x.shape[1:] == (1, L_IN), x.shape
    consts = _build_constants(params)
    return _forward_device(x, consts)


# --------------------------- plain-JAX reference -----------------------------

def _reference_forward(x, params):
    """Plain-JAX replica of the PyTorch forward (eval mode), for validation."""
    dn = ("NCH", "OIH", "NCH")
    hp = jax.lax.Precision.HIGHEST

    def conv(h, W, s):
        return jax.lax.conv_general_dilated(h, W, (s,), [(0, 0)],
                                            dimension_numbers=dn, precision=hp)

    def bn(h, p):
        g, b, m, v = p
        return ((h - m[None, :, None]) / jnp.sqrt(v[None, :, None] + BN_EPS)
                * g[None, :, None] + b[None, :, None])

    relu = lambda h: jnp.maximum(h, 0.0)
    h = relu(bn(conv(x, params["W1"], 2), params["bn1"]))
    h = bn(relu(conv(h, params["W2"], 2)), params["bn2"])
    h = bn(relu(conv(h, params["W3"], 2)), params["bn3"])
    h = bn(relu(conv(h, params["W4"], 2)), params["bn4"])
    h = relu(conv(h, params["W5"], 3))
    f = h.reshape(-1, L_FEAT)
    f = relu(jnp.dot(f, params["L1w"].T, precision=hp) + params["L1b"][None, :])
    return jnp.dot(f, params["L2w"].T, precision=hp) + params["L2b"][None, :]


# --------------------------------- test --------------------------------------

if __name__ == "__main__":
    key = jax.random.PRNGKey(0)
    ks = jax.random.split(key, 16)

    def kaiming(k, shape):
        fan_in = shape[1] * shape[2]
        return jax.random.normal(k, shape, jnp.float32) * jnp.sqrt(2.0 / fan_in)

    params = {
        "W1": kaiming(ks[0], (8, 1, 3)),
        "W2": kaiming(ks[1], (8, 8, 3)),
        "W3": kaiming(ks[2], (8, 8, 3)),
        "W4": kaiming(ks[3], (16, 8, 3)),
        "W5": kaiming(ks[4], (1, 16, 3)),
        "L1w": jax.random.normal(ks[10], (100, 333), jnp.float32) / jnp.sqrt(333.0),
        "L1b": 0.1 * jax.random.normal(ks[11], (100,), jnp.float32),
        "L2w": jax.random.normal(ks[12], (1, 100), jnp.float32) / jnp.sqrt(100.0),
        "L2b": 0.1 * jax.random.normal(ks[13], (1,), jnp.float32),
    }
    # BatchNorm1d params: (gamma, beta, running_mean, running_var) with non-default
    # running stats so the host-side BN fold is genuinely exercised.
    for i, c in enumerate((8, 8, 8, 16), start=1):
        k0, k1, k2, k3 = jax.random.split(ks[4 + i], 4)
        params[f"bn{i}"] = (
            1.0 + 0.1 * jax.random.normal(k0, (c,), jnp.float32),
            0.1 * jax.random.normal(k1, (c,), jnp.float32),
            0.1 * jax.random.normal(k2, (c,), jnp.float32),
            0.5 + jax.random.uniform(k3, (c,), jnp.float32),
        )

    # Small batch; the temporal length 16000 is forced by the .view(-1, 333) head.
    x = jax.random.normal(ks[9], (2, 1, L_IN), jnp.float32)

    out = jax.block_until_ready(cats_dogs_forward(x, params))
    assert out.shape == (2, 1), out.shape
    assert bool(jnp.all(jnp.isfinite(out)))

    ref = _reference_forward(x, params)
    err = float(jnp.max(jnp.abs(out - ref)))
    scale = float(jnp.max(jnp.abs(ref)))
    assert err <= 2e-2 * (1.0 + scale), (err, scale)

    print("KERNEL_OK")
</pallas_src>

<mosaic_0001>
module attributes {stable_mosaic.version = 11 : i64} {
  func.func @catsdogs_kernel(%arg0: i32, %arg1: memref<1x48x334xf32, #tpu.memory_space<vmem>>, %arg2: memref<192x48xf32, #tpu.memory_space<vmem>>, %arg3: memref<192x48xf32, #tpu.memory_space<vmem>>, %arg4: memref<192x1xf32, #tpu.memory_space<vmem>>, %arg5: memref<96x192xf32, #tpu.memory_space<vmem>>, %arg6: memref<96x192xf32, #tpu.memory_space<vmem>>, %arg7: memref<96x1xf32, #tpu.memory_space<vmem>>, %arg8: memref<48x96xf32, #tpu.memory_space<vmem>>, %arg9: memref<48x96xf32, #tpu.memory_space<vmem>>, %arg10: memref<48x1xf32, #tpu.memory_space<vmem>>, %arg11: memref<48x48xf32, #tpu.memory_space<vmem>>, %arg12: memref<48x48xf32, #tpu.memory_space<vmem>>, %arg13: memref<48x1xf32, #tpu.memory_space<vmem>>, %arg14: memref<1x48xf32, #tpu.memory_space<vmem>>, %arg15: memref<1x1xf32, #tpu.memory_space<vmem>>, %arg16: memref<334x100xf32, #tpu.memory_space<vmem>>, %arg17: memref<1x100xf32, #tpu.memory_space<vmem>>, %arg18: memref<100x1xf32, #tpu.memory_space<vmem>>, %arg19: memref<1x1xf32, #tpu.memory_space<vmem>>, %arg20: memref<1x1x1xf32, #tpu.memory_space<vmem>>) attributes {dimension_semantics = [#tpu.dimension_semantics<parallel>], iteration_bounds = array<i64: 2>, scalar_prefetch = 0 : i64, scratch_operands = 0 : i64, tpu.core_type = #tpu.core_type<tc>, window_params = [{transform_indices = @transform_0, window_bounds = array<i64: 1, 48, 334>}, {pipeline_mode = #tpu.pipeline_mode<synchronous>, transform_indices = @transform_1, window_bounds = array<i64: 192, 48>}, {pipeline_mode = #tpu.pipeline_mode<synchronous>, transform_indices = @transform_2, window_bounds = array<i64: 192, 48>}, {pipeline_mode = #tpu.pipeline_mode<synchronous>, transform_indices = @transform_3, window_bounds = array<i64: 192, 1>}, {pipeline_mode = #tpu.pipeline_mode<synchronous>, transform_indices = @transform_4, window_bounds = array<i64: 96, 192>}, {pipeline_mode = #tpu.pipeline_mode<synchronous>, transform_indices = @transform_5, window_bounds = array<i64: 96, 192>}, {pipeline_mode = #tpu.pipeline_mode<synchronous>, transform_indices = @transform_6, window_bounds = array<i64: 96, 1>}, {pipeline_mode = #tpu.pipeline_mode<synchronous>, transform_indices = @transform_7, window_bounds = array<i64: 48, 96>}, {pipeline_mode = #tpu.pipeline_mode<synchronous>, transform_indices = @transform_8, window_bounds = array<i64: 48, 96>}, {pipeline_mode = #tpu.pipeline_mode<synchronous>, transform_indices = @transform_9, window_bounds = array<i64: 48, 1>}, {pipeline_mode = #tpu.pipeline_mode<synchronous>, transform_indices = @transform_10, window_bounds = array<i64: 48, 48>}, {pipeline_mode = #tpu.pipeline_mode<synchronous>, transform_indices = @transform_11, window_bounds = array<i64: 48, 48>}, {pipeline_mode = #tpu.pipeline_mode<synchronous>, transform_indices = @transform_12, window_bounds = array<i64: 48, 1>}, {pipeline_mode = #tpu.pipeline_mode<synchronous>, transform_indices = @transform_13, window_bounds = array<i64: 1, 48>}, {pipeline_mode = #tpu.pipeline_mode<synchronous>, transform_indices = @transform_14, window_bounds = array<i64: 1, 1>}, {pipeline_mode = #tpu.pipeline_mode<synchronous>, transform_indices = @transform_15, window_bounds = array<i64: 334, 100>}, {pipeline_mode = #tpu.pipeline_mode<synchronous>, transform_indices = @transform_16, window_bounds = array<i64: 1, 100>}, {pipeline_mode = #tpu.pipeline_mode<synchronous>, transform_indices = @transform_17, window_bounds = array<i64: 100, 1>}, {pipeline_mode = #tpu.pipeline_mode<synchronous>, transform_indices = @transform_18, window_bounds = array<i64: 1, 1>}, {transform_indices = @transform_19, window_bounds = array<i64: 1, 1, 1>}]} {
    %c0 = arith.constant 0 : index
    %c0_0 = arith.constant 0 : index
    %c0_1 = arith.constant 0 : index
    %0 = vector.load %arg1[%c0, %c0_0, %c0_1] : memref<1x48x334xf32, #tpu.memory_space<vmem>>, vector<1x48x334xf32>
    %1 = vector.shape_cast %0 : vector<1x48x334xf32> to vector<48x334xf32>
    %c0_2 = arith.constant 0 : index
    %c0_3 = arith.constant 0 : index
    %2 = vector.load %arg2[%c0_2, %c0_3] : memref<192x48xf32, #tpu.memory_space<vmem>>, vector<192x48xf32>
    %cst = arith.constant dense<0.000000e+00> : vector<192x334xf32>
    %3 = tpu.matmul %2, %1, %cst {dimension_numbers = #tpu.dot_dimension_numbers<[1], [0], [0], [1], [0, 0, 1, 1], [], []>} : vector<192x48xf32>, vector<48x334xf32>, vector<192x334xf32> -> vector<192x334xf32>
    %c0_4 = arith.constant 0 : index
    %c0_5 = arith.constant 0 : index
    %4 = vector.load %arg3[%c0_4, %c0_5] : memref<192x48xf32, #tpu.memory_space<vmem>>, vector<192x48xf32>
    %5 = vector.extract_strided_slice %1 {offsets = [0, 1], sizes = [48, 333], strides = [1, 1]} : vector<48x334xf32> to vector<48x333xf32>
    %cst_6 = arith.constant 0.000000e+00 : f32
    %6 = vector.broadcast %cst_6 : f32 to vector<48x1xf32>
    %7 = tpu.concatenate %5, %6 in 1 : vector<48x333xf32>, vector<48x1xf32> -> vector<48x334xf32>
    %cst_7 = arith.constant dense<0.000000e+00> : vector<192x334xf32>
    %8 = tpu.matmul %4, %7, %cst_7 {dimension_numbers = #tpu.dot_dimension_numbers<[1], [0], [0], [1], [0, 0, 1, 1], [], []>} : vector<192x48xf32>, vector<48x334xf32>, vector<192x334xf32> -> vector<192x334xf32>
    %9 = arith.addf %3, %8 : vector<192x334xf32>
    %c0_8 = arith.constant 0 : index
    %c0_9 = arith.constant 0 : index
    %10 = vector.load %arg4[%c0_8, %c0_9] : memref<192x1xf32, #tpu.memory_space<vmem>>, vector<192x1xf32>
    %11 = vector.broadcast %10 : vector<192x1xf32> to vector<192x334xf32>
    %12 = arith.addf %9, %11 : vector<192x334xf32>
    %cst_10 = arith.constant 0.000000e+00 : f32
    %13 = vector.broadcast %cst_10 : f32 to vector<192x334xf32>
    %14 = arith.maximumf %12, %13 : vector<192x334xf32>
    %c0_11 = arith.constant 0 : index
    %c0_12 = arith.constant 0 : index
    %15 = vector.load %arg5[%c0_11, %c0_12] : memref<96x192xf32, #tpu.memory_space<vmem>>, vector<96x192xf32>
    %cst_13 = arith.constant dense<0.000000e+00> : vector<96x334xf32>
    %16 = tpu.matmul %15, %14, %cst_13 {dimension_numbers = #tpu.dot_dimension_numbers<[1], [0], [0], [1], [0, 0, 1, 1], [], []>} : vector<96x192xf32>, vector<192x334xf32>, vector<96x334xf32> -> vector<96x334xf32>
    %c0_14 = arith.constant 0 : index
    %c0_15 = arith.constant 0 : index
    %17 = vector.load %arg6[%c0_14, %c0_15] : memref<96x192xf32, #tpu.memory_space<vmem>>, vector<96x192xf32>
    %18 = vector.extract_strided_slice %14 {offsets = [0, 1], sizes = [192, 333], strides = [1, 1]} : vector<192x334xf32> to vector<192x333xf32>
    %cst_16 = arith.constant 0.000000e+00 : f32
    %19 = vector.broadcast %cst_16 : f32 to vector<192x1xf32>
    %20 = tpu.concatenate %18, %19 in 1 : vector<192x333xf32>, vector<192x1xf32> -> vector<192x334xf32>
    %cst_17 = arith.constant dense<0.000000e+00> : vector<96x334xf32>
    %21 = tpu.matmul %17, %20, %cst_17 {dimension_numbers = #tpu.dot_dimension_numbers<[1], [0], [0], [1], [0, 0, 1, 1], [], []>} : vector<96x192xf32>, vector<192x334xf32>, vector<96x334xf32> -> vector<96x334xf32>
    %22 = arith.addf %16, %21 : vector<96x334xf32>
    %c0_18 = arith.constant 0 : index
    %c0_19 = arith.constant 0 : index
    %23 = vector.load %arg7[%c0_18, %c0_19] : memref<96x1xf32, #tpu.memory_space<vmem>>, vector<96x1xf32>
    %24 = vector.broadcast %23 : vector<96x1xf32> to vector<96x334xf32>
    %25 = arith.addf %22, %24 : vector<96x334xf32>
    %cst_20 = arith.constant 0.000000e+00 : f32
    %26 = vector.broadcast %cst_20 : f32 to vector<96x334xf32>
    %27 = arith.maximumf %25, %26 : vector<96x334xf32>
    %c0_21 = arith.constant 0 : index
    %c0_22 = arith.constant 0 : index
    %28 = vector.load %arg8[%c0_21, %c0_22] : memref<48x96xf32, #tpu.memory_space<vmem>>, vector<48x96xf32>
    %cst_23 = arith.constant dense<0.000000e+00> : vector<48x334xf32>
    %29 = tpu.matmul %28, %27, %cst_23 {dimension_numbers = #tpu.dot_dimension_numbers<[1], [0], [0], [1], [0, 0, 1, 1], [], []>} : vector<48x96xf32>, vector<96x334xf32>, vector<48x334xf32> -> vector<48x334xf32>
    %c0_24 = arith.constant 0 : index
    %c0_25 = arith.constant 0 : index
    %30 = vector.load %arg9[%c0_24, %c0_25] : memref<48x96xf32, #tpu.memory_space<vmem>>, vector<48x96xf32>
    %31 = vector.extract_strided_slice %27 {offsets = [0, 1], sizes = [96, 333], strides = [1, 1]} : vector<96x334xf32> to vector<96x333xf32>
    %cst_26 = arith.constant 0.000000e+00 : f32
    %32 = vector.broadcast %cst_26 : f32 to vector<96x1xf32>
    %33 = tpu.concatenate %31, %32 in 1 : vector<96x333xf32>, vector<96x1xf32> -> vector<96x334xf32>
    %cst_27 = arith.constant dense<0.000000e+00> : vector<48x334xf32>
    %34 = tpu.matmul %30, %33, %cst_27 {dimension_numbers = #tpu.dot_dimension_numbers<[1], [0], [0], [1], [0, 0, 1, 1], [], []>} : vector<48x96xf32>, vector<96x334xf32>, vector<48x334xf32> -> vector<48x334xf32>
    %35 = arith.addf %29, %34 : vector<48x334xf32>
    %c0_28 = arith.constant 0 : index
    %c0_29 = arith.constant 0 : index
    %36 = vector.load %arg10[%c0_28, %c0_29] : memref<48x1xf32, #tpu.memory_space<vmem>>, vector<48x1xf32>
    %37 = vector.broadcast %36 : vector<48x1xf32> to vector<48x334xf32>
    %38 = arith.addf %35, %37 : vector<48x334xf32>
    %cst_30 = arith.constant 0.000000e+00 : f32
    %39 = vector.broadcast %cst_30 : f32 to vector<48x334xf32>
    %40 = arith.maximumf %38, %39 : vector<48x334xf32>
    %c0_31 = arith.constant 0 : index
    %c0_32 = arith.constant 0 : index
    %41 = vector.load %arg11[%c0_31, %c0_32] : memref<48x48xf32, #tpu.memory_space<vmem>>, vector<48x48xf32>
    %cst_33 = arith.constant dense<0.000000e+00> : vector<48x334xf32>
    %42 = tpu.matmul %41, %40, %cst_33 {dimension_numbers = #tpu.dot_dimension_numbers<[1], [0], [0], [1], [0, 0, 1, 1], [], []>} : vector<48x48xf32>, vector<48x334xf32>, vector<48x334xf32> -> vector<48x334xf32>
    %c0_34 = arith.constant 0 : index
    %c0_35 = arith.constant 0 : index
    %43 = vector.load %arg12[%c0_34, %c0_35] : memref<48x48xf32, #tpu.memory_space<vmem>>, vector<48x48xf32>
    %44 = vector.extract_strided_slice %40 {offsets = [0, 1], sizes = [48, 333], strides = [1, 1]} : vector<48x334xf32> to vector<48x333xf32>
    %cst_36 = arith.constant 0.000000e+00 : f32
    %45 = vector.broadcast %cst_36 : f32 to vector<48x1xf32>
    %46 = tpu.concatenate %44, %45 in 1 : vector<48x333xf32>, vector<48x1xf32> -> vector<48x334xf32>
    %cst_37 = arith.constant dense<0.000000e+00> : vector<48x334xf32>
    %47 = tpu.matmul %43, %46, %cst_37 {dimension_numbers = #tpu.dot_dimension_numbers<[1], [0], [0], [1], [0, 0, 1, 1], [], []>} : vector<48x48xf32>, vector<48x334xf32>, vector<48x334xf32> -> vector<48x334xf32>
    %48 = arith.addf %42, %47 : vector<48x334xf32>
    %c0_38 = arith.constant 0 : index
    %c0_39 = arith.constant 0 : index
    %49 = vector.load %arg13[%c0_38, %c0_39] : memref<48x1xf32, #tpu.memory_space<vmem>>, vector<48x1xf32>
    %50 = vector.broadcast %49 : vector<48x1xf32> to vector<48x334xf32>
    %51 = arith.addf %48, %50 : vector<48x334xf32>
    %cst_40 = arith.constant 0.000000e+00 : f32
    %52 = vector.broadcast %cst_40 : f32 to vector<48x334xf32>
    %53 = arith.maximumf %51, %52 : vector<48x334xf32>
    %c0_41 = arith.constant 0 : index
    %c0_42 = arith.constant 0 : index
    %54 = vector.load %arg14[%c0_41, %c0_42] : memref<1x48xf32, #tpu.memory_space<vmem>>, vector<1x48xf32>
    %cst_43 = arith.constant dense<0.000000e+00> : vector<1x334xf32>
    %55 = tpu.matmul %54, %53, %cst_43 {dimension_numbers = #tpu.dot_dimension_numbers<[1], [0], [0], [1], [0, 0, 1, 1], [], []>} : vector<1x48xf32>, vector<48x334xf32>, vector<1x334xf32> -> vector<1x334xf32>
    %c0_44 = arith.constant 0 : index
    %c0_45 = arith.constant 0 : index
    %56 = vector.load %arg15[%c0_44, %c0_45] : memref<1x1xf32, #tpu.memory_space<vmem>>, vector<1x1xf32>
    %57 = vector.broadcast %56 : vector<1x1xf32> to vector<1x334xf32>
    %58 = arith.addf %55, %57 : vector<1x334xf32>
    %cst_46 = arith.constant 0.000000e+00 : f32
    %59 = vector.broadcast %cst_46 : f32 to vector<1x334xf32>
    %60 = arith.maximumf %58, %59 : vector<1x334xf32>
    %c0_47 = arith.constant 0 : index
    %c0_48 = arith.constant 0 : index
    %61 = vector.load %arg16[%c0_47, %c0_48] : memref<334x100xf32, #tpu.memory_space<vmem>>, vector<334x100xf32>
    %cst_49 = arith.constant dense<0.000000e+00> : vector<1x100xf32>
    %62 = tpu.matmul %60, %61, %cst_49 {dimension_numbers = #tpu.dot_dimension_numbers<[1], [0], [0], [1], [0, 0, 1, 1], [], []>} : vector<1x334xf32>, vector<334x100xf32>, vector<1x100xf32> -> vector<1x100xf32>
    %c0_50 = arith.constant 0 : index
    %c0_51 = arith.constant 0 : index
    %63 = vector.load %arg17[%c0_50, %c0_51] : memref<1x100xf32, #tpu.memory_space<vmem>>, vector<1x100xf32>
    %64 = arith.addf %62, %63 : vector<1x100xf32>
    %cst_52 = arith.constant 0.000000e+00 : f32
    %65 = vector.broadcast %cst_52 : f32 to vector<1x100xf32>
    %66 = arith.maximumf %64, %65 : vector<1x100xf32>
    %c0_53 = arith.constant 0 : index
    %c0_54 = arith.constant 0 : index
    %67 = vector.load %arg18[%c0_53, %c0_54] : memref<100x1xf32, #tpu.memory_space<vmem>>, vector<100x1xf32>
    %cst_55 = arith.constant dense<0.000000e+00> : vector<1x1xf32>
    %68 = tpu.matmul %66, %67, %cst_55 {dimension_numbers = #tpu.dot_dimension_numbers<[1], [0], [0], [1], [0, 0, 1, 1], [], []>} : vector<1x100xf32>, vector<100x1xf32>, vector<1x1xf32> -> vector<1x1xf32>
    %c0_56 = arith.constant 0 : index
    %c0_57 = arith.constant 0 : index
    %69 = vector.load %arg19[%c0_56, %c0_57] : memref<1x1xf32, #tpu.memory_space<vmem>>, vector<1x1xf32>
    %70 = arith.addf %68, %69 : vector<1x1xf32>
    %c0_58 = arith.constant 0 : index
    %c0_59 = arith.constant 0 : index
    %c0_60 = arith.constant 0 : index
    %71 = vector.load %arg20[%c0_58, %c0_59, %c0_60] : memref<1x1x1xf32, #tpu.memory_space<vmem>>, vector<1x1x1xf32>
    %72 = vector.shape_cast %71 : vector<1x1x1xf32> to vector<1x1xf32>
    %73 = vector.shape_cast %70 : vector<1x1xf32> to vector<1x1x1xf32>
    tpu.vector_store %arg20[%c0_58, %c0_59, %c0_60], %73 {strides = array<i32>} : memref<1x1x1xf32, #tpu.memory_space<vmem>>, vector<1x1x1xf32>,
    return
  }
  func.func @transform_0(%arg0: i32) -> (i32, i32, i32) {
    %c0_i32 = arith.constant 0 : i32
    %c0_i32_0 = arith.constant 0 : i32
    %c0_i32_1 = arith.constant 0 : i32
    return %arg0, %c0_i32, %c0_i32_0 : i32, i32, i32
  }
  func.func @transform_1(%arg0: i32) -> (i32, i32) {
    %c0_i32 = arith.constant 0 : i32
    %c0_i32_0 = arith.constant 0 : i32
    %c0_i32_1 = arith.constant 0 : i32
    return %c0_i32, %c0_i32_0 : i32, i32
  }
  func.func @transform_2(%arg0: i32) -> (i32, i32) {
    %c0_i32 = arith.constant 0 : i32
    %c0_i32_0 = arith.constant 0 : i32
    %c0_i32_1 = arith.constant 0 : i32
    return %c0_i32, %c0_i32_0 : i32, i32
  }
  func.func @transform_3(%arg0: i32) -> (i32, i32) {
    %c0_i32 = arith.constant 0 : i32
    %c0_i32_0 = arith.constant 0 : i32
    %c0_i32_1 = arith.constant 0 : i32
    return %c0_i32, %c0_i32_0 : i32, i32
  }
  func.func @transform_4(%arg0: i32) -> (i32, i32) {
    %c0_i32 = arith.constant 0 : i32
    %c0_i32_0 = arith.constant 0 : i32
    %c0_i32_1 = arith.constant 0 : i32
    return %c0_i32, %c0_i32_0 : i32, i32
  }
  func.func @transform_5(%arg0: i32) -> (i32, i32) {
    %c0_i32 = arith.constant 0 : i32
    %c0_i32_0 = arith.constant 0 : i32
    %c0_i32_1 = arith.constant 0 : i32
    return %c0_i32, %c0_i32_0 : i32, i32
  }
  func.func @transform_6(%arg0: i32) -> (i32, i32) {
    %c0_i32 = arith.constant 0 : i32
    %c0_i32_0 = arith.constant 0 : i32
    %c0_i32_1 = arith.constant 0 : i32
    return %c0_i32, %c0_i32_0 : i32, i32
  }
  func.func @transform_7(%arg0: i32) -> (i32, i32) {
    %c0_i32 = arith.constant 0 : i32
    %c0_i32_0 = arith.constant 0 : i32
    %c0_i32_1 = arith.constant 0 : i32
    return %c0_i32, %c0_i32_0 : i32, i32
  }
  func.func @transform_8(%arg0: i32) -> (i32, i32) {
    %c0_i32 = arith.constant 0 : i32
    %c0_i32_0 = arith.constant 0 : i32
    %c0_i32_1 = arith.constant 0 : i32
    return %c0_i32, %c0_i32_0 : i32, i32
  }
  func.func @transform_9(%arg0: i32) -> (i32, i32) {
    %c0_i32 = arith.constant 0 : i32
    %c0_i32_0 = arith.constant 0 : i32
    %c0_i32_1 = arith.constant 0 : i32
    return %c0_i32, %c0_i32_0 : i32, i32
  }
  func.func @transform_10(%arg0: i32) -> (i32, i32) {
    %c0_i32 = arith.constant 0 : i32
    %c0_i32_0 = arith.constant 0 : i32
    %c0_i32_1 = arith.constant 0 : i32
    return %c0_i32, %c0_i32_0 : i32, i32
  }
  func.func @transform_11(%arg0: i32) -> (i32, i32) {
    %c0_i32 = arith.constant 0 : i32
    %c0_i32_0 = arith.constant 0 : i32
    %c0_i32_1 = arith.constant 0 : i32
    return %c0_i32, %c0_i32_0 : i32, i32
  }
  func.func @transform_12(%arg0: i32) -> (i32, i32) {
    %c0_i32 = arith.constant 0 : i32
    %c0_i32_0 = arith.constant 0 : i32
    %c0_i32_1 = arith.constant 0 : i32
    return %c0_i32, %c0_i32_0 : i32, i32
  }
  func.func @transform_13(%arg0: i32) -> (i32, i32) {
    %c0_i32 = arith.constant 0 : i32
    %c0_i32_0 = arith.constant 0 : i32
    %c0_i32_1 = arith.constant 0 : i32
    return %c0_i32, %c0_i32_0 : i32, i32
  }
  func.func @transform_14(%arg0: i32) -> (i32, i32) {
    %c0_i32 = arith.constant 0 : i32
    %c0_i32_0 = arith.constant 0 : i32
    %c0_i32_1 = arith.constant 0 : i32
    return %c0_i32, %c0_i32_0 : i32, i32
  }
  func.func @transform_15(%arg0: i32) -> (i32, i32) {
    %c0_i32 = arith.constant 0 : i32
    %c0_i32_0 = arith.constant 0 : i32
    %c0_i32_1 = arith.constant 0 : i32
    return %c0_i32, %c0_i32_0 : i32, i32
  }
  func.func @transform_16(%arg0: i32) -> (i32, i32) {
    %c0_i32 = arith.constant 0 : i32
    %c0_i32_0 = arith.constant 0 : i32
    %c0_i32_1 = arith.constant 0 : i32
    return %c0_i32, %c0_i32_0 : i32, i32
  }
  func.func @transform_17(%arg0: i32) -> (i32, i32) {
    %c0_i32 = arith.constant 0 : i32
    %c0_i32_0 = arith.constant 0 : i32
    %c0_i32_1 = arith.constant 0 : i32
    return %c0_i32, %c0_i32_0 : i32, i32
  }
  func.func @transform_18(%arg0: i32) -> (i32, i32) {
    %c0_i32 = arith.constant 0 : i32
    %c0_i32_0 = arith.constant 0 : i32
    %c0_i32_1 = arith.constant 0 : i32
    return %c0_i32, %c0_i32_0 : i32, i32
  }
  func.func @transform_19(%arg0: i32) -> (i32, i32, i32) {
    %c0_i32 = arith.constant 0 : i32
    %c0_i32_0 = arith.constant 0 : i32
    %c0_i32_1 = arith.constant 0 : i32
    return %arg0, %c0_i32, %c0_i32_0 : i32, i32, i32
  }
}

</mosaic_0001>

<llo_original>
// kernel: _forward_device.1
$region0: #{_forward_device.1}
  #allocation0 [shape = 'u32[]', space=smem, size = 0x4, offset = 0x4, fixed_abs, tag = 'smem constant byte address 0x4 - core index']
  #allocation1 [shape = 'u32[144,128]{1,0:T(1,128)}', space=vmem, size = 0x12000, scoped, tag = 'internal scratch']
  #allocation2 [shape = 'f32[1,1]{1,0:T(1,128)S(1)}', space=vmem, size = 0x200, scoped, tag = 'scoped memory for _forward_device.1']
  #allocation3 [shape = 'f32[1,1]{1,0:T(1,128)S(1)}', space=vmem, size = 0x200, scoped, tag = 'scoped memory for _forward_device.1']
  %s0 = inlined_call_operand.vmem [shape: f32[2,48,334], index: 0, kind: input, shape index: {}]
  %s1 = inlined_call_operand.vmem [shape: f32[192,48], index: 1, kind: input, shape index: {}]
  %s2 = inlined_call_operand.vmem [shape: f32[192,48], index: 2, kind: input, shape index: {}]
  %s3 = inlined_call_operand.vmem [shape: f32[192,1], index: 3, kind: input, shape index: {}]
  %s4 = inlined_call_operand.vmem [shape: f32[96,192], index: 4, kind: input, shape index: {}]
  %s5 = inlined_call_operand.vmem [shape: f32[96,192], index: 5, kind: input, shape index: {}]
  %s6 = inlined_call_operand.vmem [shape: f32[96,1], index: 6, kind: input, shape index: {}]
  %s7 = inlined_call_operand.vmem [shape: f32[48,96], index: 7, kind: input, shape index: {}]
  %s8 = inlined_call_operand.vmem [shape: f32[48,96], index: 8, kind: input, shape index: {}]
  %s9 = inlined_call_operand.vmem [shape: f32[48,1], index: 9, kind: input, shape index: {}]
  %s10 = inlined_call_operand.vmem [shape: f32[48,48], index: 10, kind: input, shape index: {}]
  %s11 = inlined_call_operand.vmem [shape: f32[48,48], index: 11, kind: input, shape index: {}]
  %s12 = inlined_call_operand.vmem [shape: f32[48,1], index: 12, kind: input, shape index: {}]
  %s13 = inlined_call_operand.vmem [shape: f32[1,48], index: 13, kind: input, shape index: {}]
  %s14 = inlined_call_operand.<no memory space> [shape: f32[1,1], index: 14, kind: input, shape index: {}]
  %s15 = inlined_call_operand.vmem [shape: f32[334,100], index: 15, kind: input, shape index: {}]
  %s16 = inlined_call_operand.vmem [shape: f32[1,100], index: 16, kind: input, shape index: {}]
  %s17 = inlined_call_operand.vmem [shape: f32[100,1], index: 17, kind: input, shape index: {}]
  %s18 = inlined_call_operand.<no memory space> [shape: f32[1,1], index: 18, kind: input, shape index: {}]
  %s19 = inlined_call_operand.vmem [shape: f32[2,1,1], index: 19, kind: output, shape index: {}]
  %s20 = sld [smem:[#allocation0]]
  $region109: #{_forward_device.1} parent=0
    _
  %s22 = ssub.s32 1, %s20
  %s23 = scalar_select 0, %s22, %s20
  %v24 = vstv %s14
  %25 = vst [vmem:[#allocation2] sm:$0x1] %v24
  %v26 = vstv %s18
  %27 = vst [vmem:[#allocation3] sm:$0x1] %v26
  loop: start=0, step=1, limit=4
  $region2: #{_forward_device.1} parent=0 // loop_pre_header
    _
  $region3: #{_forward_device.1} parent=0 // loop_header
    %s29 = sphi 0, %s33
    %p30 = scmp.ge.s32.totalorder %s29, 4
    %s39 = sphi 0, %s41
    %s42 = sphi 0, %s39
    %s43 = sphi 0, %s42
    %s59 = sphi 0, %s43
    %s63 = sphi 0, %s63
    %s65 = sphi 0, %s63
    %s66 = sphi 0, %s65
    %s80 = sphi 0, %s66
    %s84 = sphi 0, %s84
    %s86 = sphi 0, %s84
    %s87 = sphi 0, %s86
    %s101 = sphi 0, %s87
    %s105 = sphi 0, %s105
    %s107 = sphi 0, %s105
    %s108 = sphi 0, %s107
    %s122 = sphi 0, %s108
    %s126 = sphi 0, %s126
    %s128 = sphi 0, %s126
    %s129 = sphi 0, %s128
    %s143 = sphi 0, %s129
    %s147 = sphi 0, %s147
    %s149 = sphi 0, %s147
    %s150 = sphi 0, %s149
    %s164 = sphi 0, %s150
    %s168 = sphi 0, %s168
    %s170 = sphi 0, %s168
    %s171 = sphi 0, %s170
    %s185 = sphi 0, %s171
    %s189 = sphi 0, %s189
    %s191 = sphi 0, %s189
    %s192 = sphi 0, %s191
    %s206 = sphi 0, %s192
    %s210 = sphi 0, %s210
    %s212 = sphi 0, %s210
    %s213 = sphi 0, %s212
    %s227 = sphi 0, %s213
    %s231 = sphi 0, %s231
    %s233 = sphi 0, %s231
    %s234 = sphi 0, %s233
    %s248 = sphi 0, %s234
    %s252 = sphi 0, %s252
    %s254 = sphi 0, %s252
    %s255 = sphi 0, %s254
    %s269 = sphi 0, %s255
    %s273 = sphi 0, %s273
    %s275 = sphi 0, %s273
    %s276 = sphi 0, %s275
    %s290 = sphi 0, %s276
    %s294 = sphi 0, %s294
    %s296 = sphi 0, %s294
    %s297 = sphi 0, %s296
    %s311 = sphi 0, %s297
    %s315 = sphi 0, %s315
    %s317 = sphi 0, %s315
    %s318 = sphi 0, %s317
    %s332 = sphi 0, %s318
    %s336 = sphi 0, %s336
    %s338 = sphi 0, %s336
    %s339 = sphi 0, %s338
    %s353 = sphi 0, %s339
    %s357 = sphi 0, %s357
    %s359 = sphi 0, %s357
    %s360 = sphi 0, %s359
    %s374 = sphi 0, %s360
    %s378 = sphi 0, %s378
    %s380 = sphi 0, %s378
    %s381 = sphi 0, %s380
    %s395 = sphi 0, %s381
    %s399 = sphi 0, %s399
    %s401 = sphi 0, %s399
    %s402 = sphi 0, %s401
    %s416 = sphi 0, %s402
    %s420 = sphi 0, %s420
    %s422 = sphi 0, %s420
    %s423 = sphi 0, %s422
    %s437 = sphi 0, %s423
    %s443 = sphi 0, %s445
    %s446 = sphi 0, %s443
    %s447 = sphi 0, %s446
    %s463 = sphi 0, %s447
  $region4: #{_forward_device.1} parent=0 // loop_header_branch
    %32 = sbr.rel (%p30) target = $region8
  $region5: #{_forward_device.1} parent=0 // loop_body
    %s34 = ssub.s32 %s29, 1
    %s35 = ssub.s32 %s29, 2
    %s36 = sadd.s32 %s29, 1
    %s37 = ssub.s32 %s29, %s36
    %p38 = scmp.eq.s32.totalorder %s37, 0
    %s40 = sadd.s32 %s39, 1
    %s41 = scalar_select %p38, %s39, %s40
    %p44 = pneg %p38
    %p45 = scmp.eq.s32.totalorder %s29, 1
    %p46 = por %p44, %p45
    %p47 = scmp.ne.s32.totalorder %s39, %s42
    %p48 = scmp.eq.s32.totalorder %s29, 0
    %p49 = por %p47, %p48
    %p50 = scmp.ne.s32.totalorder %s39, %s42
    %p51 = scmp.eq.s32.totalorder %s34, 1
    %p52 = por %p50, %p51
    %p53 = scmp.ne.s32.totalorder %s42, %s43
    %p54 = scmp.eq.s32.totalorder %s34, 0
    %p55 = por %p53, %p54
    %p56 = scmp.ne.s32.totalorder %s42, %s43
    %p57 = scmp.eq.s32.totalorder %s35, 1
    %p58 = por %p56, %p57
    %p60 = scmp.ne.s32.totalorder %s43, %s59
    %p61 = scmp.eq.s32.totalorder %s35, 0
    %p62 = por %p60, %p61
    %s64 = sadd.s32 %s63, 1
    %p67 = scmp.eq.s32.totalorder %s29, 1
    %p68 = scmp.ne.s32.totalorder %s63, %s65
    %p69 = scmp.eq.s32.totalorder %s29, 0
    %p70 = por %p68, %p69
    %p71 = scmp.ne.s32.totalorder %s63, %s65
    %p72 = scmp.eq.s32.totalorder %s34, 1
    %p73 = por %p71, %p72
    %p74 = scmp.ne.s32.totalorder %s65, %s66
    %p75 = scmp.eq.s32.totalorder %s34, 0
    %p76 = por %p74, %p75
    %p77 = scmp.ne.s32.totalorder %s65, %s66
    %p78 = scmp.eq.s32.totalorder %s35, 1
    %p79 = por %p77, %p78
    %p81 = scmp.ne.s32.totalorder %s66, %s80
    %p82 = scmp.eq.s32.totalorder %s35, 0
    %p83 = por %p81, %p82
    %s85 = sadd.s32 %s84, 1
    %p88 = scmp.eq.s32.totalorder %s29, 1
    %p89 = scmp.ne.s32.totalorder %s84, %s86
    %p90 = scmp.eq.s32.totalorder %s29, 0
    %p91 = por %p89, %p90
    %p92 = scmp.ne.s32.totalorder %s84, %s86
    %p93 = scmp.eq.s32.totalorder %s34, 1
    %p94 = por %p92, %p93
    %p95 = scmp.ne.s32.totalorder %s86, %s87
    %p96 = scmp.eq.s32.totalorder %s34, 0
    %p97 = por %p95, %p96
    %p98 = scmp.ne.s32.totalorder %s86, %s87
    %p99 = scmp.eq.s32.totalorder %s35, 1
    %p100 = por %p98, %p99
    %p102 = scmp.ne.s32.totalorder %s87, %s101
    %p103 = scmp.eq.s32.totalorder %s35, 0
    %p104 = por %p102, %p103
    %s106 = sadd.s32 %s105, 1
    %p109 = scmp.eq.s32.totalorder %s29, 1
    %p110 = scmp.ne.s32.totalorder %s105, %s107
    %p111 = scmp.eq.s32.totalorder %s29, 0
    %p112 = por %p110, %p111
    %p113 = scmp.ne.s32.totalorder %s105, %s107
    %p114 = scmp.eq.s32.totalorder %s34, 1
    %p115 = por %p113, %p114
    %p116 = scmp.ne.s32.totalorder %s107, %s108
    %p117 = scmp.eq.s32.totalorder %s34, 0
    %p118 = por %p116, %p117
    %p119 = scmp.ne.s32.totalorder %s107, %s108
    %p120 = scmp.eq.s32.totalorder %s35, 1
    %p121 = por %p119, %p120
    %p123 = scmp.ne.s32.totalorder %s108, %s122
    %p124 = scmp.eq.s32.totalorder %s35, 0
    %p125 = por %p123, %p124
    %s127 = sadd.s32 %s126, 1
    %p130 = scmp.eq.s32.totalorder %s29, 1
    %p131 = scmp.ne.s32.totalorder %s126, %s128
    %p132 = scmp.eq.s32.totalorder %s29, 0
    %p133 = por %p131, %p132
    %p134 = scmp.ne.s32.totalorder %s126, %s128
    %p135 = scmp.eq.s32.totalorder %s34, 1
    %p136 = por %p134, %p135
    %p137 = scmp.ne.s32.totalorder %s128, %s129
    %p138 = scmp.eq.s32.totalorder %s34, 0
    %p139 = por %p137, %p138
    %p140 = scmp.ne.s32.totalorder %s128, %s129
    %p141 = scmp.eq.s32.totalorder %s35, 1
    %p142 = por %p140, %p141
    %p144 = scmp.ne.s32.totalorder %s129, %s143
    %p145 = scmp.eq.s32.totalorder %s35, 0
    %p146 = por %p144, %p145
    %s148 = sadd.s32 %s147, 1
    %p151 = scmp.eq.s32.totalorder %s29, 1
    %p152 = scmp.ne.s32.totalorder %s147, %s149
    %p153 = scmp.eq.s32.totalorder %s29, 0
    %p154 = por %p152, %p153
    %p155 = scmp.ne.s32.totalorder %s147, %s149
    %p156 = scmp.eq.s32.totalorder %s34, 1
    %p157 = por %p155, %p156
    %p158 = scmp.ne.s32.totalorder %s149, %s150
    %p159 = scmp.eq.s32.totalorder %s34, 0
    %p160 = por %p158, %p159
    %p161 = scmp.ne.s32.totalorder %s149, %s150
    %p162 = scmp.eq.s32.totalorder %s35, 1
    %p163 = por %p161, %p162
    %p165 = scmp.ne.s32.totalorder %s150, %s164
    %p166 = scmp.eq.s32.totalorder %s35, 0
    %p167 = por %p165, %p166
    %s169 = sadd.s32 %s168, 1
    %p172 = scmp.eq.s32.totalorder %s29, 1
    %p173 = scmp.ne.s32.totalorder %s168, %s170
    %p174 = scmp.eq.s32.totalorder %s29, 0
    %p175 = por %p173, %p174
    %p176 = scmp.ne.s32.totalorder %s168, %s170
    %p177 = scmp.eq.s32.totalorder %s34, 1
    %p178 = por %p176, %p177
    %p179 = scmp.ne.s32.totalorder %s170, %s171
    %p180 = scmp.eq.s32.totalorder %s34, 0
    %p181 = por %p179, %p180
    %p182 = scmp.ne.s32.totalorder %s170, %s171
    %p183 = scmp.eq.s32.totalorder %s35, 1
    %p184 = por %p182, %p183
    %p186 = scmp.ne.s32.totalorder %s171, %s185
    %p187 = scmp.eq.s32.totalorder %s35, 0
    %p188 = por %p186, %p187
    %s190 = sadd.s32 %s189, 1
    %p193 = scmp.eq.s32.totalorder %s29, 1
    %p194 = scmp.ne.s32.totalorder %s189, %s191
    %p195 = scmp.eq.s32.totalorder %s29, 0
    %p196 = por %p194, %p195
    %p197 = scmp.ne.s32.totalorder %s189, %s191
    %p198 = scmp.eq.s32.totalorder %s34, 1
    %p199 = por %p197, %p198
    %p200 = scmp.ne.s32.totalorder %s191, %s192
    %p201 = scmp.eq.s32.totalorder %s34, 0
    %p202 = por %p200, %p201
    %p203 = scmp.ne.s32.totalorder %s191, %s192
    %p204 = scmp.eq.s32.totalorder %s35, 1
    %p205 = por %p203, %p204
    %p207 = scmp.ne.s32.totalorder %s192, %s206
    %p208 = scmp.eq.s32.totalorder %s35, 0
    %p209 = por %p207, %p208
    %s211 = sadd.s32 %s210, 1
    %p214 = scmp.eq.s32.totalorder %s29, 1
    %p215 = scmp.ne.s32.totalorder %s210, %s212
    %p216 = scmp.eq.s32.totalorder %s29, 0
    %p217 = por %p215, %p216
    %p218 = scmp.ne.s32.totalorder %s210, %s212
    %p219 = scmp.eq.s32.totalorder %s34, 1
    %p220 = por %p218, %p219
    %p221 = scmp.ne.s32.totalorder %s212, %s213
    %p222 = scmp.eq.s32.totalorder %s34, 0
    %p223 = por %p221, %p222
    %p224 = scmp.ne.s32.totalorder %s212, %s213
    %p225 = scmp.eq.s32.totalorder %s35, 1
    %p226 = por %p224, %p225
    %p228 = scmp.ne.s32.totalorder %s213, %s227
    %p229 = scmp.eq.s32.totalorder %s35, 0
    %p230 = por %p228, %p229
    %s232 = sadd.s32 %s231, 1
    %p235 = scmp.eq.s32.totalorder %s29, 1
    %p236 = scmp.ne.s32.totalorder %s231, %s233
    %p237 = scmp.eq.s32.totalorder %s29, 0
    %p238 = por %p236, %p237
    %p239 = scmp.ne.s32.totalorder %s231, %s233
    %p240 = scmp.eq.s32.totalorder %s34, 1
    %p241 = por %p239, %p240
    %p242 = scmp.ne.s32.totalorder %s233, %s234
    %p243 = scmp.eq.s32.totalorder %s34, 0
    %p244 = por %p242, %p243
    %p245 = scmp.ne.s32.totalorder %s233, %s234
    %p246 = scmp.eq.s32.totalorder %s35, 1
    %p247 = por %p245, %p246
    %p249 = scmp.ne.s32.totalorder %s234, %s248
    %p250 = scmp.eq.s32.totalorder %s35, 0
    %p251 = por %p249, %p250
    %s253 = sadd.s32 %s252, 1
    %p256 = scmp.eq.s32.totalorder %s29, 1
    %p257 = scmp.ne.s32.totalorder %s252, %s254
    %p258 = scmp.eq.s32.totalorder %s29, 0
    %p259 = por %p257, %p258
    %p260 = scmp.ne.s32.totalorder %s252, %s254
    %p261 = scmp.eq.s32.totalorder %s34, 1
    %p262 = por %p260, %p261
    %p263 = scmp.ne.s32.totalorder %s254, %s255
    %p264 = scmp.eq.s32.totalorder %s34, 0
    %p265 = por %p263, %p264
    %p266 = scmp.ne.s32.totalorder %s254, %s255
    %p267 = scmp.eq.s32.totalorder %s35, 1
    %p268 = por %p266, %p267
    %p270 = scmp.ne.s32.totalorder %s255, %s269
    %p271 = scmp.eq.s32.totalorder %s35, 0
    %p272 = por %p270, %p271
    %s274 = sadd.s32 %s273, 1
    %p277 = scmp.eq.s32.totalorder %s29, 1
    %p278 = scmp.ne.s32.totalorder %s273, %s275
    %p279 = scmp.eq.s32.totalorder %s29, 0
    %p280 = por %p278, %p279
    %p281 = scmp.ne.s32.totalorder %s273, %s275
    %p282 = scmp.eq.s32.totalorder %s34, 1
    %p283 = por %p281, %p282
    %p284 = scmp.ne.s32.totalorder %s275, %s276
    %p285 = scmp.eq.s32.totalorder %s34, 0
    %p286 = por %p284, %p285
    %p287 = scmp.ne.s32.totalorder %s275, %s276
    %p288 = scmp.eq.s32.totalorder %s35, 1
    %p289 = por %p287, %p288
    %p291 = scmp.ne.s32.totalorder %s276, %s290
    %p292 = scmp.eq.s32.totalorder %s35, 0
    %p293 = por %p291, %p292
    %s295 = sadd.s32 %s294, 1
    %p298 = scmp.eq.s32.totalorder %s29, 1
    %p299 = scmp.ne.s32.totalorder %s294, %s296
    %p300 = scmp.eq.s32.totalorder %s29, 0
    %p301 = por %p299, %p300
    %p302 = scmp.ne.s32.totalorder %s294, %s296
    %p303 = scmp.eq.s32.totalorder %s34, 1
    %p304 = por %p302, %p303
    %p305 = scmp.ne.s32.totalorder %s296, %s297
    %p306 = scmp.eq.s32.totalorder %s34, 0
    %p307 = por %p305, %p306
    %p308 = scmp.ne.s32.totalorder %s296, %s297
    %p309 = scmp.eq.s32.totalorder %s35, 1
    %p310 = por %p308, %p309
    %p312 = scmp.ne.s32.totalorder %s297, %s311
    %p313 = scmp.eq.s32.totalorder %s35, 0
    %p314 = por %p312, %p313
    %s316 = sadd.s32 %s315, 1
    %p319 = scmp.eq.s32.totalorder %s29, 1
    %p320 = scmp.ne.s32.totalorder %s315, %s317
    %p321 = scmp.eq.s32.totalorder %s29, 0
    %p322 = por %p320, %p321
    %p323 = scmp.ne.s32.totalorder %s315, %s317
    %p324 = scmp.eq.s32.totalorder %s34, 1
    %p325 = por %p323, %p324
    %p326 = scmp.ne.s32.totalorder %s317, %s318
    %p327 = scmp.eq.s32.totalorder %s34, 0
    %p328 = por %p326, %p327
    %p329 = scmp.ne.s32.totalorder %s317, %s318
    %p330 = scmp.eq.s32.totalorder %s35, 1
    %p331 = por %p329, %p330
    %p333 = scmp.ne.s32.totalorder %s318, %s332
    %p334 = scmp.eq.s32.totalorder %s35, 0
    %p335 = por %p333, %p334
    %s337 = sadd.s32 %s336, 1
    %p340 = scmp.eq.s32.totalorder %s29, 1
    %p341 = scmp.ne.s32.totalorder %s336, %s338
    %p342 = scmp.eq.s32.totalorder %s29, 0
    %p343 = por %p341, %p342
    %p344 = scmp.ne.s32.totalorder %s336, %s338
    %p345 = scmp.eq.s32.totalorder %s34, 1
    %p346 = por %p344, %p345
    %p347 = scmp.ne.s32.totalorder %s338, %s339
    %p348 = scmp.eq.s32.totalorder %s34, 0
    %p349 = por %p347, %p348
    %p350 = scmp.ne.s32.totalorder %s338, %s339
    %p351 = scmp.eq.s32.totalorder %s35, 1
    %p352 = por %p350, %p351
    %p354 = scmp.ne.s32.totalorder %s339, %s353
    %p355 = scmp.eq.s32.totalorder %s35, 0
    %p356 = por %p354, %p355
    %s358 = sadd.s32 %s357, 1
    %p361 = scmp.eq.s32.totalorder %s29, 1
    %p362 = scmp.ne.s32.totalorder %s357, %s359
    %p363 = scmp.eq.s32.totalorder %s29, 0
    %p364 = por %p362, %p363
    %p365 = scmp.ne.s32.totalorder %s357, %s359
    %p366 = scmp.eq.s32.totalorder %s34, 1
    %p367 = por %p365, %p366
    %p368 = scmp.ne.s32.totalorder %s359, %s360
    %p369 = scmp.eq.s32.totalorder %s34, 0
    %p370 = por %p368, %p369
    %p371 = scmp.ne.s32.totalorder %s359, %s360
    %p372 = scmp.eq.s32.totalorder %s35, 1
    %p373 = por %p371, %p372
    %p375 = scmp.ne.s32.totalorder %s360, %s374
    %p376 = scmp.eq.s32.totalorder %s35, 0
    %p377 = por %p375, %p376
    %s379 = sadd.s32 %s378, 1
    %p382 = scmp.eq.s32.totalorder %s29, 1
    %p383 = scmp.ne.s32.totalorder %s378, %s380
    %p384 = scmp.eq.s32.totalorder %s29, 0
    %p385 = por %p383, %p384
    %p386 = scmp.ne.s32.totalorder %s378, %s380
    %p387 = scmp.eq.s32.totalorder %s34, 1
    %p388 = por %p386, %p387
    %p389 = scmp.ne.s32.totalorder %s380, %s381
    %p390 = scmp.eq.s32.totalorder %s34, 0
    %p391 = por %p389, %p390
    %p392 = scmp.ne.s32.totalorder %s380, %s381
    %p393 = scmp.eq.s32.totalorder %s35, 1
    %p394 = por %p392, %p393
    %p396 = scmp.ne.s32.totalorder %s381, %s395
    %p397 = scmp.eq.s32.totalorder %s35, 0
    %p398 = por %p396, %p397
    %s400 = sadd.s32 %s399, 1
    %p403 = scmp.eq.s32.totalorder %s29, 1
    %p404 = scmp.ne.s32.totalorder %s399, %s401
    %p405 = scmp.eq.s32.totalorder %s29, 0
    %p406 = por %p404, %p405
    %p407 = scmp.ne.s32.totalorder %s399, %s401
    %p408 = scmp.eq.s32.totalorder %s34, 1
    %p409 = por %p407, %p408
    %p410 = scmp.ne.s32.totalorder %s401, %s402
    %p411 = scmp.eq.s32.totalorder %s34, 0
    %p412 = por %p410, %p411
    %p413 = scmp.ne.s32.totalorder %s401, %s402
    %p414 = scmp.eq.s32.totalorder %s35, 1
    %p415 = por %p413, %p414
    %p417 = scmp.ne.s32.totalorder %s402, %s416
    %p418 = scmp.eq.s32.totalorder %s35, 0
    %p419 = por %p417, %p418
    %s421 = sadd.s32 %s420, 1
    %p424 = scmp.eq.s32.totalorder %s29, 1
    %p425 = scmp.ne.s32.totalorder %s420, %s422
    %p426 = scmp.eq.s32.totalorder %s29, 0
    %p427 = por %p425, %p426
    %p428 = scmp.ne.s32.totalorder %s420, %s422
    %p429 = scmp.eq.s32.totalorder %s34, 1
    %p430 = por %p428, %p429
    %p431 = scmp.ne.s32.totalorder %s422, %s423
    %p432 = scmp.eq.s32.totalorder %s34, 0
    %p433 = por %p431, %p432
    %p434 = scmp.ne.s32.totalorder %s422, %s423
    %p435 = scmp.eq.s32.totalorder %s35, 1
    %p436 = por %p434, %p435
    %p438 = scmp.ne.s32.totalorder %s423, %s437
    %p439 = scmp.eq.s32.totalorder %s35, 0
    %p440 = por %p438, %p439
    %s441 = ssub.s32 %s29, %s36
    %p442 = scmp.eq.s32.totalorder %s441, 0
    %s444 = sadd.s32 %s443, 1
    %s445 = scalar_select %p442, %s443, %s444
    %p448 = pneg %p442
    %p449 = scmp.eq.s32.totalorder %s29, 1
    %p450 = por %p448, %p449
    %p451 = scmp.ne.s32.totalorder %s443, %s446
    %p452 = scmp.eq.s32.totalorder %s29, 0
    %p453 = por %p451, %p452
    %p454 = scmp.ne.s32.totalorder %s443, %s446
    %p455 = scmp.eq.s32.totalorder %s34, 1
    %p456 = por %p454, %p455
    %p457 = scmp.ne.s32.totalorder %s446, %s447
    %p458 = scmp.eq.s32.totalorder %s34, 0
    %p459 = por %p457, %p458
    %p460 = scmp.ne.s32.totalorder %s446, %s447
    %p461 = scmp.eq.s32.totalorder %s35, 1
    %p462 = por %p460, %p461
    %p464 = scmp.ne.s32.totalorder %s447, %s463
    %p465 = scmp.eq.s32.totalorder %s35, 0
    %p466 = por %p464, %p465
    %p467 = scmp.le.s32.totalorder 1, %s29
    %p468 = scmp.lt.s32.totalorder %s29, 3
    %p469 = pnand %p467, %p468
    %p470 = pneg %p469
    // Predicated region
    $region9: #{_forward_device.1} parent=5 // pred_check
      _
    $region10: #{_forward_device.1} parent=5 // pred_check_branch
      %472 = sbr.rel (%p469) target = $region12
    $region11: #{_forward_device.1} parent=5 // pred_region
      %s473 = ssub.s32 %s29, 1
      // Predicated region
      $region13: #{_forward_device.1} parent=11 // pred_check
        %p474 = pneg %p76
      $region14: #{_forward_device.1} parent=11 // pred_check_branch
        %476 = sbr.rel (%p474) target = $region16
      $region15: #{_forward_device.1} parent=11 // pred_region
        _
      $region16: #{_forward_device.1} parent=11 // pred_fallthru
        _
      // Predicated region
      $region17: #{_forward_device.1} parent=11 // pred_check
        %p477 = pneg %p97
      $region18: #{_forward_device.1} parent=11 // pred_check_branch
        %479 = sbr.rel (%p477) target = $region20
      $region19: #{_forward_device.1} parent=11 // pred_region
        _
      $region20: #{_forward_device.1} parent=11 // pred_fallthru
        _
      // Predicated region
      $region21: #{_forward_device.1} parent=11 // pred_check
        %p480 = pneg %p118
      $region22: #{_forward_device.1} parent=11 // pred_check_branch
        %482 = sbr.rel (%p480) target = $region24
      $region23: #{_forward_device.1} parent=11 // pred_region
        _
      $region24: #{_forward_device.1} parent=11 // pred_fallthru
        _
      // Predicated region
      $region25: #{_forward_device.1} parent=11 // pred_check
        %p483 = pneg %p139
      $region26: #{_forward_device.1} parent=11 // pred_check_branch
        %485 = sbr.rel (%p483) target = $region28
      $region27: #{_forward_device.1} parent=11 // pred_region
        _
      $region28: #{_forward_device.1} parent=11 // pred_fallthru
        _
      // Predicated region
      $region29: #{_forward_device.1} parent=11 // pred_check
        %p486 = pneg %p160
      $region30: #{_forward_device.1} parent=11 // pred_check_branch
        %488 = sbr.rel (%p486) target = $region32
      $region31: #{_forward_device.1} parent=11 // pred_region
        _
      $region32: #{_forward_device.1} parent=11 // pred_fallthru
        _
      // Predicated region
      $region33: #{_forward_device.1} parent=11 // pred_check
        %p489 = pneg %p181
      $region34: #{_forward_device.1} parent=11 // pred_check_branch
        %491 = sbr.rel (%p489) target = $region36
      $region35: #{_forward_device.1} parent=11 // pred_region
        _
      $region36: #{_forward_device.1} parent=11 // pred_fallthru
        _
      // Predicated region
      $region37: #{_forward_device.1} parent=11 // pred_check
        %p492 = pneg %p202
      $region38: #{_forward_device.1} parent=11 // pred_check_branch
        %494 = sbr.rel (%p492) target = $region40
      $region39: #{_forward_device.1} parent=11 // pred_region
        _
      $region40: #{_forward_device.1} parent=11 // pred_fallthru
        _
      // Predicated region
      $region41: #{_forward_device.1} parent=11 // pred_check
        %p495 = pneg %p223
      $region42: #{_forward_device.1} parent=11 // pred_check_branch
        %497 = sbr.rel (%p495) target = $region44
      $region43: #{_forward_device.1} parent=11 // pred_region
        _
      $region44: #{_forward_device.1} parent=11 // pred_fallthru
        _
      // Predicated region
      $region45: #{_forward_device.1} parent=11 // pred_check
        %p498 = pneg %p244
      $region46: #{_forward_device.1} parent=11 // pred_check_branch
        %500 = sbr.rel (%p498) target = $region48
      $region47: #{_forward_device.1} parent=11 // pred_region
        _
      $region48: #{_forward_device.1} parent=11 // pred_fallthru
        _
      // Predicated region
      $region49: #{_forward_device.1} parent=11 // pred_check
        %p501 = pneg %p265
      $region50: #{_forward_device.1} parent=11 // pred_check_branch
        %503 = sbr.rel (%p501) target = $region52
      $region51: #{_forward_device.1} parent=11 // pred_region
        _
      $region52: #{_forward_device.1} parent=11 // pred_fallthru
        _
      // Predicated region
      $region53: #{_forward_device.1} parent=11 // pred_check
        %p504 = pneg %p286
      $region54: #{_forward_device.1} parent=11 // pred_check_branch
        %506 = sbr.rel (%p504) target = $region56
      $region55: #{_forward_device.1} parent=11 // pred_region
        _
      $region56: #{_forward_device.1} parent=11 // pred_fallthru
        _
      // Predicated region
      $region57: #{_forward_device.1} parent=11 // pred_check
        %p507 = pneg %p307
      $region58: #{_forward_device.1} parent=11 // pred_check_branch
        %509 = sbr.rel (%p507) target = $region60
      $region59: #{_forward_device.1} parent=11 // pred_region
        _
      $region60: #{_forward_device.1} parent=11 // pred_fallthru
        _
      // Predicated region
      $region61: #{_forward_device.1} parent=11 // pred_check
        %p510 = pneg %p328
      $region62: #{_forward_device.1} parent=11 // pred_check_branch
        %512 = sbr.rel (%p510) target = $region64
      $region63: #{_forward_device.1} parent=11 // pred_region
        _
      $region64: #{_forward_device.1} parent=11 // pred_fallthru
        _
      // Predicated region
      $region65: #{_forward_device.1} parent=11 // pred_check
        %p513 = pneg %p349
      $region66: #{_forward_device.1} parent=11 // pred_check_branch
        %515 = sbr.rel (%p513) target = $region68
      $region67: #{_forward_device.1} parent=11 // pred_region
        _
      $region68: #{_forward_device.1} parent=11 // pred_fallthru
        _
      // Predicated region
      $region69: #{_forward_device.1} parent=11 // pred_check
        %p516 = pneg %p370
      $region70: #{_forward_device.1} parent=11 // pred_check_branch
        %518 = sbr.rel (%p516) target = $region72
      $region71: #{_forward_device.1} parent=11 // pred_region
        _
      $region72: #{_forward_device.1} parent=11 // pred_fallthru
        _
      // Predicated region
      $region73: #{_forward_device.1} parent=11 // pred_check
        %p519 = pneg %p391
      $region74: #{_forward_device.1} parent=11 // pred_check_branch
        %521 = sbr.rel (%p519) target = $region76
      $region75: #{_forward_device.1} parent=11 // pred_region
        _
      $region76: #{_forward_device.1} parent=11 // pred_fallthru
        _
      // Predicated region
      $region77: #{_forward_device.1} parent=11 // pred_check
        %p522 = pneg %p412
      $region78: #{_forward_device.1} parent=11 // pred_check_branch
        %524 = sbr.rel (%p522) target = $region80
      $region79: #{_forward_device.1} parent=11 // pred_region
        _
      $region80: #{_forward_device.1} parent=11 // pred_fallthru
        _
      // Predicated region
      $region81: #{_forward_device.1} parent=11 // pred_check
        %p525 = pneg %p433
      $region82: #{_forward_device.1} parent=11 // pred_check_branch
        %527 = sbr.rel (%p525) target = $region84
      $region83: #{_forward_device.1} parent=11 // pred_region
        _
      $region84: #{_forward_device.1} parent=11 // pred_fallthru
        _
    $region12: #{_forward_device.1} parent=5 // pred_fallthru
      _
    %p528 = scmp.lt.s32.totalorder %s29, 2
    // Predicated region
    $region85: #{_forward_device.1} parent=5 // pred_check
      %p529 = pneg %p528
    $region86: #{_forward_device.1} parent=5 // pred_check_branch
      %531 = sbr.rel (%p529) target = $region88
    $region87: #{_forward_device.1} parent=5 // pred_region
      // Predicated region
      $region89: #{_forward_device.1} parent=87 // pred_check
        %p532 = pneg %p49
      $region90: #{_forward_device.1} parent=87 // pred_check_branch
        %534 = sbr.rel (%p532) target = $region92
      $region91: #{_forward_device.1} parent=87 // pred_region
        %p535 = scmp.lt.s32.totalorder %s29, 1
        %s536 = scalar_select %p535, %s29, 1
        %s537 = smul.addr %s536, 18
        %s538 = smul.addr %s537, 8
        %s539 = scalar_lea.vmem %s0, %s538
      $region92: #{_forward_device.1} parent=87 // pred_fallthru
        _
    $region88: #{_forward_device.1} parent=5 // pred_fallthru
      _
    %p540 = scmp.le.s32.totalorder 1, %s29
    %p541 = scmp.lt.s32.totalorder %s29, 3
    %p542 = pnand %p540, %p541
    %p543 = pneg %p542
    // Predicated region
    $region93: #{_forward_device.1} parent=5 // pred_check
      _
    $region94: #{_forward_device.1} parent=5 // pred_check_branch
      %545 = sbr.rel (%p542) target = $region96
    $region95: #{_forward_device.1} parent=5 // pred_region
      %s546 = ssub.s32 %s29, 1
      %p547 = scmp.lt.s32.totalorder %s34, 1
      %s548 = scalar_select %p547, %s34, 1
      %s549 = smul.addr %s548, 18
      %s550 = smul.addr %s549, 8
      %s551 = scalar_lea.vmem %s0, %s550
      %p552 = pneg %p55
      %p553 = pneg %p52
      %p554 = pneg %p76
      %p555 = pneg %p73
      %p556 = pneg %p97
      %p557 = pneg %p94
      %p558 = pneg %p118
      %p559 = pneg %p115
      %p560 = pneg %p139
      %p561 = pneg %p136
      %p562 = pneg %p160
      %p563 = pneg %p157
      %p564 = pneg %p181
      %p565 = pneg %p178
      %p566 = pneg %p202
      %p567 = pneg %p199
      %p568 = pneg %p223
      %p569 = pneg %p220
      %p570 = pneg %p244
      %p571 = pneg %p241
      %p572 = pneg %p265
      %p573 = pneg %p262
      %p574 = pneg %p286
      %p575 = pneg %p283
      %p576 = pneg %p307
      %p577 = pneg %p304
      %p578 = pneg %p328
      %p579 = pneg %p325
      %p580 = pneg %p349
      %p581 = pneg %p346
      %p582 = pneg %p370
      %p583 = pneg %p367
      %p584 = pneg %p391
      %p585 = pneg %p388
      %p586 = pneg %p412
      %p587 = pneg %p409
      %p588 = pneg %p433
      %p589 = pneg %p430
      %p590 = pneg %p459
      %p591 = pneg %p456
      %p592 = scmp.lt.s32.totalorder %s34, 1
      %s593 = scalar_select %p592, %s34, 1
      %s594 = scalar_lea.vmem %s19, %s593
      %p595 = scmp.lt.s32.totalorder %s34, 1
      %s596 = scalar_select %p595, %s34, 1
      %s597 = smul.addr %s596, 18
      %s598 = smul.addr %s597, 8
      %s599 = scalar_lea.vmem %s0, %s598
      %p600 = scmp.lt.s32.totalorder %s34, 1
      %s601 = scalar_select %p600, %s34, 1
      %s602 = scalar_lea.vmem %s19, %s601
      %v603 = vld [vmem:[%s599] sm:$0xff]
      %v604 = vld [vmem:[%s599 + $0x8] sm:$0xff]
      %v605 = vld [vmem:[%s599 + $0x10] sm:$0xff]
      %v606 = vld [vmem:[%s599 + $0x18] sm:$0xff]
      %v607 = vld [vmem:[%s599 + $0x20] sm:$0xff]
      %v608 = vld [vmem:[%s599 + $0x28] sm:$0xff]
      %v609 = vld [vmem:[%s599 + $0x30] sm:$0xff]
      %v610 = vld [vmem:[%s599 + $0x38] sm:$0xff]
      %v611 = vld [vmem:[%s599 + $0x40] sm:$0xff]
      %v612 = vld [vmem:[%s599 + $0x48] sm:$0xff]
      %v613 = vld [vmem:[%s599 + $0x50] sm:$0xff]
      %v614 = vld [vmem:[%s599 + $0x58] sm:$0xff]
      %v615 = vld [vmem:[%s599 + $0x60] sm:$0xff]
      %v616 = vld [vmem:[%s599 + $0x68] sm:$0xff]
      %v617 = vld [vmem:[%s599 + $0x70] sm:$0xff]
      %v618 = vld [vmem:[%s599 + $0x78] sm:$0xff]
      %v619 = vld [vmem:[%s599 + $0x80] sm:$0xff]
      %v620 = vld [vmem:[%s599 + $0x88] sm:$0xff]
      %v621 = vld [vmem:[%s1] sm:$0xff]
      %v622 = vld [vmem:[%s1 + $0x8] sm:$0xff]
      %v623 = vld [vmem:[%s1 + $0x10] sm:$0xff]
      %v624 = vld [vmem:[%s1 + $0x18] sm:$0xff]
      %v625 = vld [vmem:[%s1 + $0x20] sm:$0xff]
      %v626 = vld [vmem:[%s1 + $0x28] sm:$0xff]
      %v627 = vld [vmem:[%s1 + $0x30] sm:$0xff]
      %v628 = vld [vmem:[%s1 + $0x38] sm:$0xff]
      %v629 = vld [vmem:[%s1 + $0x40] sm:$0xff]
      %v630 = vld [vmem:[%s1 + $0x48] sm:$0xff]
      %v631 = vld [vmem:[%s1 + $0x50] sm:$0xff]
      %v632 = vld [vmem:[%s1 + $0x58] sm:$0xff]
      %v633 = vld [vmem:[%s1 + $0x60] sm:$0xff]
      %v634 = vld [vmem:[%s1 + $0x68] sm:$0xff]
      %v635 = vld [vmem:[%s1 + $0x70] sm:$0xff]
      %v636 = vld [vmem:[%s1 + $0x78] sm:$0xff]
      %v637 = vld [vmem:[%s1 + $0x80] sm:$0xff]
      %v638 = vld [vmem:[%s1 + $0x88] sm:$0xff]
      %v639 = vld [vmem:[%s1 + $0x90] sm:$0xff]
      %v640 = vld [vmem:[%s1 + $0x98] sm:$0xff]
      %v641 = vld [vmem:[%s1 + $0xa0] sm:$0xff]
      %v642 = vld [vmem:[%s1 + $0xa8] sm:$0xff]
      %v643 = vld [vmem:[%s1 + $0xb0] sm:$0xff]
      %v644 = vld [vmem:[%s1 + $0xb8] sm:$0xff]
      %v645 = vld [vmem:[%s2] sm:$0xff]
      %v646 = vld [vmem:[%s2 + $0x8] sm:$0xff]
      %v647 = vld [vmem:[%s2 + $0x10] sm:$0xff]
      %v648 = vld [vmem:[%s2 + $0x18] sm:$0xff]
      %v649 = vld [vmem:[%s2 + $0x20] sm:$0xff]
      %v650 = vld [vmem:[%s2 + $0x28] sm:$0xff]
      %v651 = vld [vmem:[%s2 + $0x30] sm:$0xff]
      %v652 = vld [vmem:[%s2 + $0x38] sm:$0xff]
      %v653 = vld [vmem:[%s2 + $0x40] sm:$0xff]
      %v654 = vld [vmem:[%s2 + $0x48] sm:$0xff]
      %v655 = vld [vmem:[%s2 + $0x50] sm:$0xff]
      %v656 = vld [vmem:[%s2 + $0x58] sm:$0xff]
      %v657 = vld [vmem:[%s2 + $0x60] sm:$0xff]
      %v658 = vld [vmem:[%s2 + $0x68] sm:$0xff]
      %v659 = vld [vmem:[%s2 + $0x70] sm:$0xff]
      %v660 = vld [vmem:[%s2 + $0x78] sm:$0xff]
      %v661 = vld [vmem:[%s2 + $0x80] sm:$0xff]
      %v662 = vld [vmem:[%s2 + $0x88] sm:$0xff]
      %v663 = vld [vmem:[%s2 + $0x90] sm:$0xff]
      %v664 = vld [vmem:[%s2 + $0x98] sm:$0xff]
      %v665 = vld [vmem:[%s2 + $0xa0] sm:$0xff]
      %v666 = vld [vmem:[%s2 + $0xa8] sm:$0xff]
      %v667 = vld [vmem:[%s2 + $0xb0] sm:$0xff]
      %v668 = vld [vmem:[%s2 + $0xb8] sm:$0xff]
      %687 = vrot.lane.b32.xlu0 %v603, 127
      %v688 = vpop.permute.xlu0 %687
      %689 = vrot.lane.b32.xlu0 %v604, 127
      %v690 = vpop.permute.xlu0 %689
      %691 = vrot.lane.b32.xlu0 %v605, 127
      %v692 = vpop.permute.xlu0 %691
      %693 = vrot.lane.b32.xlu0 %v606, 127
      %v694 = vpop.permute.xlu0 %693
      %695 = vrot.lane.b32.xlu0 %v607, 127
      %v696 = vpop.permute.xlu0 %695
      %697 = vrot.lane.b32.xlu0 %v608, 127
      %v698 = vpop.permute.xlu0 %697
      %699 = vrot.lane.b32.xlu0 %v609, 127
      %v700 = vpop.permute.xlu0 %699
      %701 = vrot.lane.b32.xlu0 %v610, 127
      %v702 = vpop.permute.xlu0 %701
      %703 = vrot.lane.b32.xlu0 %v611, 127
      %v704 = vpop.permute.xlu0 %703
      %705 = vrot.lane.b32.xlu0 %v612, 127
      %v706 = vpop.permute.xlu0 %705
      %707 = vrot.lane.b32.xlu0 %v613, 127
      %v708 = vpop.permute.xlu0 %707
      %709 = vrot.lane.b32.xlu0 %v614, 127
      %v710 = vpop.permute.xlu0 %709
      %711 = vrot.lane.b32.xlu0 %v615, 127
      %v712 = vpop.permute.xlu0 %711
      %713 = vrot.lane.b32.xlu0 %v616, 127
      %v714 = vpop.permute.xlu0 %713
      %715 = vrot.lane.b32.xlu0 %v617, 127
      %v716 = vpop.permute.xlu0 %715
      %717 = vrot.lane.b32.xlu0 %v618, 127
      %v718 = vpop.permute.xlu0 %717
      %719 = vrot.lane.b32.xlu0 %v619, 127
      %v720 = vpop.permute.xlu0 %719
      %721 = vrot.lane.b32.xlu0 %v620, 127
      %v722 = vpop.permute.xlu0 %721
      %vm723 = vcmask 1039360
      %v724 = vsel %vm723, %v688, %v690
      %v725 = vsel %vm723, %v690, %v692
      %v726 = vsel %vm723, %v694, %v696
      %v727 = vsel %vm723, %v696, %v698
      %v728 = vsel %vm723, %v700, %v702
      %v729 = vsel %vm723, %v702, %v704
      %v730 = vsel %vm723, %v706, %v708
      %v731 = vsel %vm723, %v708, %v710
      %v732 = vsel %vm723, %v712, %v714
      %v733 = vsel %vm723, %v714, %v716
      %v734 = vsel %vm723, %v718, %v720
      %v735 = vsel %vm723, %v720, %v722
      %vm754 = vcmask 629760
      %v755 = vsel %vm754, %v692, 0.0
      %v756 = vsel %vm754, %v698, 0.0
      %v757 = vsel %vm754, %v704, 0.0
      %v758 = vsel %vm754, %v710, 0.0
      %v759 = vsel %vm754, %v716, 0.0
      %v760 = vsel %vm754, %v722, 0.0
      %vm761 = vcmask 392192
      %v763 = vsel %vm761, %v645, 0
      %v766 = vsel %vm761, %v646, 0
      %v769 = vsel %vm761, %v647, 0
      %v772 = vsel %vm761, %v648, 0
      %v775 = vsel %vm761, %v649, 0
      %v778 = vsel %vm761, %v650, 0
      %v781 = vsel %vm761, %v651, 0
      %v784 = vsel %vm761, %v652, 0
      %v787 = vsel %vm761, %v653, 0
      %v790 = vsel %vm761, %v654, 0
      %v793 = vsel %vm761, %v655, 0
      %v796 = vsel %vm761, %v656, 0
      %v799 = vsel %vm761, %v657, 0
      %v802 = vsel %vm761, %v658, 0
      %v805 = vsel %vm761, %v659, 0
      %v808 = vsel %vm761, %v660, 0
      %v811 = vsel %vm761, %v661, 0
      %v814 = vsel %vm761, %v662, 0
      %v817 = vsel %vm761, %v663, 0
      %v820 = vsel %vm761, %v664, 0
      %v823 = vsel %vm761, %v665, 0
      %v826 = vsel %vm761, %v666, 0
      %v829 = vsel %vm761, %v667, 0
      %v832 = vsel %vm761, %v668, 0
      %834 = vmatprep.subr.mxu0 %v725
      %835 = vmatpush1.msra.mxu0 %v724
      %836 = vmatprep.subr.mxu0 %v727
      %837 = vmatpush1.msra.mxu0 %v726
      %838 = vmatprep.subr.mxu0 %v729
      %839 = vmatpush1.msra.mxu0 %v728
      %840 = vmatprep.subr.mxu0 %v731
      %841 = vmatpush1.msra.mxu0 %v730
      %842 = vmatprep.subr.mxu0 %v733
      %843 = vmatpush1.msra.mxu0 %v732
      %844 = vmatprep.subr.mxu0 %v735
      %845 = vmatpush1.msra.mxu0 %v734
      %846 = vmatprep.subr.mxu0 0.0
      %847 = vmatpush1.msra.mxu0 0.0
      %848 = vmatprep.subr.mxu0 0.0
      %849 = vmatpush1.msra.mxu0 0.0
      %850 = vmatprep.subr.mxu0 0.0
      %851 = vmatpush1.msra.mxu0 0.0
      %852 = vmatprep.subr.mxu0 0.0
      %853 = vmatpush1.msra.mxu0 0.0
      %854 = vmatprep.subr.mxu0 0.0
      %855 = vmatpush1.msra.mxu0 0.0
      %856 = vmatprep.subr.mxu0 0.0
      %857 = vmatpush1.msra.mxu0 0.0
      %858 = vmatprep.subr.mxu0 0.0
      %859 = vmatpush1.msra.mxu0 0.0
      %860 = vmatprep.subr.mxu0 0.0
      %861 = vmatpush1.msra.mxu0 0.0
      %862 = vmatprep.subr.mxu0 0.0
      %863 = vmatpush1.msra.mxu0 0.0
      %864 = vmatprep.subr.mxu0 0.0
      %865 = vmatpush1.msra.mxu0 0.0
      %866 = vmatprep.subr.mxu0 0.0
      %867 = vmatpush1.msra.mxu0 0.0
      %868 = vmatprep.subr.mxu0 0.0
      %869 = vmatpush1.msra.mxu0 0.0
      %870 = vmatprep.subr.mxu0 0.0
      %871 = vmatpush1.msra.mxu0 0.0
      %872 = vmatprep.subr.mxu0 0.0
      %873 = vmatpush1.msra.mxu0 0.0
      %874 = vmatprep.subr.mxu0 0.0
      %875 = vmatpush1.msra.mxu0 0.0
      %876 = vmatprep.subr.mxu0 0.0
      %877 = vmatpush1.msra.mxu0 0.0
      %878 = vmatprep.subr.mxu0 0.0
      %879 = vmatpush1.msra.mxu0 0.0
      %880 = vmatprep.subr.mxu0 0.0
      %881 = vmatpush1.msra.mxu0 0.0
      %882 = vmatprep.subr.mxu0 0.0
      %883 = vmatpush1.msra.mxu0 0.0
      %884 = vmatprep.subr.mxu0 0.0
      %885 = vmatpush1.msra.mxu0 0.0
      %886 = vmatprep.subr.mxu0 0.0
      %887 = vmatpush1.msra.mxu0 0.0
      %888 = vmatprep.subr.mxu0 0.0
      %889 = vmatpush1.msra.mxu0 0.0
      %890 = vmatprep.subr.mxu0 0.0
      %891 = vmatpush1.msra.mxu0 0.0
      %892 = vmatprep.subr.mxu0 0.0
      %893 = vmatpush1.msra.mxu0 0.0
      %894 = vmatprep.subr.mxu0 0.0
      %895 = vmatpush1.msra.mxu0 0.0
      %896 = vmatprep.subr.mxu0 0.0
      %897 = vmatpush1.msra.mxu0 0.0
      %898 = vmatprep.mubr.f32.mxu0 0.0
      %899 = vmatmul.mubr.f32.gmra.mrb[0].mxu0 %v763
      %v900 = vpop.f32.mrb[0].mxu0
      %v901 = vadd.f32 0.0, %v900
      %v902 = vpop.f32.mrb[0].mxu0
      %v903 = vadd.f32 0.0, %v902
      %904 = vmatprep.mubr.f32.mxu0 0.0
      %905 = vmatmul.mubr.f32.gmra.mrb[0].mxu0 %v766
      %v906 = vpop.f32.mrb[0].mxu0
      %v907 = vadd.f32 0.0, %v906
      %v908 = vpop.f32.mrb[0].mxu0
      %v909 = vadd.f32 0.0, %v908
      %910 = vmatprep.mubr.f32.mxu0 0.0
      %911 = vmatmul.mubr.f32.gmra.mrb[0].mxu0 %v769
      %v912 = vpop.f32.mrb[0].mxu0
      %v913 = vadd.f32 0.0, %v912
      %v914 = vpop.f32.mrb[0].mxu0
      %v915 = vadd.f32 0.0, %v914
      %916 = vmatprep.mubr.f32.mxu0 0.0
      %917 = vmatmul.mubr.f32.gmra.mrb[0].mxu0 %v772
      %v918 = vpop.f32.mrb[0].mxu0
      %v919 = vadd.f32 0.0, %v918
      %v920 = vpop.f32.mrb[0].mxu0
      %v921 = vadd.f32 0.0, %v920
      %922 = vmatprep.mubr.f32.mxu0 0.0
      %923 = vmatmul.mubr.f32.gmra.mrb[0].mxu0 %v775
      %v924 = vpop.f32.mrb[0].mxu0
      %v925 = vadd.f32 0.0, %v924
      %v926 = vpop.f32.mrb[0].mxu0
      %v927 = vadd.f32 0.0, %v926
      %928 = vmatprep.mubr.f32.mxu0 0.0
      %929 = vmatmul.mubr.f32.gmra.mrb[0].mxu0 %v778
      %v930 = vpop.f32.mrb[0].mxu0
      %v931 = vadd.f32 0.0, %v930
      %v932 = vpop.f32.mrb[0].mxu0
      %v933 = vadd.f32 0.0, %v932
      %934 = vmatprep.mubr.f32.mxu0 0.0
      %935 = vmatmul.mubr.f32.gmra.mrb[0].mxu0 %v781
      %v936 = vpop.f32.mrb[0].mxu0
      %v937 = vadd.f32 0.0, %v936
      %v938 = vpop.f32.mrb[0].mxu0
      %v939 = vadd.f32 0.0, %v938
      %940 = vmatprep.mubr.f32.mxu0 0.0
      %941 = vmatmul.mubr.f32.gmra.mrb[0].mxu0 %v784
      %v942 = vpop.f32.mrb[0].mxu0
      %v943 = vadd.f32 0.0, %v942
      %v944 = vpop.f32.mrb[0].mxu0
      %v945 = vadd.f32 0.0, %v944
      %946 = vmatprep.mubr.f32.mxu0 0.0
      %947 = vmatmul.mubr.f32.gmra.mrb[0].mxu0 %v787
      %v948 = vpop.f32.mrb[0].mxu0
      %v949 = vadd.f32 0.0, %v948
      %v950 = vpop.f32.mrb[0].mxu0
      %v951 = vadd.f32 0.0, %v950
      %952 = vmatprep.mubr.f32.mxu0 0.0
      %953 = vmatmul.mubr.f32.gmra.mrb[0].mxu0 %v790
      %v954 = vpop.f32.mrb[0].mxu0
      %v955 = vadd.f32 0.0, %v954
      %v956 = vpop.f32.mrb[0].mxu0
      %v957 = vadd.f32 0.0, %v956
      %958 = vmatprep.mubr.f32.mxu0 0.0
      %959 = vmatmul.mubr.f32.gmra.mrb[0].mxu0 %v793
      %v960 = vpop.f32.mrb[0].mxu0
      %v961 = vadd.f32 0.0, %v960
      %v962 = vpop.f32.mrb[0].mxu0
      %v963 = vadd.f32 0.0, %v962
      %964 = vmatprep.mubr.f32.mxu0 0.0
      %965 = vmatmul.mubr.f32.gmra.mrb[0].mxu0 %v796
      %v966 = vpop.f32.mrb[0].mxu0
      %v967 = vadd.f32 0.0, %v966
      %v968 = vpop.f32.mrb[0].mxu0
      %v969 = vadd.f32 0.0, %v968
      %970 = vmatprep.mubr.f32.mxu0 0.0
      %971 = vmatmul.mubr.f32.gmra.mrb[0].mxu0 %v799
      %v972 = vpop.f32.mrb[0].mxu0
      %v973 = vadd.f32 0.0, %v972
      %v974 = vpop.f32.mrb[0].mxu0
      %v975 = vadd.f32 0.0, %v974
      %976 = vmatprep.mubr.f32.mxu0 0.0
      %977 = vmatmul.mubr.f32.gmra.mrb[0].mxu0 %v802
      %v978 = vpop.f32.mrb[0].mxu0
      %v979 = vadd.f32 0.0, %v978
      %v980 = vpop.f32.mrb[0].mxu0
      %v981 = vadd.f32 0.0, %v980
      %982 = vmatprep.mubr.f32.mxu0 0.0
      %983 = vmatmul.mubr.f32.gmra.mrb[0].mxu0 %v805
      %v984 = vpop.f32.mrb[0].mxu0
      %v985 = vadd.f32 0.0, %v984
      %v986 = vpop.f32.mrb[0].mxu0
      %v987 = vadd.f32 0.0, %v986
      %988 = vmatprep.mubr.f32.mxu0 0.0
      %989 = vmatmul.mubr.f32.gmra.mrb[0].mxu0 %v808
      %v990 = vpop.f32.mrb[0].mxu0
      %v991 = vadd.f32 0.0, %v990
      %v992 = vpop.f32.mrb[0].mxu0
      %v993 = vadd.f32 0.0, %v992
      %994 = vmatprep.mubr.f32.mxu0 0.0
      %995 = vmatmul.mubr.f32.gmra.mrb[0].mxu0 %v811
      %v996 = vpop.f32.mrb[0].mxu0
      %v997 = vadd.f32 0.0, %v996
      %v998 = vpop.f32.mrb[0].mxu0
      %v999 = vadd.f32 0.0, %v998
      %1000 = vmatprep.mubr.f32.mxu0 0.0
      %1001 = vmatmul.mubr.f32.gmra.mrb[0].mxu0 %v814
      %v1002 = vpop.f32.mrb[0].mxu0
      %v1003 = vadd.f32 0.0, %v1002
      %v1004 = vpop.f32.mrb[0].mxu0
      %v1005 = vadd.f32 0.0, %v1004
      %1006 = vmatprep.mubr.f32.mxu0 0.0
      %1007 = vmatmul.mubr.f32.gmra.mrb[0].mxu0 %v817
      %v1008 = vpop.f32.mrb[0].mxu0
      %v1009 = vadd.f32 0.0, %v1008
      %v1010 = vpop.f32.mrb[0].mxu0
      %v1011 = vadd.f32 0.0, %v1010
      %1012 = vmatprep.mubr.f32.mxu0 0.0
      %1013 = vmatmul.mubr.f32.gmra.mrb[0].mxu0 %v820
      %v1014 = vpop.f32.mrb[0].mxu0
      %v1015 = vadd.f32 0.0, %v1014
      %v1016 = vpop.f32.mrb[0].mxu0
      %v1017 = vadd.f32 0.0, %v1016
      %1018 = vmatprep.mubr.f32.mxu0 0.0
      %1019 = vmatmul.mubr.f32.gmra.mrb[0].mxu0 %v823
      %v1020 = vpop.f32.mrb[0].mxu0
      %v1021 = vadd.f32 0.0, %v1020
      %v1022 = vpop.f32.mrb[0].mxu0
      %v1023 = vadd.f32 0.0, %v1022
      %1024 = vmatprep.mubr.f32.mxu0 0.0
      %1025 = vmatmul.mubr.f32.gmra.mrb[0].mxu0 %v826
      %v1026 = vpop.f32.mrb[0].mxu0
      %v1027 = vadd.f32 0.0, %v1026
      %v1028 = vpop.f32.mrb[0].mxu0
      %v1029 = vadd.f32 0.0, %v1028
      %1030 = vmatprep.mubr.f32.mxu0 0.0
      %1031 = vmatmul.mubr.f32.gmra.mrb[0].mxu0 %v829
      %v1032 = vpop.f32.mrb[0].mxu0
      %v1033 = vadd.f32 0.0, %v1032
      %v1034 = vpop.f32.mrb[0].mxu0
      %v1035 = vadd.f32 0.0, %v1034
      %1036 = vmatprep.mubr.f32.mxu0 0.0
      %1037 = vmatmul.mubr.f32.gmra.mrb[0].mxu0 %v832
      %v1038 = vpop.f32.mrb[0].mxu0
      %v1039 = vadd.f32 0.0, %v1038
      %v1040 = vpop.f32.mrb[0].mxu0
      %v1041 = vadd.f32 0.0, %v1040
      %1042 = vdwg.mxu0
      %1043 = vmatprep.subr.mxu0 0.0
      %1044 = vmatpush1.msra.mxu0 %v755
      %1045 = vmatprep.subr.mxu0 0.0
      %1046 = vmatpush1.msra.mxu0 %v756
      %1047 = vmatprep.subr.mxu0 0.0
      %1048 = vmatpush1.msra.mxu0 %v757
      %1049 = vmatprep.subr.mxu0 0.0
      %1050 = vmatpush1.msra.mxu0 %v758
      %1051 = vmatprep.subr.mxu0 0.0
      %1052 = vmatpush1.msra.mxu0 %v759
      %1053 = vmatprep.subr.mxu0 0.0
      %1054 = vmatpush1.msra.mxu0 %v760
      %1055 = vmatprep.subr.mxu0 0.0
      %1056 = vmatpush1.msra.mxu0 0.0
      %1057 = vmatprep.subr.mxu0 0.0
      %1058 = vmatpush1.msra.mxu0 0.0
      %1059 = vmatprep.subr.mxu0 0.0
      %1060 = vmatpush1.msra.mxu0 0.0
      %1061 = vmatprep.subr.mxu0 0.0
      %1062 = vmatpush1.msra.mxu0 0.0
      %1063 = vmatprep.subr.mxu0 0.0
      %1064 = vmatpush1.msra.mxu0 0.0
      %1065 = vmatprep.subr.mxu0 0.0
      %1066 = vmatpush1.msra.mxu0 0.0
      %1067 = vmatprep.subr.mxu0 0.0
      %1068 = vmatpush1.msra.mxu0 0.0
      %1069 = vmatprep.subr.mxu0 0.0
      %1070 = vmatpush1.msra.mxu0 0.0
      %1071 = vmatprep.subr.mxu0 0.0
      %1072 = vmatpush1.msra.mxu0 0.0
      %1073 = vmatprep.subr.mxu0 0.0
      %1074 = vmatpush1.msra.mxu0 0.0
      %1075 = vmatprep.subr.mxu0 0.0
      %1076 = vmatpush1.msra.mxu0 0.0
      %1077 = vmatprep.subr.mxu0 0.0
      %1078 = vmatpush1.msra.mxu0 0.0
      %1079 = vmatprep.subr.mxu0 0.0
      %1080 = vmatpush1.msra.mxu0 0.0
      %1081 = vmatprep.subr.mxu0 0.0
      %1082 = vmatpush1.msra.mxu0 0.0
      %1083 = vmatprep.subr.mxu0 0.0
      %1084 = vmatpush1.msra.mxu0 0.0
      %1085 = vmatprep.subr.mxu0 0.0
      %1086 = vmatpush1.msra.mxu0 0.0
      %1087 = vmatprep.subr.mxu0 0.0
      %1088 = vmatpush1.msra.mxu0 0.0
      %1089 = vmatprep.subr.mxu0 0.0
      %1090 = vmatpush1.msra.mxu0 0.0
      %1091 = vmatprep.subr.mxu0 0.0
      %1092 = vmatpush1.msra.mxu0 0.0
      %1093 = vmatprep.subr.mxu0 0.0
      %1094 = vmatpush1.msra.mxu0 0.0
      %1095 = vmatprep.subr.mxu0 0.0
      %1096 = vmatpush1.msra.mxu0 0.0
      %1097 = vmatprep.subr.mxu0 0.0
      %1098 = vmatpush1.msra.mxu0 0.0
      %1099 = vmatprep.subr.mxu0 0.0
      %1100 = vmatpush1.msra.mxu0 0.0
      %1101 = vmatprep.subr.mxu0 0.0
      %1102 = vmatpush1.msra.mxu0 0.0
      %1103 = vmatprep.subr.mxu0 0.0
      %1104 = vmatpush1.msra.mxu0 0.0
      %1105 = vmatprep.subr.mxu0 0.0
      %1106 = vmatpush1.msra.mxu0 0.0
      %1107 = vmatprep.mubr.f32.mxu0 0.0
      %1108 = vmatmul.mubr.f32.gmra.mrb[0].mxu0 %v763
      %v1109 = vpop.f32.mrb[0].mxu0
      %v1110 = vadd.f32 0.0, %v1109
      %v1111 = vpop.f32.mrb[0].mxu0
      %1112 = vmatprep.mubr.f32.mxu0 0.0
      %1113 = vmatmul.mubr.f32.gmra.mrb[0].mxu0 %v766
      %v1114 = vpop.f32.mrb[0].mxu0
      %v1115 = vadd.f32 0.0, %v1114
      %v1116 = vpop.f32.mrb[0].mxu0
      %1117 = vmatprep.mubr.f32.mxu0 0.0
      %1118 = vmatmul.mubr.f32.gmra.mrb[0].mxu0 %v769
      %v1119 = vpop.f32.mrb[0].mxu0
      %v1120 = vadd.f32 0.0, %v1119
      %v1121 = vpop.f32.mrb[0].mxu0
      %1122 = vmatprep.mubr.f32.mxu0 0.0
      %1123 = vmatmul.mubr.f32.gmra.mrb[0].mxu0 %v772
      %v1124 = vpop.f32.mrb[0].mxu0
      %v1125 = vadd.f32 0.0, %v1124
      %v1126 = vpop.f32.mrb[0].mxu0
      %1127 = vmatprep.mubr.f32.mxu0 0.0
      %1128 = vmatmul.mubr.f32.gmra.mrb[0].mxu0 %v775
      %v1129 = vpop.f32.mrb[0].mxu0
      %v1130 = vadd.f32 0.0, %v1129
      %v1131 = vpop.f32.mrb[0].mxu0
      %1132 = vmatprep.mubr.f32.mxu0 0.0
      %1133 = vmatmul.mubr.f32.gmra.mrb[0].mxu0 %v778
      %v1134 = vpop.f32.mrb[0].mxu0
      %v1135 = vadd.f32 0.0, %v1134
      %v1136 = vpop.f32.mrb[0].mxu0
      %1137 = vmatprep.mubr.f32.mxu0 0.0
      %1138 = vmatmul.mubr.f32.gmra.mrb[0].mxu0 %v781
      %v1139 = vpop.f32.mrb[0].mxu0
      %v1140 = vadd.f32 0.0, %v1139
      %v1141 = vpop.f32.mrb[0].mxu0
      %1142 = vmatprep.mubr.f32.mxu0 0.0
      %1143 = vmatmul.mubr.f32.gmra.mrb[0].mxu0 %v784
      %v1144 = vpop.f32.mrb[0].mxu0
      %v1145 = vadd.f32 0.0, %v1144
      %v1146 = vpop.f32.mrb[0].mxu0
      %1147 = vmatprep.mubr.f32.mxu0 0.0
      %1148 = vmatmul.mubr.f32.gmra.mrb[0].mxu0 %v787
      %v1149 = vpop.f32.mrb[0].mxu0
      %v1150 = vadd.f32 0.0, %v1149
      %v1151 = vpop.f32.mrb[0].mxu0
      %1152 = vmatprep.mubr.f32.mxu0 0.0
      %1153 = vmatmul.mubr.f32.gmra.mrb[0].mxu0 %v790
      %v1154 = vpop.f32.mrb[0].mxu0
      %v1155 = vadd.f32 0.0, %v1154
      %v1156 = vpop.f32.mrb[0].mxu0
      %1157 = vmatprep.mubr.f32.mxu0 0.0
      %1158 = vmatmul.mubr.f32.gmra.mrb[0].mxu0 %v793
      %v1159 = vpop.f32.mrb[0].mxu0
      %v1160 = vadd.f32 0.0, %v1159
      %v1161 = vpop.f32.mrb[0].mxu0
      %1162 = vmatprep.mubr.f32.mxu0 0.0
      %1163 = vmatmul.mubr.f32.gmra.mrb[0].mxu0 %v796
      %v1164 = vpop.f32.mrb[0].mxu0
      %v1165 = vadd.f32 0.0, %v1164
      %v1166 = vpop.f32.mrb[0].mxu0
      %1167 = vmatprep.mubr.f32.mxu0 0.0
      %1168 = vmatmul.mubr.f32.gmra.mrb[0].mxu0 %v799
      %v1169 = vpop.f32.mrb[0].mxu0
      %v1170 = vadd.f32 0.0, %v1169
      %v1171 = vpop.f32.mrb[0].mxu0
      %1172 = vmatprep.mubr.f32.mxu0 0.0
      %1173 = vmatmul.mubr.f32.gmra.mrb[0].mxu0 %v802
      %v1174 = vpop.f32.mrb[0].mxu0
      %v1175 = vadd.f32 0.0, %v1174
      %v1176 = vpop.f32.mrb[0].mxu0
      %1177 = vmatprep.mubr.f32.mxu0 0.0
      %1178 = vmatmul.mubr.f32.gmra.mrb[0].mxu0 %v805
      %v1179 = vpop.f32.mrb[0].mxu0
      %v1180 = vadd.f32 0.0, %v1179
      %v1181 = vpop.f32.mrb[0].mxu0
      %1182 = vmatprep.mubr.f32.mxu0 0.0
      %1183 = vmatmul.mubr.f32.gmra.mrb[0].mxu0 %v808
      %v1184 = vpop.f32.mrb[0].mxu0
      %v1185 = vadd.f32 0.0, %v1184
      %v1186 = vpop.f32.mrb[0].mxu0
      %1187 = vmatprep.mubr.f32.mxu0 0.0
      %1188 = vmatmul.mubr.f32.gmra.mrb[0].mxu0 %v811
      %v1189 = vpop.f32.mrb[0].mxu0
      %v1190 = vadd.f32 0.0, %v1189
      %v1191 = vpop.f32.mrb[0].mxu0
      %1192 = vmatprep.mubr.f32.mxu0 0.0
      %1193 = vmatmul.mubr.f32.gmra.mrb[0].mxu0 %v814
      %v1194 = vpop.f32.mrb[0].mxu0
      %v1195 = vadd.f32 0.0, %v1194
      %v1196 = vpop.f32.mrb[0].mxu0
      %1197 = vmatprep.mubr.f32.mxu0 0.0
      %1198 = vmatmul.mubr.f32.gmra.mrb[0].mxu0 %v817
      %v1199 = vpop.f32.mrb[0].mxu0
      %v1200 = vadd.f32 0.0, %v1199
      %v1201 = vpop.f32.mrb[0].mxu0
      %1202 = vmatprep.mubr.f32.mxu0 0.0
      %1203 = vmatmul.mubr.f32.gmra.mrb[0].mxu0 %v820
      %v1204 = vpop.f32.mrb[0].mxu0
      %v1205 = vadd.f32 0.0, %v1204
      %v1206 = vpop.f32.mrb[0].mxu0
      %1207 = vmatprep.mubr.f32.mxu0 0.0
      %1208 = vmatmul.mubr.f32.gmra.mrb[0].mxu0 %v823
      %v1209 = vpop.f32.mrb[0].mxu0
      %v1210 = vadd.f32 0.0, %v1209
      %v1211 = vpop.f32.mrb[0].mxu0
      %1212 = vmatprep.mubr.f32.mxu0 0.0
      %1213 = vmatmul.mubr.f32.gmra.mrb[0].mxu0 %v826
      %v1214 = vpop.f32.mrb[0].mxu0
      %v1215 = vadd.f32 0.0, %v1214
      %v1216 = vpop.f32.mrb[0].mxu0
      %1217 = vmatprep.mubr.f32.mxu0 0.0
      %1218 = vmatmul.mubr.f32.gmra.mrb[0].mxu0 %v829
      %v1219 = vpop.f32.mrb[0].mxu0
      %v1220 = vadd.f32 0.0, %v1219
      %v1221 = vpop.f32.mrb[0].mxu0
      %1222 = vmatprep.mubr.f32.mxu0 0.0
      %1223 = vmatmul.mubr.f32.gmra.mrb[0].mxu0 %v832
      %v1224 = vpop.f32.mrb[0].mxu0
      %v1225 = vadd.f32 0.0, %v1224
      %v1226 = vpop.f32.mrb[0].mxu0
      %1227 = vdwg.mxu0
      %v1229 = vsel %vm761, %v621, 0
      %v1232 = vsel %vm761, %v622, 0
      %v1235 = vsel %vm761, %v623, 0
      %v1238 = vsel %vm761, %v624, 0
      %v1241 = vsel %vm761, %v625, 0
      %v1244 = vsel %vm761, %v626, 0
      %v1247 = vsel %vm761, %v627, 0
      %v1250 = vsel %vm761, %v628, 0
      %v1253 = vsel %vm761, %v629, 0
      %v1256 = vsel %vm761, %v630, 0
      %v1259 = vsel %vm761, %v631, 0
      %v1262 = vsel %vm761, %v632, 0
      %v1265 = vsel %vm761, %v633, 0
      %v1268 = vsel %vm761, %v634, 0
      %v1271 = vsel %vm761, %v635, 0
      %v1274 = vsel %vm761, %v636, 0
      %v1277 = vsel %vm761, %v637, 0
      %v1280 = vsel %vm761, %v638, 0
      %v1283 = vsel %vm761, %v639, 0
      %v1286 = vsel %vm761, %v640, 0
      %v1289 = vsel %vm761, %v641, 0
      %v1292 = vsel %vm761, %v642, 0
      %v1295 = vsel %vm761, %v643, 0
      %v1298 = vsel %vm761, %v644, 0
      %1300 = vmatprep.subr.mxu0 %v604
      %1301 = vmatpush1.msra.mxu0 %v603
      %1302 = vmatprep.subr.mxu0 %v607
      %1303 = vmatpush1.msra.mxu0 %v606
      %1304 = vmatprep.subr.mxu0 %v610
      %1305 = vmatpush1.msra.mxu0 %v609
      %1306 = vmatprep.subr.mxu0 %v613
      %1307 = vmatpush1.msra.mxu0 %v612
      %1308 = vmatprep.subr.mxu0 %v616
      %1309 = vmatpush1.msra.mxu0 %v615
      %1310 = vmatprep.subr.mxu0 %v619
      %1311 = vmatpush1.msra.mxu0 %v618
      %1312 = vmatprep.subr.mxu0 0.0
      %1313 = vmatpush1.msra.mxu0 0.0
      %1314 = vmatprep.subr.mxu0 0.0
      %1315 = vmatpush1.msra.mxu0 0.0
      %1316 = vmatprep.subr.mxu0 0.0
      %1317 = vmatpush1.msra.mxu0 0.0
      %1318 = vmatprep.subr.mxu0 0.0
      %1319 = vmatpush1.msra.mxu0 0.0
      %1320 = vmatprep.subr.mxu0 0.0
      %1321 = vmatpush1.msra.mxu0 0.0
      %1322 = vmatprep.subr.mxu0 0.0
      %1323 = vmatpush1.msra.mxu0 0.0
      %1324 = vmatprep.subr.mxu0 0.0
      %1325 = vmatpush1.msra.mxu0 0.0
      %1326 = vmatprep.subr.mxu0 0.0
      %1327 = vmatpush1.msra.mxu0 0.0
      %1328 = vmatprep.subr.mxu0 0.0
      %1329 = vmatpush1.msra.mxu0 0.0
      %1330 = vmatprep.subr.mxu0 0.0
      %1331 = vmatpush1.msra.mxu0 0.0
      %1332 = vmatprep.subr.mxu0 0.0
      %1333 = vmatpush1.msra.mxu0 0.0
      %1334 = vmatprep.subr.mxu0 0.0
      %1335 = vmatpush1.msra.mxu0 0.0
      %1336 = vmatprep.subr.mxu0 0.0
      %1337 = vmatpush1.msra.mxu0 0.0
      %1338 = vmatprep.subr.mxu0 0.0
      %1339 = vmatpush1.msra.mxu0 0.0
      %1340 = vmatprep.subr.mxu0 0.0
      %1341 = vmatpush1.msra.mxu0 0.0
      %1342 = vmatprep.subr.mxu0 0.0
      %1343 = vmatpush1.msra.mxu0 0.0
      %1344 = vmatprep.subr.mxu0 0.0
      %1345 = vmatpush1.msra.mxu0 0.0
      %1346 = vmatprep.subr.mxu0 0.0
      %1347 = vmatpush1.msra.mxu0 0.0
      %1348 = vmatprep.subr.mxu0 0.0
      %1349 = vmatpush1.msra.mxu0 0.0
      %1350 = vmatprep.subr.mxu0 0.0
      %1351 = vmatpush1.msra.mxu0 0.0
      %1352 = vmatprep.subr.mxu0 0.0
      %1353 = vmatpush1.msra.mxu0 0.0
      %1354 = vmatprep.subr.mxu0 0.0
      %1355 = vmatpush1.msra.mxu0 0.0
      %1356 = vmatprep.subr.mxu0 0.0
      %1357 = vmatpush1.msra.mxu0 0.0
      %1358 = vmatprep.subr.mxu0 0.0
      %1359 = vmatpush1.msra.mxu0 0.0
      %1360 = vmatprep.subr.mxu0 0.0
      %1361 = vmatpush1.msra.mxu0 0.0
      %1362 = vmatprep.subr.mxu0 0.0
      %1363 = vmatpush1.msra.mxu0 0.0
      %1364 = vmatprep.mubr.f32.mxu0 0.0
      %1365 = vmatmul.mubr.f32.gmra.mrb[0].mxu0 %v1229
      %v1366 = vpop.f32.mrb[0].mxu0
      %v1367 = vadd.f32 %v901, %v1366
      %v1368 = vpop.f32.mrb[0].mxu0
      %v1369 = vadd.f32 %v903, %v1368
      %1370 = vmatprep.mubr.f32.mxu0 0.0
      %1371 = vmatmul.mubr.f32.gmra.mrb[0].mxu0 %v1232
      %v1372 = vpop.f32.mrb[0].mxu0
      %v1373 = vadd.f32 %v907, %v1372
      %v1374 = vpop.f32.mrb[0].mxu0
      %v1375 = vadd.f32 %v909, %v1374
      %1376 = vmatprep.mubr.f32.mxu0 0.0
      %1377 = vmatmul.mubr.f32.gmra.mrb[0].mxu0 %v1235
      %v1378 = vpop.f32.mrb[0].mxu0
      %v1379 = vadd.f32 %v913, %v1378
      %v1380 = vpop.f32.mrb[0].mxu0
      %v1381 = vadd.f32 %v915, %v1380
      %1382 = vmatprep.mubr.f32.mxu0 0.0
      %1383 = vmatmul.mubr.f32.gmra.mrb[0].mxu0 %v1238
      %v1384 = vpop.f32.mrb[0].mxu0
      %v1385 = vadd.f32 %v919, %v1384
      %v1386 = vpop.f32.mrb[0].mxu0
      %v1387 = vadd.f32 %v921, %v1386
      %1388 = vmatprep.mubr.f32.mxu0 0.0
      %1389 = vmatmul.mubr.f32.gmra.mrb[0].mxu0 %v1241
      %v1390 = vpop.f32.mrb[0].mxu0
      %v1391 = vadd.f32 %v925, %v1390
      %v1392 = vpop.f32.mrb[0].mxu0
      %v1393 = vadd.f32 %v927, %v1392
      %1394 = vmatprep.mubr.f32.mxu0 0.0
      %1395 = vmatmul.mubr.f32.gmra.mrb[0].mxu0 %v1244
      %v1396 = vpop.f32.mrb[0].mxu0
      %v1397 = vadd.f32 %v931, %v1396
      %v1398 = vpop.f32.mrb[0].mxu0
      %v1399 = vadd.f32 %v933, %v1398
      %1400 = vmatprep.mubr.f32.mxu0 0.0
      %1401 = vmatmul.mubr.f32.gmra.mrb[0].mxu0 %v1247
      %v1402 = vpop.f32.mrb[0].mxu0
      %v1403 = vadd.f32 %v937, %v1402
      %v1404 = vpop.f32.mrb[0].mxu0
      %v1405 = vadd.f32 %v939, %v1404
      %1406 = vmatprep.mubr.f32.mxu0 0.0
      %1407 = vmatmul.mubr.f32.gmra.mrb[0].mxu0 %v1250
      %v1408 = vpop.f32.mrb[0].mxu0
      %v1409 = vadd.f32 %v943, %v1408
      %v1410 = vpop.f32.mrb[0].mxu0
      %v1411 = vadd.f32 %v945, %v1410
      %1412 = vmatprep.mubr.f32.mxu0 0.0
      %1413 = vmatmul.mubr.f32.gmra.mrb[0].mxu0 %v1253
      %v1414 = vpop.f32.mrb[0].mxu0
      %v1415 = vadd.f32 %v949, %v1414
      %v1416 = vpop.f32.mrb[0].mxu0
      %v1417 = vadd.f32 %v951, %v1416
      %1418 = vmatprep.mubr.f32.mxu0 0.0
      %1419 = vmatmul.mubr.f32.gmra.mrb[0].mxu0 %v1256
      %v1420 = vpop.f32.mrb[0].mxu0
      %v1421 = vadd.f32 %v955, %v1420
      %v1422 = vpop.f32.mrb[0].mxu0
      %v1423 = vadd.f32 %v957, %v1422
      %1424 = vmatprep.mubr.f32.mxu0 0.0
      %1425 = vmatmul.mubr.f32.gmra.mrb[0].mxu0 %v1259
      %v1426 = vpop.f32.mrb[0].mxu0
      %v1427 = vadd.f32 %v961, %v1426
      %v1428 = vpop.f32.mrb[0].mxu0
      %v1429 = vadd.f32 %v963, %v1428
      %1430 = vmatprep.mubr.f32.mxu0 0.0
      %1431 = vmatmul.mubr.f32.gmra.mrb[0].mxu0 %v1262
      %v1432 = vpop.f32.mrb[0].mxu0
      %v1433 = vadd.f32 %v967, %v1432
      %v1434 = vpop.f32.mrb[0].mxu0
      %v1435 = vadd.f32 %v969, %v1434
      %1436 = vmatprep.mubr.f32.mxu0 0.0
      %1437 = vmatmul.mubr.f32.gmra.mrb[0].mxu0 %v1265
      %v1438 = vpop.f32.mrb[0].mxu0
      %v1439 = vadd.f32 %v973, %v1438
      %v1440 = vpop.f32.mrb[0].mxu0
      %v1441 = vadd.f32 %v975, %v1440
      %1442 = vmatprep.mubr.f32.mxu0 0.0
      %1443 = vmatmul.mubr.f32.gmra.mrb[0].mxu0 %v1268
      %v1444 = vpop.f32.mrb[0].mxu0
      %v1445 = vadd.f32 %v979, %v1444
      %v1446 = vpop.f32.mrb[0].mxu0
      %v1447 = vadd.f32 %v981, %v1446
      %1448 = vmatprep.mubr.f32.mxu0 0.0
      %1449 = vmatmul.mubr.f32.gmra.mrb[0].mxu0 %v1271
      %v1450 = vpop.f32.mrb[0].mxu0
      %v1451 = vadd.f32 %v985, %v1450
      %v1452 = vpop.f32.mrb[0].mxu0
      %v1453 = vadd.f32 %v987, %v1452
      %1454 = vmatprep.mubr.f32.mxu0 0.0
      %1455 = vmatmul.mubr.f32.gmra.mrb[0].mxu0 %v1274
      %v1456 = vpop.f32.mrb[0].mxu0
      %v1457 = vadd.f32 %v991, %v1456
      %v1458 = vpop.f32.mrb[0].mxu0
      %v1459 = vadd.f32 %v993, %v1458
      %1460 = vmatprep.mubr.f32.mxu0 0.0
      %1461 = vmatmul.mubr.f32.gmra.mrb[0].mxu0 %v1277
      %v1462 = vpop.f32.mrb[0].mxu0
      %v1463 = vadd.f32 %v997, %v1462
      %v1464 = vpop.f32.mrb[0].mxu0
      %v1465 = vadd.f32 %v999, %v1464
      %1466 = vmatprep.mubr.f32.mxu0 0.0
      %1467 = vmatmul.mubr.f32.gmra.mrb[0].mxu0 %v1280
      %v1468 = vpop.f32.mrb[0].mxu0
      %v1469 = vadd.f32 %v1003, %v1468
      %v1470 = vpop.f32.mrb[0].mxu0
      %v1471 = vadd.f32 %v1005, %v1470
      %1472 = vmatprep.mubr.f32.mxu0 0.0
      %1473 = vmatmul.mubr.f32.gmra.mrb[0].mxu0 %v1283
      %v1474 = vpop.f32.mrb[0].mxu0
      %v1475 = vadd.f32 %v1009, %v1474
      %v1476 = vpop.f32.mrb[0].mxu0
      %v1477 = vadd.f32 %v1011, %v1476
      %1478 = vmatprep.mubr.f32.mxu0 0.0
      %1479 = vmatmul.mubr.f32.gmra.mrb[0].mxu0 %v1286
      %v1480 = vpop.f32.mrb[0].mxu0
      %v1481 = vadd.f32 %v1015, %v1480
      %v1482 = vpop.f32.mrb[0].mxu0
      %v1483 = vadd.f32 %v1017, %v1482
      %1484 = vmatprep.mubr.f32.mxu0 0.0
      %1485 = vmatmul.mubr.f32.gmra.mrb[0].mxu0 %v1289
      %v1486 = vpop.f32.mrb[0].mxu0
      %v1487 = vadd.f32 %v1021, %v1486
      %v1488 = vpop.f32.mrb[0].mxu0
      %v1489 = vadd.f32 %v1023, %v1488
      %1490 = vmatprep.mubr.f32.mxu0 0.0
      %1491 = vmatmul.mubr.f32.gmra.mrb[0].mxu0 %v1292
      %v1492 = vpop.f32.mrb[0].mxu0
      %v1493 = vadd.f32 %v1027, %v1492
      %v1494 = vpop.f32.mrb[0].mxu0
      %v1495 = vadd.f32 %v1029, %v1494
      %1496 = vmatprep.mubr.f32.mxu0 0.0
      %1497 = vmatmul.mubr.f32.gmra.mrb[0].mxu0 %v1295
      %v1498 = vpop.f32.mrb[0].mxu0
      %v1499 = vadd.f32 %v1033, %v1498
      %v1500 = vpop.f32.mrb[0].mxu0
      %v1501 = vadd.f32 %v1035, %v1500
      %1502 = vmatprep.mubr.f32.mxu0 0.0
      %1503 = vmatmul.mubr.f32.gmra.mrb[0].mxu0 %v1298
      %v1504 = vpop.f32.mrb[0].mxu0
      %v1505 = vadd.f32 %v1039, %v1504
      %v1506 = vpop.f32.mrb[0].mxu0
      %v1507 = vadd.f32 %v1041, %v1506
      %1508 = vdwg.mxu0
      %1509 = vmatprep.subr.mxu0 0.0
      %1510 = vmatpush1.msra.mxu0 %v605
      %1511 = vmatprep.subr.mxu0 0.0
      %1512 = vmatpush1.msra.mxu0 %v608
      %1513 = vmatprep.subr.mxu0 0.0
      %1514 = vmatpush1.msra.mxu0 %v611
      %1515 = vmatprep.subr.mxu0 0.0
      %1516 = vmatpush1.msra.mxu0 %v614
      %1517 = vmatprep.subr.mxu0 0.0
      %1518 = vmatpush1.msra.mxu0 %v617
      %1519 = vmatprep.subr.mxu0 0.0
      %1520 = vmatpush1.msra.mxu0 %v620
      %1521 = vmatprep.subr.mxu0 0.0
      %1522 = vmatpush1.msra.mxu0 0.0
      %1523 = vmatprep.subr.mxu0 0.0
      %1524 = vmatpush1.msra.mxu0 0.0
      %1525 = vmatprep.subr.mxu0 0.0
      %1526 = vmatpush1.msra.mxu0 0.0
      %1527 = vmatprep.subr.mxu0 0.0
      %1528 = vmatpush1.msra.mxu0 0.0
      %1529 = vmatprep.subr.mxu0 0.0
      %1530 = vmatpush1.msra.mxu0 0.0
      %1531 = vmatprep.subr.mxu0 0.0
      %1532 = vmatpush1.msra.mxu0 0.0
      %1533 = vmatprep.subr.mxu0 0.0
      %1534 = vmatpush1.msra.mxu0 0.0
      %1535 = vmatprep.subr.mxu0 0.0
      %1536 = vmatpush1.msra.mxu0 0.0
      %1537 = vmatprep.subr.mxu0 0.0
      %1538 = vmatpush1.msra.mxu0 0.0
      %1539 = vmatprep.subr.mxu0 0.0
      %1540 = vmatpush1.msra.mxu0 0.0
      %1541 = vmatprep.subr.mxu0 0.0
      %1542 = vmatpush1.msra.mxu0 0.0
      %1543 = vmatprep.subr.mxu0 0.0
      %1544 = vmatpush1.msra.mxu0 0.0
      %1545 = vmatprep.subr.mxu0 0.0
      %1546 = vmatpush1.msra.mxu0 0.0
      %1547 = vmatprep.subr.mxu0 0.0
      %1548 = vmatpush1.msra.mxu0 0.0
      %1549 = vmatprep.subr.mxu0 0.0
      %1550 = vmatpush1.msra.mxu0 0.0
      %1551 = vmatprep.subr.mxu0 0.0
      %1552 = vmatpush1.msra.mxu0 0.0
      %1553 = vmatprep.subr.mxu0 0.0
      %1554 = vmatpush1.msra.mxu0 0.0
      %1555 = vmatprep.subr.mxu0 0.0
      %1556 = vmatpush1.msra.mxu0 0.0
      %1557 = vmatprep.subr.mxu0 0.0
      %1558 = vmatpush1.msra.mxu0 0.0
      %1559 = vmatprep.subr.mxu0 0.0
      %1560 = vmatpush1.msra.mxu0 0.0
      %1561 = vmatprep.subr.mxu0 0.0
      %1562 = vmatpush1.msra.mxu0 0.0
      %1563 = vmatprep.subr.mxu0 0.0
      %1564 = vmatpush1.msra.mxu0 0.0
      %1565 = vmatprep.subr.mxu0 0.0
      %1566 = vmatpush1.msra.mxu0 0.0
      %1567 = vmatprep.subr.mxu0 0.0
      %1568 = vmatpush1.msra.mxu0 0.0
      %1569 = vmatprep.subr.mxu0 0.0
      %1570 = vmatpush1.msra.mxu0 0.0
      %1571 = vmatprep.subr.mxu0 0.0
      %1572 = vmatpush1.msra.mxu0 0.0
      %1573 = vmatprep.mubr.f32.mxu0 0.0
      %1574 = vmatmul.mubr.f32.gmra.mrb[0].mxu0 %v1229
      %v1575 = vpop.f32.mrb[0].mxu0
      %v1576 = vadd.f32 %v1110, %v1575
      %v1577 = vpop.f32.mrb[0].mxu0
      %1578 = vmatprep.mubr.f32.mxu0 0.0
      %1579 = vmatmul.mubr.f32.gmra.mrb[0].mxu0 %v1232
      %v1580 = vpop.f32.mrb[0].mxu0
      %v1581 = vadd.f32 %v1115, %v1580
      %v1582 = vpop.f32.mrb[0].mxu0
      %1583 = vmatprep.mubr.f32.mxu0 0.0
      %1584 = vmatmul.mubr.f32.gmra.mrb[0].mxu0 %v1235
      %v1585 = vpop.f32.mrb[0].mxu0
      %v1586 = vadd.f32 %v1120, %v1585
      %v1587 = vpop.f32.mrb[0].mxu0
      %1588 = vmatprep.mubr.f32.mxu0 0.0
      %1589 = vmatmul.mubr.f32.gmra.mrb[0].mxu0 %v1238
      %v1590 = vpop.f32.mrb[0].mxu0
      %v1591 = vadd.f32 %v1125, %v1590
      %v1592 = vpop.f32.mrb[0].mxu0
      %1593 = vmatprep.mubr.f32.mxu0 0.0
      %1594 = vmatmul.mubr.f32.gmra.mrb[0].mxu0 %v1241
      %v1595 = vpop.f32.mrb[0].mxu0
      %v1596 = vadd.f32 %v1130, %v1595
      %v1597 = vpop.f32.mrb[0].mxu0
      %1598 = vmatprep.mubr.f32.mxu0 0.0
      %1599 = vmatmul.mubr.f32.gmra.mrb[0].mxu0 %v1244
      %v1600 = vpop.f32.mrb[0].mxu0
      %v1601 = vadd.f32 %v1135, %v1600
      %v1602 = vpop.f32.mrb[0].mxu0
      %1603 = vmatprep.mubr.f32.mxu0 0.0
      %1604 = vmatmul.mubr.f32.gmra.mrb[0].mxu0 %v1247
      %v1605 = vpop.f32.mrb[0].mxu0
      %v1606 = vadd.f32 %v1140, %v1605
      %v1607 = vpop.f32.mrb[0].mxu0
      %1608 = vmatprep.mubr.f32.mxu0 0.0
      %1609 = vmatmul.mubr.f32.gmra.mrb[0].mxu0 %v1250
      %v1610 = vpop.f32.mrb[0].mxu0
      %v1611 = vadd.f32 %v1145, %v1610
      %v1612 = vpop.f32.mrb[0].mxu0
      %1613 = vmatprep.mubr.f32.mxu0 0.0
      %1614 = vmatmul.mubr.f32.gmra.mrb[0].mxu0 %v1253
      %v1615 = vpop.f32.mrb[0].mxu0
      %v1616 = vadd.f32 %v1150, %v1615
      %v1617 = vpop.f32.mrb[0].mxu0
      %1618 = vmatprep.mubr.f32.mxu0 0.0
      %1619 = vmatmul.mubr.f32.gmra.mrb[0].mxu0 %v1256
      %v1620 = vpop.f32.mrb[0].mxu0
      %v1621 = vadd.f32 %v1155, %v1620
      %v1622 = vpop.f32.mrb[0].mxu0
      %1623 = vmatprep.mubr.f32.mxu0 0.0
      %1624 = vmatmul.mubr.f32.gmra.mrb[0].mxu0 %v1259
      %v1625 = vpop.f32.mrb[0].mxu0
      %v1626 = vadd.f32 %v1160, %v1625
      %v1627 = vpop.f32.mrb[0].mxu0
      %1628 = vmatprep.mubr.f32.mxu0 0.0
      %1629 = vmatmul.mubr.f32.gmra.mrb[0].mxu0 %v1262
      %v1630 = vpop.f32.mrb[0].mxu0
      %v1631 = vadd.f32 %v1165, %v1630
      %v1632 = vpop.f32.mrb[0].mxu0
      %1633 = vmatprep.mubr.f32.mxu0 0.0
      %1634 = vmatmul.mubr.f32.gmra.mrb[0].mxu0 %v1265
      %v1635 = vpop.f32.mrb[0].mxu0
      %v1636 = vadd.f32 %v1170, %v1635
      %v1637 = vpop.f32.mrb[0].mxu0
      %1638 = vmatprep.mubr.f32.mxu0 0.0
      %1639 = vmatmul.mubr.f32.gmra.mrb[0].mxu0 %v1268
      %v1640 = vpop.f32.mrb[0].mxu0
      %v1641 = vadd.f32 %v1175, %v1640
      %v1642 = vpop.f32.mrb[0].mxu0
      %1643 = vmatprep.mubr.f32.mxu0 0.0
      %1644 = vmatmul.mubr.f32.gmra.mrb[0].mxu0 %v1271
      %v1645 = vpop.f32.mrb[0].mxu0
      %v1646 = vadd.f32 %v1180, %v1645
      %v1647 = vpop.f32.mrb[0].mxu0
      %1648 = vmatprep.mubr.f32.mxu0 0.0
      %1649 = vmatmul.mubr.f32.gmra.mrb[0].mxu0 %v1274
      %v1650 = vpop.f32.mrb[0].mxu0
      %v1651 = vadd.f32 %v1185, %v1650
      %v1652 = vpop.f32.mrb[0].mxu0
      %1653 = vmatprep.mubr.f32.mxu0 0.0
      %1654 = vmatmul.mubr.f32.gmra.mrb[0].mxu0 %v1277
      %v1655 = vpop.f32.mrb[0].mxu0
      %v1656 = vadd.f32 %v1190, %v1655
      %v1657 = vpop.f32.mrb[0].mxu0
      %1658 = vmatprep.mubr.f32.mxu0 0.0
      %1659 = vmatmul.mubr.f32.gmra.mrb[0].mxu0 %v1280
      %v1660 = vpop.f32.mrb[0].mxu0
      %v1661 = vadd.f32 %v1195, %v1660
      %v1662 = vpop.f32.mrb[0].mxu0
      %1663 = vmatprep.mubr.f32.mxu0 0.0
      %1664 = vmatmul.mubr.f32.gmra.mrb[0].mxu0 %v1283
      %v1665 = vpop.f32.mrb[0].mxu0
      %v1666 = vadd.f32 %v1200, %v1665
      %v1667 = vpop.f32.mrb[0].mxu0
      %1668 = vmatprep.mubr.f32.mxu0 0.0
      %1669 = vmatmul.mubr.f32.gmra.mrb[0].mxu0 %v1286
      %v1670 = vpop.f32.mrb[0].mxu0
      %v1671 = vadd.f32 %v1205, %v1670
      %v1672 = vpop.f32.mrb[0].mxu0
      %1673 = vmatprep.mubr.f32.mxu0 0.0
      %1674 = vmatmul.mubr.f32.gmra.mrb[0].mxu0 %v1289
      %v1675 = vpop.f32.mrb[0].mxu0
      %v1676 = vadd.f32 %v1210, %v1675
      %v1677 = vpop.f32.mrb[0].mxu0
      %1678 = vmatprep.mubr.f32.mxu0 0.0
      %1679 = vmatmul.mubr.f32.gmra.mrb[0].mxu0 %v1292
      %v1680 = vpop.f32.mrb[0].mxu0
      %v1681 = vadd.f32 %v1215, %v1680
      %v1682 = vpop.f32.mrb[0].mxu0
      %1683 = vmatprep.mubr.f32.mxu0 0.0
      %1684 = vmatmul.mubr.f32.gmra.mrb[0].mxu0 %v1295
      %v1685 = vpop.f32.mrb[0].mxu0
      %v1686 = vadd.f32 %v1220, %v1685
      %v1687 = vpop.f32.mrb[0].mxu0
      %1688 = vmatprep.mubr.f32.mxu0 0.0
      %1689 = vmatmul.mubr.f32.gmra.mrb[0].mxu0 %v1298
      %v1690 = vpop.f32.mrb[0].mxu0
      %v1691 = vadd.f32 %v1225, %v1690
      %v1692 = vpop.f32.mrb[0].mxu0
      %1693 = vdwg.mxu0
      %v1694 = vld [vmem:[%s3] sm:$0xff]
      %v1695 = vld [vmem:[%s3 + $0x8] sm:$0xff]
      %v1696 = vld [vmem:[%s3 + $0x10] sm:$0xff]
      %v1697 = vld [vmem:[%s3 + $0x18] sm:$0xff]
      %v1698 = vld [vmem:[%s3 + $0x20] sm:$0xff]
      %v1699 = vld [vmem:[%s3 + $0x28] sm:$0xff]
      %v1700 = vld [vmem:[%s3 + $0x30] sm:$0xff]
      %v1701 = vld [vmem:[%s3 + $0x38] sm:$0xff]
      %v1702 = vld [vmem:[%s3 + $0x40] sm:$0xff]
      %v1703 = vld [vmem:[%s3 + $0x48] sm:$0xff]
      %v1704 = vld [vmem:[%s3 + $0x50] sm:$0xff]
      %v1705 = vld [vmem:[%s3 + $0x58] sm:$0xff]
      %v1706 = vld [vmem:[%s3 + $0x60] sm:$0xff]
      %v1707 = vld [vmem:[%s3 + $0x68] sm:$0xff]
      %v1708 = vld [vmem:[%s3 + $0x70] sm:$0xff]
      %v1709 = vld [vmem:[%s3 + $0x78] sm:$0xff]
      %v1710 = vld [vmem:[%s3 + $0x80] sm:$0xff]
      %v1711 = vld [vmem:[%s3 + $0x88] sm:$0xff]
      %v1712 = vld [vmem:[%s3 + $0x90] sm:$0xff]
      %v1713 = vld [vmem:[%s3 + $0x98] sm:$0xff]
      %v1714 = vld [vmem:[%s3 + $0xa0] sm:$0xff]
      %v1715 = vld [vmem:[%s3 + $0xa8] sm:$0xff]
      %v1716 = vld [vmem:[%s3 + $0xb0] sm:$0xff]
      %v1717 = vld [vmem:[%s3 + $0xb8] sm:$0xff]
      %1719 = vset.pattern.permute.xlu0 0
      %1720 = vperm.xlu0 %1719, %v1694
      %v1721 = vpop.permute.xlu0 %1720
      %1724 = vset.pattern.permute.xlu0 0
      %1725 = vperm.xlu0 %1724, %v1695
      %v1726 = vpop.permute.xlu0 %1725
      %1729 = vset.pattern.permute.xlu0 0
      %1730 = vperm.xlu0 %1729, %v1696
      %v1731 = vpop.permute.xlu0 %1730
      %1734 = vset.pattern.permute.xlu0 0
      %1735 = vperm.xlu0 %1734, %v1697
      %v1736 = vpop.permute.xlu0 %1735
      %1739 = vset.pattern.permute.xlu0 0
      %1740 = vperm.xlu0 %1739, %v1698
      %v1741 = vpop.permute.xlu0 %1740
      %1744 = vset.pattern.permute.xlu0 0
      %1745 = vperm.xlu0 %1744, %v1699
      %v1746 = vpop.permute.xlu0 %1745
      %1749 = vset.pattern.permute.xlu0 0
      %1750 = vperm.xlu0 %1749, %v1700
      %v1751 = vpop.permute.xlu0 %1750
      %1754 = vset.pattern.permute.xlu0 0
      %1755 = vperm.xlu0 %1754, %v1701
      %v1756 = vpop.permute.xlu0 %1755
      %1759 = vset.pattern.permute.xlu0 0
      %1760 = vperm.xlu0 %1759, %v1702
      %v1761 = vpop.permute.xlu0 %1760
      %1764 = vset.pattern.permute.xlu0 0
      %1765 = vperm.xlu0 %1764, %v1703
      %v1766 = vpop.permute.xlu0 %1765
      %1769 = vset.pattern.permute.xlu0 0
      %1770 = vperm.xlu0 %1769, %v1704
      %v1771 = vpop.permute.xlu0 %1770
      %1774 = vset.pattern.permute.xlu0 0
      %1775 = vperm.xlu0 %1774, %v1705
      %v1776 = vpop.permute.xlu0 %1775
      %1779 = vset.pattern.permute.xlu0 0
      %1780 = vperm.xlu0 %1779, %v1706
      %v1781 = vpop.permute.xlu0 %1780
      %1784 = vset.pattern.permute.xlu0 0
      %1785 = vperm.xlu0 %1784, %v1707
      %v1786 = vpop.permute.xlu0 %1785
      %1789 = vset.pattern.permute.xlu0 0
      %1790 = vperm.xlu0 %1789, %v1708
      %v1791 = vpop.permute.xlu0 %1790
      %1794 = vset.pattern.permute.xlu0 0
      %1795 = vperm.xlu0 %1794, %v1709
      %v1796 = vpop.permute.xlu0 %1795
      %1799 = vset.pattern.permute.xlu0 0
      %1800 = vperm.xlu0 %1799, %v1710
      %v1801 = vpop.permute.xlu0 %1800
      %1804 = vset.pattern.permute.xlu0 0
      %1805 = vperm.xlu0 %1804, %v1711
      %v1806 = vpop.permute.xlu0 %1805
      %1809 = vset.pattern.permute.xlu0 0
      %1810 = vperm.xlu0 %1809, %v1712
      %v1811 = vpop.permute.xlu0 %1810
      %1814 = vset.pattern.permute.xlu0 0
      %1815 = vperm.xlu0 %1814, %v1713
      %v1816 = vpop.permute.xlu0 %1815
      %1819 = vset.pattern.permute.xlu0 0
      %1820 = vperm.xlu0 %1819, %v1714
      %v1821 = vpop.permute.xlu0 %1820
      %1824 = vset.pattern.permute.xlu0 0
      %1825 = vperm.xlu0 %1824, %v1715
      %v1826 = vpop.permute.xlu0 %1825
      %1829 = vset.pattern.permute.xlu0 0
      %1830 = vperm.xlu0 %1829, %v1716
      %v1831 = vpop.permute.xlu0 %1830
      %1834 = vset.pattern.permute.xlu0 0
      %1835 = vperm.xlu0 %1834, %v1717
      %v1836 = vpop.permute.xlu0 %1835
      %v1838 = vadd.f32 %v1367, %v1721
      %v1839 = vadd.f32 %v1369, %v1721
      %v1840 = vadd.f32 %v1576, %v1721
      %v1841 = vadd.f32 %v1373, %v1726
      %v1842 = vadd.f32 %v1375, %v1726
      %v1843 = vadd.f32 %v1581, %v1726
      %v1844 = vadd.f32 %v1379, %v1731
      %v1845 = vadd.f32 %v1381, %v1731
      %v1846 = vadd.f32 %v1586, %v1731
      %v1847 = vadd.f32 %v1385, %v1736
      %v1848 = vadd.f32 %v1387, %v1736
      %v1849 = vadd.f32 %v1591, %v1736
      %v1850 = vadd.f32 %v1391, %v1741
      %v1851 = vadd.f32 %v1393, %v1741
      %v1852 = vadd.f32 %v1596, %v1741
      %v1853 = vadd.f32 %v1397, %v1746
      %v1854 = vadd.f32 %v1399, %v1746
      %v1855 = vadd.f32 %v1601, %v1746
      %v1856 = vadd.f32 %v1403, %v1751
      %v1857 = vadd.f32 %v1405, %v1751
      %v1858 = vadd.f32 %v1606, %v1751
      %v1859 = vadd.f32 %v1409, %v1756
      %v1860 = vadd.f32 %v1411, %v1756
      %v1861 = vadd.f32 %v1611, %v1756
      %v1862 = vadd.f32 %v1415, %v1761
      %v1863 = vadd.f32 %v1417, %v1761
      %v1864 = vadd.f32 %v1616, %v1761
      %v1865 = vadd.f32 %v1421, %v1766
      %v1866 = vadd.f32 %v1423, %v1766
      %v1867 = vadd.f32 %v1621, %v1766
      %v1868 = vadd.f32 %v1427, %v1771
      %v1869 = vadd.f32 %v1429, %v1771
      %v1870 = vadd.f32 %v1626, %v1771
      %v1871 = vadd.f32 %v1433, %v1776
      %v1872 = vadd.f32 %v1435, %v1776
      %v1873 = vadd.f32 %v1631, %v1776
      %v1874 = vadd.f32 %v1439, %v1781
      %v1875 = vadd.f32 %v1441, %v1781
      %v1876 = vadd.f32 %v1636, %v1781
      %v1877 = vadd.f32 %v1445, %v1786
      %v1878 = vadd.f32 %v1447, %v1786
      %v1879 = vadd.f32 %v1641, %v1786
      %v1880 = vadd.f32 %v1451, %v1791
      %v1881 = vadd.f32 %v1453, %v1791
      %v1882 = vadd.f32 %v1646, %v1791
      %v1883 = vadd.f32 %v1457, %v1796
      %v1884 = vadd.f32 %v1459, %v1796
      %v1885 = vadd.f32 %v1651, %v1796
      %v1886 = vadd.f32 %v1463, %v1801
      %v1887 = vadd.f32 %v1465, %v1801
      %v1888 = vadd.f32 %v1656, %v1801
      %v1889 = vadd.f32 %v1469, %v1806
      %v1890 = vadd.f32 %v1471, %v1806
      %v1891 = vadd.f32 %v1661, %v1806
      %v1892 = vadd.f32 %v1475, %v1811
      %v1893 = vadd.f32 %v1477, %v1811
      %v1894 = vadd.f32 %v1666, %v1811
      %v1895 = vadd.f32 %v1481, %v1816
      %v1896 = vadd.f32 %v1483, %v1816
      %v1897 = vadd.f32 %v1671, %v1816
      %v1898 = vadd.f32 %v1487, %v1821
      %v1899 = vadd.f32 %v1489, %v1821
      %v1900 = vadd.f32 %v1676, %v1821
      %v1901 = vadd.f32 %v1493, %v1826
      %v1902 = vadd.f32 %v1495, %v1826
      %v1903 = vadd.f32 %v1681, %v1826
      %v1904 = vadd.f32 %v1499, %v1831
      %v1905 = vadd.f32 %v1501, %v1831
      %v1906 = vadd.f32 %v1686, %v1831
      %v1907 = vadd.f32 %v1505, %v1836
      %v1908 = vadd.f32 %v1507, %v1836
      %v1909 = vadd.f32 %v1691, %v1836
      %v1910 = vmax.f32 %v1838, 0.0
      %v1911 = vmax.f32 %v1839, 0.0
      %v1912 = vmax.f32 %v1840, 0.0
      %v1913 = vmax.f32 %v1841, 0.0
      %v1914 = vmax.f32 %v1842, 0.0
      %v1915 = vmax.f32 %v1843, 0.0
      %v1916 = vmax.f32 %v1844, 0.0
      %v1917 = vmax.f32 %v1845, 0.0
      %v1918 = vmax.f32 %v1846, 0.0
      %v1919 = vmax.f32 %v1847, 0.0
      %v1920 = vmax.f32 %v1848, 0.0
      %v1921 = vmax.f32 %v1849, 0.0
      %v1922 = vmax.f32 %v1850, 0.0
      %v1923 = vmax.f32 %v1851, 0.0
      %v1924 = vmax.f32 %v1852, 0.0
      %v1925 = vmax.f32 %v1853, 0.0
      %v1926 = vmax.f32 %v1854, 0.0
      %v1927 = vmax.f32 %v1855, 0.0
      %v1928 = vmax.f32 %v1856, 0.0
      %v1929 = vmax.f32 %v1857, 0.0
      %v1930 = vmax.f32 %v1858, 0.0
      %v1931 = vmax.f32 %v1859, 0.0
      %v1932 = vmax.f32 %v1860, 0.0
      %v1933 = vmax.f32 %v1861, 0.0
      %v1934 = vmax.f32 %v1862, 0.0
      %v1935 = vmax.f32 %v1863, 0.0
      %v1936 = vmax.f32 %v1864, 0.0
      %v1937 = vmax.f32 %v1865, 0.0
      %v1938 = vmax.f32 %v1866, 0.0
      %v1939 = vmax.f32 %v1867, 0.0
      %v1940 = vmax.f32 %v1868, 0.0
      %v1941 = vmax.f32 %v1869, 0.0
      %v1942 = vmax.f32 %v1870, 0.0
      %v1943 = vmax.f32 %v1871, 0.0
      %v1944 = vmax.f32 %v1872, 0.0
      %v1945 = vmax.f32 %v1873, 0.0
      %v1946 = vmax.f32 %v1874, 0.0
      %v1947 = vmax.f32 %v1875, 0.0
      %v1948 = vmax.f32 %v1876, 0.0
      %v1949 = vmax.f32 %v1877, 0.0
      %v1950 = vmax.f32 %v1878, 0.0
      %v1951 = vmax.f32 %v1879, 0.0
      %v1952 = vmax.f32 %v1880, 0.0
      %v1953 = vmax.f32 %v1881, 0.0
      %v1954 = vmax.f32 %v1882, 0.0
      %v1955 = vmax.f32 %v1883, 0.0
      %v1956 = vmax.f32 %v1884, 0.0
      %v1957 = vmax.f32 %v1885, 0.0
      %v1958 = vmax.f32 %v1886, 0.0
      %v1959 = vmax.f32 %v1887, 0.0
      %v1960 = vmax.f32 %v1888, 0.0
      %v1961 = vmax.f32 %v1889, 0.0
      %v1962 = vmax.f32 %v1890, 0.0
      %v1963 = vmax.f32 %v1891, 0.0
      %v1964 = vmax.f32 %v1892, 0.0
      %v1965 = vmax.f32 %v1893, 0.0
      %v1966 = vmax.f32 %v1894, 0.0
      %v1967 = vmax.f32 %v1895, 0.0
      %v1968 = vmax.f32 %v1896, 0.0
      %v1969 = vmax.f32 %v1897, 0.0
      %v1970 = vmax.f32 %v1898, 0.0
      %v1971 = vmax.f32 %v1899, 0.0
      %v1972 = vmax.f32 %v1900, 0.0
      %v1973 = vmax.f32 %v1901, 0.0
      %v1974 = vmax.f32 %v1902, 0.0
      %v1975 = vmax.f32 %v1903, 0.0
      %v1976 = vmax.f32 %v1904, 0.0
      %v1977 = vmax.f32 %v1905, 0.0
      %v1978 = vmax.f32 %v1906, 0.0
      %v1979 = vmax.f32 %v1907, 0.0
      %v1980 = vmax.f32 %v1908, 0.0
      %v1981 = vmax.f32 %v1909, 0.0
      %v1982 = vld [vmem:[%s4] sm:$0xff]
      %v1983 = vld [vmem:[%s4 + $0x8] sm:$0xff]
      %v1984 = vld [vmem:[%s4 + $0x10] sm:$0xff]
      %v1985 = vld [vmem:[%s4 + $0x18] sm:$0xff]
      %v1986 = vld [vmem:[%s4 + $0x20] sm:$0xff]
      %v1987 = vld [vmem:[%s4 + $0x28] sm:$0xff]
      %v1988 = vld [vmem:[%s4 + $0x30] sm:$0xff]
      %v1989 = vld [vmem:[%s4 + $0x38] sm:$0xff]
      %v1990 = vld [vmem:[%s4 + $0x40] sm:$0xff]
      %v1991 = vld [vmem:[%s4 + $0x48] sm:$0xff]
      %v1992 = vld [vmem:[%s4 + $0x50] sm:$0xff]
      %v1993 = vld [vmem:[%s4 + $0x58] sm:$0xff]
      %v1994 = vld [vmem:[%s4 + $0x60] sm:$0xff]
      %v1995 = vld [vmem:[%s4 + $0x68] sm:$0xff]
      %v1996 = vld [vmem:[%s4 + $0x70] sm:$0xff]
      %v1997 = vld [vmem:[%s4 + $0x78] sm:$0xff]
      %v1998 = vld [vmem:[%s4 + $0x80] sm:$0xff]
      %v1999 = vld [vmem:[%s4 + $0x88] sm:$0xff]
      %v2000 = vld [vmem:[%s4 + $0x90] sm:$0xff]
      %v2001 = vld [vmem:[%s4 + $0x98] sm:$0xff]
      %v2002 = vld [vmem:[%s4 + $0xa0] sm:$0xff]
      %v2003 = vld [vmem:[%s4 + $0xa8] sm:$0xff]
      %v2004 = vld [vmem:[%s4 + $0xb0] sm:$0xff]
      %v2005 = vld [vmem:[%s4 + $0xb8] sm:$0xff]
      %v2006 = vld [vmem:[%s5] sm:$0xff]
      %v2007 = vld [vmem:[%s5 + $0x8] sm:$0xff]
      %v2008 = vld [vmem:[%s5 + $0x10] sm:$0xff]
      %v2009 = vld [vmem:[%s5 + $0x18] sm:$0xff]
      %v2010 = vld [vmem:[%s5 + $0x20] sm:$0xff]
      %v2011 = vld [vmem:[%s5 + $0x28] sm:$0xff]
      %v2012 = vld [vmem:[%s5 + $0x30] sm:$0xff]
      %v2013 = vld [vmem:[%s5 + $0x38] sm:$0xff]
      %v2014 = vld [vmem:[%s5 + $0x40] sm:$0xff]
      %v2015 = vld [vmem:[%s5 + $0x48] sm:$0xff]
      %v2016 = vld [vmem:[%s5 + $0x50] sm:$0xff]
      %v2017 = vld [vmem:[%s5 + $0x58] sm:$0xff]
      %v2018 = vld [vmem:[%s5 + $0x60] sm:$0xff]
      %v2019 = vld [vmem:[%s5 + $0x68] sm:$0xff]
      %v2020 = vld [vmem:[%s5 + $0x70] sm:$0xff]
      %v2021 = vld [vmem:[%s5 + $0x78] sm:$0xff]
      %v2022 = vld [vmem:[%s5 + $0x80] sm:$0xff]
      %v2023 = vld [vmem:[%s5 + $0x88] sm:$0xff]
      %v2024 = vld [vmem:[%s5 + $0x90] sm:$0xff]
      %v2025 = vld [vmem:[%s5 + $0x98] sm:$0xff]
      %v2026 = vld [vmem:[%s5 + $0xa0] sm:$0xff]
      %v2027 = vld [vmem:[%s5 + $0xa8] sm:$0xff]
      %v2028 = vld [vmem:[%s5 + $0xb0] sm:$0xff]
      %v2029 = vld [vmem:[%s5 + $0xb8] sm:$0xff]
      %2102 = vrot.lane.b32.xlu0 %v1910, 127
      %v2103 = vpop.permute.xlu0 %2102
      %2104 = vrot.lane.b32.xlu0 %v1911, 127
      %v2105 = vpop.permute.xlu0 %2104
      %2106 = vrot.lane.b32.xlu0 %v1912, 127
      %v2107 = vpop.permute.xlu0 %2106
      %2108 = vrot.lane.b32.xlu0 %v1913, 127
      %v2109 = vpop.permute.xlu0 %2108
      %2110 = vrot.lane.b32.xlu0 %v1914, 127
      %v2111 = vpop.permute.xlu0 %2110
      %2112 = vrot.lane.b32.xlu0 %v1915, 127
      %v2113 = vpop.permute.xlu0 %2112
      %2114 = vrot.lane.b32.xlu0 %v1916, 127
      %v2115 = vpop.permute.xlu0 %2114
      %2116 = vrot.lane.b32.xlu0 %v1917, 127
      %v2117 = vpop.permute.xlu0 %2116
      %2118 = vrot.lane.b32.xlu0 %v1918, 127
      %v2119 = vpop.permute.xlu0 %2118
      %2120 = vrot.lane.b32.xlu0 %v1919, 127
      %v2121 = vpop.permute.xlu0 %2120
      %2122 = vrot.lane.b32.xlu0 %v1920, 127
      %v2123 = vpop.permute.xlu0 %2122
      %2124 = vrot.lane.b32.xlu0 %v1921, 127
      %v2125 = vpop.permute.xlu0 %2124
      %2126 = vrot.lane.b32.xlu0 %v1922, 127
      %v2127 = vpop.permute.xlu0 %2126
      %2128 = vrot.lane.b32.xlu0 %v1923, 127
      %v2129 = vpop.permute.xlu0 %2128
      %2130 = vrot.lane.b32.xlu0 %v1924, 127
      %v2131 = vpop.permute.xlu0 %2130
      %2132 = vrot.lane.b32.xlu0 %v1925, 127
      %v2133 = vpop.permute.xlu0 %2132
      %2134 = vrot.lane.b32.xlu0 %v1926, 127
      %v2135 = vpop.permute.xlu0 %2134
      %2136 = vrot.lane.b32.xlu0 %v1927, 127
      %v2137 = vpop.permute.xlu0 %2136
      %2138 = vrot.lane.b32.xlu0 %v1928, 127
      %v2139 = vpop.permute.xlu0 %2138
      %2140 = vrot.lane.b32.xlu0 %v1929, 127
      %v2141 = vpop.permute.xlu0 %2140
      %2142 = vrot.lane.b32.xlu0 %v1930, 127
      %v2143 = vpop.permute.xlu0 %2142
      %2144 = vrot.lane.b32.xlu0 %v1931, 127
      %v2145 = vpop.permute.xlu0 %2144
      %2146 = vrot.lane.b32.xlu0 %v1932, 127
      %v2147 = vpop.permute.xlu0 %2146
      %2148 = vrot.lane.b32.xlu0 %v1933, 127
      %v2149 = vpop.permute.xlu0 %2148
      %2150 = vrot.lane.b32.xlu0 %v1934, 127
      %v2151 = vpop.permute.xlu0 %2150
      %2152 = vrot.lane.b32.xlu0 %v1935, 127
      %v2153 = vpop.permute.xlu0 %2152
      %2154 = vrot.lane.b32.xlu0 %v1936, 127
      %v2155 = vpop.permute.xlu0 %2154
      %2156 = vrot.lane.b32.xlu0 %v1937, 127
      %v2157 = vpop.permute.xlu0 %2156
      %2158 = vrot.lane.b32.xlu0 %v1938, 127
      %v2159 = vpop.permute.xlu0 %2158
      %2160 = vrot.lane.b32.xlu0 %v1939, 127
      %v2161 = vpop.permute.xlu0 %2160
      %2162 = vrot.lane.b32.xlu0 %v1940, 127
      %v2163 = vpop.permute.xlu0 %2162
      %2164 = vrot.lane.b32.xlu0 %v1941, 127
      %v2165 = vpop.permute.xlu0 %2164
      %2166 = vrot.lane.b32.xlu0 %v1942, 127
      %v2167 = vpop.permute.xlu0 %2166
      %2168 = vrot.lane.b32.xlu0 %v1943, 127
      %v2169 = vpop.permute.xlu0 %2168
      %2170 = vrot.lane.b32.xlu0 %v1944, 127
      %v2171 = vpop.permute.xlu0 %2170
      %2172 = vrot.lane.b32.xlu0 %v1945, 127
      %v2173 = vpop.permute.xlu0 %2172
      %2174 = vrot.lane.b32.xlu0 %v1946, 127
      %v2175 = vpop.permute.xlu0 %2174
      %2176 = vrot.lane.b32.xlu0 %v1947, 127
      %v2177 = vpop.permute.xlu0 %2176
      %2178 = vrot.lane.b32.xlu0 %v1948, 127
      %v2179 = vpop.permute.xlu0 %2178
      %2180 = vrot.lane.b32.xlu0 %v1949, 127
      %v2181 = vpop.permute.xlu0 %2180
      %2182 = vrot.lane.b32.xlu0 %v1950, 127
      %v2183 = vpop.permute.xlu0 %2182
      %2184 = vrot.lane.b32.xlu0 %v1951, 127
      %v2185 = vpop.permute.xlu0 %2184
      %2186 = vrot.lane.b32.xlu0 %v1952, 127
      %v2187 = vpop.permute.xlu0 %2186
      %2188 = vrot.lane.b32.xlu0 %v1953, 127
      %v2189 = vpop.permute.xlu0 %2188
      %2190 = vrot.lane.b32.xlu0 %v1954, 127
      %v2191 = vpop.permute.xlu0 %2190
      %2192 = vrot.lane.b32.xlu0 %v1955, 127
      %v2193 = vpop.permute.xlu0 %2192
      %2194 = vrot.lane.b32.xlu0 %v1956, 127
      %v2195 = vpop.permute.xlu0 %2194
      %2196 = vrot.lane.b32.xlu0 %v1957, 127
      %v2197 = vpop.permute.xlu0 %2196
      %2198 = vrot.lane.b32.xlu0 %v1958, 127
      %v2199 = vpop.permute.xlu0 %2198
      %2200 = vrot.lane.b32.xlu0 %v1959, 127
      %v2201 = vpop.permute.xlu0 %2200
      %2202 = vrot.lane.b32.xlu0 %v1960, 127
      %v2203 = vpop.permute.xlu0 %2202
      %2204 = vrot.lane.b32.xlu0 %v1961, 127
      %v2205 = vpop.permute.xlu0 %2204
      %2206 = vrot.lane.b32.xlu0 %v1962, 127
      %v2207 = vpop.permute.xlu0 %2206
      %2208 = vrot.lane.b32.xlu0 %v1963, 127
      %v2209 = vpop.permute.xlu0 %2208
      %2210 = vrot.lane.b32.xlu0 %v1964, 127
      %v2211 = vpop.permute.xlu0 %2210
      %2212 = vrot.lane.b32.xlu0 %v1965, 127
      %v2213 = vpop.permute.xlu0 %2212
      %2214 = vrot.lane.b32.xlu0 %v1966, 127
      %v2215 = vpop.permute.xlu0 %2214
      %2216 = vrot.lane.b32.xlu0 %v1967, 127
      %v2217 = vpop.permute.xlu0 %2216
      %2218 = vrot.lane.b32.xlu0 %v1968, 127
      %v2219 = vpop.permute.xlu0 %2218
      %2220 = vrot.lane.b32.xlu0 %v1969, 127
      %v2221 = vpop.permute.xlu0 %2220
      %2222 = vrot.lane.b32.xlu0 %v1970, 127
      %v2223 = vpop.permute.xlu0 %2222
      %2224 = vrot.lane.b32.xlu0 %v1971, 127
      %v2225 = vpop.permute.xlu0 %2224
      %2226 = vrot.lane.b32.xlu0 %v1972, 127
      %v2227 = vpop.permute.xlu0 %2226
      %2228 = vrot.lane.b32.xlu0 %v1973, 127
      %v2229 = vpop.permute.xlu0 %2228
      %2230 = vrot.lane.b32.xlu0 %v1974, 127
      %v2231 = vpop.permute.xlu0 %2230
      %2232 = vrot.lane.b32.xlu0 %v1975, 127
      %v2233 = vpop.permute.xlu0 %2232
      %2234 = vrot.lane.b32.xlu0 %v1976, 127
      %v2235 = vpop.permute.xlu0 %2234
      %2236 = vrot.lane.b32.xlu0 %v1977, 127
      %v2237 = vpop.permute.xlu0 %2236
      %2238 = vrot.lane.b32.xlu0 %v1978, 127
      %v2239 = vpop.permute.xlu0 %2238
      %2240 = vrot.lane.b32.xlu0 %v1979, 127
      %v2241 = vpop.permute.xlu0 %2240
      %2242 = vrot.lane.b32.xlu0 %v1980, 127
      %v2243 = vpop.permute.xlu0 %2242
      %2244 = vrot.lane.b32.xlu0 %v1981, 127
      %v2245 = vpop.permute.xlu0 %2244
      %v2246 = vsel %vm723, %v2103, %v2105
      %v2247 = vsel %vm723, %v2105, %v2107
      %v2248 = vsel %vm723, %v2109, %v2111
      %v2249 = vsel %vm723, %v2111, %v2113
      %v2250 = vsel %vm723, %v2115, %v2117
      %v2251 = vsel %vm723, %v2117, %v2119
      %v2252 = vsel %vm723, %v2121, %v2123
      %v2253 = vsel %vm723, %v2123, %v2125
      %v2254 = vsel %vm723, %v2127, %v2129
      %v2255 = vsel %vm723, %v2129, %v2131
      %v2256 = vsel %vm723, %v2133, %v2135
      %v2257 = vsel %vm723, %v2135, %v2137
      %v2258 = vsel %vm723, %v2139, %v2141
      %v2259 = vsel %vm723, %v2141, %v2143
      %v2260 = vsel %vm723, %v2145, %v2147
      %v2261 = vsel %vm723, %v2147, %v2149
      %v2262 = vsel %vm723, %v2151, %v2153
      %v2263 = vsel %vm723, %v2153, %v2155
      %v2264 = vsel %vm723, %v2157, %v2159
      %v2265 = vsel %vm723, %v2159, %v2161
      %v2266 = vsel %vm723, %v2163, %v2165
      %v2267 = vsel %vm723, %v2165, %v2167
      %v2268 = vsel %vm723, %v2169, %v2171
      %v2269 = vsel %vm723, %v2171, %v2173
      %v2270 = vsel %vm723, %v2175, %v2177
      %v2271 = vsel %vm723, %v2177, %v2179
      %v2272 = vsel %vm723, %v2181, %v2183
      %v2273 = vsel %vm723, %v2183, %v2185
      %v2274 = vsel %vm723, %v2187, %v2189
      %v2275 = vsel %vm723, %v2189, %v2191
      %v2276 = vsel %vm723, %v2193, %v2195
      %v2277 = vsel %vm723, %v2195, %v2197
      %v2278 = vsel %vm723, %v2199, %v2201
      %v2279 = vsel %vm723, %v2201, %v2203
      %v2280 = vsel %vm723, %v2205, %v2207
      %v2281 = vsel %vm723, %v2207, %v2209
      %v2282 = vsel %vm723, %v2211, %v2213
      %v2283 = vsel %vm723, %v2213, %v2215
      %v2284 = vsel %vm723, %v2217, %v2219
      %v2285 = vsel %vm723, %v2219, %v2221
      %v2286 = vsel %vm723, %v2223, %v2225
      %v2287 = vsel %vm723, %v2225, %v2227
      %v2288 = vsel %vm723, %v2229, %v2231
      %v2289 = vsel %vm723, %v2231, %v2233
      %v2290 = vsel %vm723, %v2235, %v2237
      %v2291 = vsel %vm723, %v2237, %v2239
      %v2292 = vsel %vm723, %v2241, %v2243
      %v2293 = vsel %vm723, %v2243, %v2245
      %v2366 = vsel %vm754, %v2107, 0.0
      %v2367 = vsel %vm754, %v2113, 0.0
      %v2368 = vsel %vm754, %v2119, 0.0
      %v2369 = vsel %vm754, %v2125, 0.0
      %v2370 = vsel %vm754, %v2131, 0.0
      %v2371 = vsel %vm754, %v2137, 0.0
      %v2372 = vsel %vm754, %v2143, 0.0
      %v2373 = vsel %vm754, %v2149, 0.0
      %v2374 = vsel %vm754, %v2155, 0.0
      %v2375 = vsel %vm754, %v2161, 0.0
      %v2376 = vsel %vm754, %v2167, 0.0
      %v2377 = vsel %vm754, %v2173, 0.0
      %v2378 = vsel %vm754, %v2179, 0.0
      %v2379 = vsel %vm754, %v2185, 0.0
      %v2380 = vsel %vm754, %v2191, 0.0
      %v2381 = vsel %vm754, %v2197, 0.0
      %v2382 = vsel %vm754, %v2203, 0.0
      %v2383 = vsel %vm754, %v2209, 0.0
      %v2384 = vsel %vm754, %v2215, 0.0
      %v2385 = vsel %vm754, %v2221, 0.0
      %v2386 = vsel %vm754, %v2227, 0.0
      %v2387 = vsel %vm754, %v2233, 0.0
      %v2388 = vsel %vm754, %v2239, 0.0
      %v2389 = vsel %vm754, %v2245, 0.0
      %vm2390 = vcmask 523264
      %v2392 = vsel %vm2390, %v2007, 0
      %v2395 = vsel %vm2390, %v2009, 0
      %v2398 = vsel %vm2390, %v2011, 0
      %v2401 = vsel %vm2390, %v2013, 0
      %v2404 = vsel %vm2390, %v2015, 0
      %v2407 = vsel %vm2390, %v2017, 0
      %v2410 = vsel %vm2390, %v2019, 0
      %v2413 = vsel %vm2390, %v2021, 0
      %v2416 = vsel %vm2390, %v2023, 0
      %v2419 = vsel %vm2390, %v2025, 0
      %v2422 = vsel %vm2390, %v2027, 0
      %v2425 = vsel %vm2390, %v2029, 0
      %2427 = vmatprep.subr.mxu0 %v2247
      %2428 = vmatpush1.msra.mxu0 %v2246
      %2429 = vmatprep.subr.mxu0 %v2249
      %2430 = vmatpush1.msra.mxu0 %v2248
      %2431 = vmatprep.subr.mxu0 %v2251
      %2432 = vmatpush1.msra.mxu0 %v2250
      %2433 = vmatprep.subr.mxu0 %v2253
      %2434 = vmatpush1.msra.mxu0 %v2252
      %2435 = vmatprep.subr.mxu0 %v2255
      %2436 = vmatpush1.msra.mxu0 %v2254
      %2437 = vmatprep.subr.mxu0 %v2257
      %2438 = vmatpush1.msra.mxu0 %v2256
      %2439 = vmatprep.subr.mxu0 %v2259
      %2440 = vmatpush1.msra.mxu0 %v2258
      %2441 = vmatprep.subr.mxu0 %v2261
      %2442 = vmatpush1.msra.mxu0 %v2260
      %2443 = vmatprep.subr.mxu0 %v2263
      %2444 = vmatpush1.msra.mxu0 %v2262
      %2445 = vmatprep.subr.mxu0 %v2265
      %2446 = vmatpush1.msra.mxu0 %v2264
      %2447 = vmatprep.subr.mxu0 %v2267
      %2448 = vmatpush1.msra.mxu0 %v2266
      %2449 = vmatprep.subr.mxu0 %v2269
      %2450 = vmatpush1.msra.mxu0 %v2268
      %2451 = vmatprep.subr.mxu0 %v2271
      %2452 = vmatpush1.msra.mxu0 %v2270
      %2453 = vmatprep.subr.mxu0 %v2273
      %2454 = vmatpush1.msra.mxu0 %v2272
      %2455 = vmatprep.subr.mxu0 %v2275
      %2456 = vmatpush1.msra.mxu0 %v2274
      %2457 = vmatprep.subr.mxu0 %v2277
      %2458 = vmatpush1.msra.mxu0 %v2276
      %2459 = vmatprep.subr.mxu0 %v2279
      %2460 = vmatpush1.msra.mxu0 %v2278
      %2461 = vmatprep.subr.mxu0 %v2281
      %2462 = vmatpush1.msra.mxu0 %v2280
      %2463 = vmatprep.subr.mxu0 %v2283
      %2464 = vmatpush1.msra.mxu0 %v2282
      %2465 = vmatprep.subr.mxu0 %v2285
      %2466 = vmatpush1.msra.mxu0 %v2284
      %2467 = vmatprep.subr.mxu0 %v2287
      %2468 = vmatpush1.msra.mxu0 %v2286
      %2469 = vmatprep.subr.mxu0 %v2289
      %2470 = vmatpush1.msra.mxu0 %v2288
      %2471 = vmatprep.subr.mxu0 %v2291
      %2472 = vmatpush1.msra.mxu0 %v2290
      %2473 = vmatprep.subr.mxu0 %v2293
      %2474 = vmatpush1.msra.mxu0 %v2292
      %2475 = vmatprep.subr.mxu0 0.0
      %2476 = vmatpush1.msra.mxu0 0.0
      %2477 = vmatprep.subr.mxu0 0.0
      %2478 = vmatpush1.msra.mxu0 0.0
      %2479 = vmatprep.subr.mxu0 0.0
      %2480 = vmatpush1.msra.mxu0 0.0
      %2481 = vmatprep.subr.mxu0 0.0
      %2482 = vmatpush1.msra.mxu0 0.0
      %2483 = vmatprep.subr.mxu0 0.0
      %2484 = vmatpush1.msra.mxu0 0.0
      %2485 = vmatprep.subr.mxu0 0.0
      %2486 = vmatpush1.msra.mxu0 0.0
      %2487 = vmatprep.subr.mxu0 0.0
      %2488 = vmatpush1.msra.mxu0 0.0
      %2489 = vmatprep.subr.mxu0 0.0
      %2490 = vmatpush1.msra.mxu0 0.0
      %2491 = vmatprep.mubr.f32.mxu0 %v2392
      %2492 = vmatmul.mubr.f32.gmra.mrb[0].mxu0 %v2006
      %v2493 = vpop.f32.mrb[0].mxu0
      %v2494 = vadd.f32 0.0, %v2493
      %v2495 = vpop.f32.mrb[0].mxu0
      %v2496 = vadd.f32 0.0, %v2495
      %2497 = vmatprep.mubr.f32.mxu0 %v2395
      %2498 = vmatmul.mubr.f32.gmra.mrb[0].mxu0 %v2008
      %v2499 = vpop.f32.mrb[0].mxu0
      %v2500 = vadd.f32 0.0, %v2499
      %v2501 = vpop.f32.mrb[0].mxu0
      %v2502 = vadd.f32 0.0, %v2501
      %2503 = vmatprep.mubr.f32.mxu0 %v2398
      %2504 = vmatmul.mubr.f32.gmra.mrb[0].mxu0 %v2010
      %v2505 = vpop.f32.mrb[0].mxu0
      %v2506 = vadd.f32 0.0, %v2505
      %v2507 = vpop.f32.mrb[0].mxu0
      %v2508 = vadd.f32 0.0, %v2507
      %2509 = vmatprep.mubr.f32.mxu0 %v2401
      %2510 = vmatmul.mubr.f32.gmra.mrb[0].mxu0 %v2012
      %v2511 = vpop.f32.mrb[0].mxu0
      %v2512 = vadd.f32 0.0, %v2511
      %v2513 = vpop.f32.mrb[0].mxu0
      %v2514 = vadd.f32 0.0, %v2513
      %2515 = vmatprep.mubr.f32.mxu0 %v2404
      %2516 = vmatmul.mubr.f32.gmra.mrb[0].mxu0 %v2014
      %v2517 = vpop.f32.mrb[0].mxu0
      %v2518 = vadd.f32 0.0, %v2517
      %v2519 = vpop.f32.mrb[0].mxu0
      %v2520 = vadd.f32 0.0, %v2519
      %2521 = vmatprep.mubr.f32.mxu0 %v2407
      %2522 = vmatmul.mubr.f32.gmra.mrb[0].mxu0 %v2016
      %v2523 = vpop.f32.mrb[0].mxu0
      %v2524 = vadd.f32 0.0, %v2523
      %v2525 = vpop.f32.mrb[0].mxu0
      %v2526 = vadd.f32 0.0, %v2525
      %2527 = vmatprep.mubr.f32.mxu0 %v2410
      %2528 = vmatmul.mubr.f32.gmra.mrb[0].mxu0 %v2018
      %v2529 = vpop.f32.mrb[0].mxu0
      %v2530 = vadd.f32 0.0, %v2529
      %v2531 = vpop.f32.mrb[0].mxu0
      %v2532 = vadd.f32 0.0, %v2531
      %2533 = vmatprep.mubr.f32.mxu0 %v2413
      %2534 = vmatmul.mubr.f32.gmra.mrb[0].mxu0 %v2020
      %v2535 = vpop.f32.mrb[0].mxu0
      %v2536 = vadd.f32 0.0, %v2535
      %v2537 = vpop.f32.mrb[0].mxu0
      %v2538 = vadd.f32 0.0, %v2537
      %2539 = vmatprep.mubr.f32.mxu0 %v2416
      %2540 = vmatmul.mubr.f32.gmra.mrb[0].mxu0 %v2022
      %v2541 = vpop.f32.mrb[0].mxu0
      %v2542 = vadd.f32 0.0, %v2541
      %v2543 = vpop.f32.mrb[0].mxu0
      %v2544 = vadd.f32 0.0, %v2543
      %2545 = vmatprep.mubr.f32.mxu0 %v2419
      %2546 = vmatmul.mubr.f32.gmra.mrb[0].mxu0 %v2024
      %v2547 = vpop.f32.mrb[0].mxu0
      %v2548 = vadd.f32 0.0, %v2547
      %v2549 = vpop.f32.mrb[0].mxu0
      %v2550 = vadd.f32 0.0, %v2549
      %2551 = vmatprep.mubr.f32.mxu0 %v2422
      %2552 = vmatmul.mubr.f32.gmra.mrb[0].mxu0 %v2026
      %v2553 = vpop.f32.mrb[0].mxu0
      %v2554 = vadd.f32 0.0, %v2553
      %v2555 = vpop.f32.mrb[0].mxu0
      %v2556 = vadd.f32 0.0, %v2555
      %2557 = vmatprep.mubr.f32.mxu0 %v2425
      %2558 = vmatmul.mubr.f32.gmra.mrb[0].mxu0 %v2028
      %v2559 = vpop.f32.mrb[0].mxu0
      %v2560 = vadd.f32 0.0, %v2559
      %v2561 = vpop.f32.mrb[0].mxu0
      %v2562 = vadd.f32 0.0, %v2561
      %2563 = vdwg.mxu0
      %2564 = vmatprep.subr.mxu0 0.0
      %2565 = vmatpush1.msra.mxu0 %v2366
      %2566 = vmatprep.subr.mxu0 0.0
      %2567 = vmatpush1.msra.mxu0 %v2367
      %2568 = vmatprep.subr.mxu0 0.0
      %2569 = vmatpush1.msra.mxu0 %v2368
      %2570 = vmatprep.subr.mxu0 0.0
      %2571 = vmatpush1.msra.mxu0 %v2369
      %2572 = vmatprep.subr.mxu0 0.0
      %2573 = vmatpush1.msra.mxu0 %v2370
      %2574 = vmatprep.subr.mxu0 0.0
      %2575 = vmatpush1.msra.mxu0 %v2371
      %2576 = vmatprep.subr.mxu0 0.0
      %2577 = vmatpush1.msra.mxu0 %v2372
      %2578 = vmatprep.subr.mxu0 0.0
      %2579 = vmatpush1.msra.mxu0 %v2373
      %2580 = vmatprep.subr.mxu0 0.0
      %2581 = vmatpush1.msra.mxu0 %v2374
      %2582 = vmatprep.subr.mxu0 0.0
      %2583 = vmatpush1.msra.mxu0 %v2375
      %2584 = vmatprep.subr.mxu0 0.0
      %2585 = vmatpush1.msra.mxu0 %v2376
      %2586 = vmatprep.subr.mxu0 0.0
      %2587 = vmatpush1.msra.mxu0 %v2377
      %2588 = vmatprep.subr.mxu0 0.0
      %2589 = vmatpush1.msra.mxu0 %v2378
      %2590 = vmatprep.subr.mxu0 0.0
      %2591 = vmatpush1.msra.mxu0 %v2379
      %2592 = vmatprep.subr.mxu0 0.0
      %2593 = vmatpush1.msra.mxu0 %v2380
      %2594 = vmatprep.subr.mxu0 0.0
      %2595 = vmatpush1.msra.mxu0 %v2381
      %2596 = vmatprep.subr.mxu0 0.0
      %2597 = vmatpush1.msra.mxu0 %v2382
      %2598 = vmatprep.subr.mxu0 0.0
      %2599 = vmatpush1.msra.mxu0 %v2383
      %2600 = vmatprep.subr.mxu0 0.0
      %2601 = vmatpush1.msra.mxu0 %v2384
      %2602 = vmatprep.subr.mxu0 0.0
      %2603 = vmatpush1.msra.mxu0 %v2385
      %2604 = vmatprep.subr.mxu0 0.0
      %2605 = vmatpush1.msra.mxu0 %v2386
      %2606 = vmatprep.subr.mxu0 0.0
      %2607 = vmatpush1.msra.mxu0 %v2387
      %2608 = vmatprep.subr.mxu0 0.0
      %2609 = vmatpush1.msra.mxu0 %v2388
      %2610 = vmatprep.subr.mxu0 0.0
      %2611 = vmatpush1.msra.mxu0 %v2389
      %2612 = vmatprep.subr.mxu0 0.0
      %2613 = vmatpush1.msra.mxu0 0.0
      %2614 = vmatprep.subr.mxu0 0.0
      %2615 = vmatpush1.msra.mxu0 0.0
      %2616 = vmatprep.subr.mxu0 0.0
      %2617 = vmatpush1.msra.mxu0 0.0
      %2618 = vmatprep.subr.mxu0 0.0
      %2619 = vmatpush1.msra.mxu0 0.0
      %2620 = vmatprep.subr.mxu0 0.0
      %2621 = vmatpush1.msra.mxu0 0.0
      %2622 = vmatprep.subr.mxu0 0.0
      %2623 = vmatpush1.msra.mxu0 0.0
      %2624 = vmatprep.subr.mxu0 0.0
      %2625 = vmatpush1.msra.mxu0 0.0
      %2626 = vmatprep.subr.mxu0 0.0
      %2627 = vmatpush1.msra.mxu0 0.0
      %2628 = vmatprep.mubr.f32.mxu0 %v2392
      %2629 = vmatmul.mubr.f32.gmra.mrb[0].mxu0 %v2006
      %v2630 = vpop.f32.mrb[0].mxu0
      %v2631 = vadd.f32 0.0, %v2630
      %v2632 = vpop.f32.mrb[0].mxu0
      %2633 = vmatprep.mubr.f32.mxu0 %v2395
      %2634 = vmatmul.mubr.f32.gmra.mrb[0].mxu0 %v2008
      %v2635 = vpop.f32.mrb[0].mxu0
      %v2636 = vadd.f32 0.0, %v2635
      %v2637 = vpop.f32.mrb[0].mxu0
      %2638 = vmatprep.mubr.f32.mxu0 %v2398
      %2639 = vmatmul.mubr.f32.gmra.mrb[0].mxu0 %v2010
      %v2640 = vpop.f32.mrb[0].mxu0
      %v2641 = vadd.f32 0.0, %v2640
      %v2642 = vpop.f32.mrb[0].mxu0
      %2643 = vmatprep.mubr.f32.mxu0 %v2401
      %2644 = vmatmul.mubr.f32.gmra.mrb[0].mxu0 %v2012
      %v2645 = vpop.f32.mrb[0].mxu0
      %v2646 = vadd.f32 0.0, %v2645
      %v2647 = vpop.f32.mrb[0].mxu0
      %2648 = vmatprep.mubr.f32.mxu0 %v2404
      %2649 = vmatmul.mubr.f32.gmra.mrb[0].mxu0 %v2014
      %v2650 = vpop.f32.mrb[0].mxu0
      %v2651 = vadd.f32 0.0, %v2650
      %v2652 = vpop.f32.mrb[0].mxu0
      %2653 = vmatprep.mubr.f32.mxu0 %v2407
      %2654 = vmatmul.mubr.f32.gmra.mrb[0].mxu0 %v2016
      %v2655 = vpop.f32.mrb[0].mxu0
      %v2656 = vadd.f32 0.0, %v2655
      %v2657 = vpop.f32.mrb[0].mxu0
      %2658 = vmatprep.mubr.f32.mxu0 %v2410
      %2659 = vmatmul.mubr.f32.gmra.mrb[0].mxu0 %v2018
      %v2660 = vpop.f32.mrb[0].mxu0
      %v2661 = vadd.f32 0.0, %v2660
      %v2662 = vpop.f32.mrb[0].mxu0
      %2663 = vmatprep.mubr.f32.mxu0 %v2413
      %2664 = vmatmul.mubr.f32.gmra.mrb[0].mxu0 %v2020
      %v2665 = vpop.f32.mrb[0].mxu0
      %v2666 = vadd.f32 0.0, %v2665
      %v2667 = vpop.f32.mrb[0].mxu0
      %2668 = vmatprep.mubr.f32.mxu0 %v2416
      %2669 = vmatmul.mubr.f32.gmra.mrb[0].mxu0 %v2022
      %v2670 = vpop.f32.mrb[0].mxu0
      %v2671 = vadd.f32 0.0, %v2670
      %v2672 = vpop.f32.mrb[0].mxu0
      %2673 = vmatprep.mubr.f32.mxu0 %v2419
      %2674 = vmatmul.mubr.f32.gmra.mrb[0].mxu0 %v2024
      %v2675 = vpop.f32.mrb[0].mxu0
      %v2676 = vadd.f32 0.0, %v2675
      %v2677 = vpop.f32.mrb[0].mxu0
      %2678 = vmatprep.mubr.f32.mxu0 %v2422
      %2679 = vmatmul.mubr.f32.gmra.mrb[0].mxu0 %v2026
      %v2680 = vpop.f32.mrb[0].mxu0
      %v2681 = vadd.f32 0.0, %v2680
      %v2682 = vpop.f32.mrb[0].mxu0
      %2683 = vmatprep.mubr.f32.mxu0 %v2425
      %2684 = vmatmul.mubr.f32.gmra.mrb[0].mxu0 %v2028
      %v2685 = vpop.f32.mrb[0].mxu0
      %v2686 = vadd.f32 0.0, %v2685
      %v2687 = vpop.f32.mrb[0].mxu0
      %2688 = vdwg.mxu0
      %v2690 = vsel %vm2390, %v1983, 0
      %v2693 = vsel %vm2390, %v1985, 0
      %v2696 = vsel %vm2390, %v1987, 0
      %v2699 = vsel %vm2390, %v1989, 0
      %v2702 = vsel %vm2390, %v1991, 0
      %v2705 = vsel %vm2390, %v1993, 0
      %v2708 = vsel %vm2390, %v1995, 0
      %v2711 = vsel %vm2390, %v1997, 0
      %v2714 = vsel %vm2390, %v1999, 0
      %v2717 = vsel %vm2390, %v2001, 0
      %v2720 = vsel %vm2390, %v2003, 0
      %v2723 = vsel %vm2390, %v2005, 0
      %2725 = vmatprep.subr.mxu0 %v1911
      %2726 = vmatpush1.msra.mxu0 %v1910
      %2727 = vmatprep.subr.mxu0 %v1914
      %2728 = vmatpush1.msra.mxu0 %v1913
      %2729 = vmatprep.subr.mxu0 %v1917
      %2730 = vmatpush1.msra.mxu0 %v1916
      %2731 = vmatprep.subr.mxu0 %v1920
      %2732 = vmatpush1.msra.mxu0 %v1919
      %2733 = vmatprep.subr.mxu0 %v1923
      %2734 = vmatpush1.msra.mxu0 %v1922
      %2735 = vmatprep.subr.mxu0 %v1926
      %2736 = vmatpush1.msra.mxu0 %v1925
      %2737 = vmatprep.subr.mxu0 %v1929
      %2738 = vmatpush1.msra.mxu0 %v1928
      %2739 = vmatprep.subr.mxu0 %v1932
      %2740 = vmatpush1.msra.mxu0 %v1931
      %2741 = vmatprep.subr.mxu0 %v1935
      %2742 = vmatpush1.msra.mxu0 %v1934
      %2743 = vmatprep.subr.mxu0 %v1938
      %2744 = vmatpush1.msra.mxu0 %v1937
      %2745 = vmatprep.subr.mxu0 %v1941
      %2746 = vmatpush1.msra.mxu0 %v1940
      %2747 = vmatprep.subr.mxu0 %v1944
      %2748 = vmatpush1.msra.mxu0 %v1943
      %2749 = vmatprep.subr.mxu0 %v1947
      %2750 = vmatpush1.msra.mxu0 %v1946
      %2751 = vmatprep.subr.mxu0 %v1950
      %2752 = vmatpush1.msra.mxu0 %v1949
      %2753 = vmatprep.subr.mxu0 %v1953
      %2754 = vmatpush1.msra.mxu0 %v1952
      %2755 = vmatprep.subr.mxu0 %v1956
      %2756 = vmatpush1.msra.mxu0 %v1955
      %2757 = vmatprep.subr.mxu0 %v1959
      %2758 = vmatpush1.msra.mxu0 %v1958
      %2759 = vmatprep.subr.mxu0 %v1962
      %2760 = vmatpush1.msra.mxu0 %v1961
      %2761 = vmatprep.subr.mxu0 %v1965
      %2762 = vmatpush1.msra.mxu0 %v1964
      %2763 = vmatprep.subr.mxu0 %v1968
      %2764 = vmatpush1.msra.mxu0 %v1967
      %2765 = vmatprep.subr.mxu0 %v1971
      %2766 = vmatpush1.msra.mxu0 %v1970
      %2767 = vmatprep.subr.mxu0 %v1974
      %2768 = vmatpush1.msra.mxu0 %v1973
      %2769 = vmatprep.subr.mxu0 %v1977
      %2770 = vmatpush1.msra.mxu0 %v1976
      %2771 = vmatprep.subr.mxu0 %v1980
      %2772 = vmatpush1.msra.mxu0 %v1979
      %2773 = vmatprep.subr.mxu0 0.0
      %2774 = vmatpush1.msra.mxu0 0.0
      %2775 = vmatprep.subr.mxu0 0.0
      %2776 = vmatpush1.msra.mxu0 0.0
      %2777 = vmatprep.subr.mxu0 0.0
      %2778 = vmatpush1.msra.mxu0 0.0
      %2779 = vmatprep.subr.mxu0 0.0
      %2780 = vmatpush1.msra.mxu0 0.0
      %2781 = vmatprep.subr.mxu0 0.0
      %2782 = vmatpush1.msra.mxu0 0.0
      %2783 = vmatprep.subr.mxu0 0.0
      %2784 = vmatpush1.msra.mxu0 0.0
      %2785 = vmatprep.subr.mxu0 0.0
      %2786 = vmatpush1.msra.mxu0 0.0
      %2787 = vmatprep.subr.mxu0 0.0
      %2788 = vmatpush1.msra.mxu0 0.0
      %2789 = vmatprep.mubr.f32.mxu0 %v2690
      %2790 = vmatmul.mubr.f32.gmra.mrb[0].mxu0 %v1982
      %v2791 = vpop.f32.mrb[0].mxu0
      %v2792 = vadd.f32 %v2494, %v2791
      %v2793 = vpop.f32.mrb[0].mxu0
      %v2794 = vadd.f32 %v2496, %v2793
      %2795 = vmatprep.mubr.f32.mxu0 %v2693
      %2796 = vmatmul.mubr.f32.gmra.mrb[0].mxu0 %v1984
      %v2797 = vpop.f32.mrb[0].mxu0
      %v2798 = vadd.f32 %v2500, %v2797
      %v2799 = vpop.f32.mrb[0].mxu0
      %v2800 = vadd.f32 %v2502, %v2799
      %2801 = vmatprep.mubr.f32.mxu0 %v2696
      %2802 = vmatmul.mubr.f32.gmra.mrb[0].mxu0 %v1986
      %v2803 = vpop.f32.mrb[0].mxu0
      %v2804 = vadd.f32 %v2506, %v2803
      %v2805 = vpop.f32.mrb[0].mxu0
      %v2806 = vadd.f32 %v2508, %v2805
      %2807 = vmatprep.mubr.f32.mxu0 %v2699
      %2808 = vmatmul.mubr.f32.gmra.mrb[0].mxu0 %v1988
      %v2809 = vpop.f32.mrb[0].mxu0
      %v2810 = vadd.f32 %v2512, %v2809
      %v2811 = vpop.f32.mrb[0].mxu0
      %v2812 = vadd.f32 %v2514, %v2811
      %2813 = vmatprep.mubr.f32.mxu0 %v2702
      %2814 = vmatmul.mubr.f32.gmra.mrb[0].mxu0 %v1990
      %v2815 = vpop.f32.mrb[0].mxu0
      %v2816 = vadd.f32 %v2518, %v2815
      %v2817 = vpop.f32.mrb[0].mxu0
      %v2818 = vadd.f32 %v2520, %v2817
      %2819 = vmatprep.mubr.f32.mxu0 %v2705
      %2820 = vmatmul.mubr.f32.gmra.mrb[0].mxu0 %v1992
      %v2821 = vpop.f32.mrb[0].mxu0
      %v2822 = vadd.f32 %v2524, %v2821
      %v2823 = vpop.f32.mrb[0].mxu0
      %v2824 = vadd.f32 %v2526, %v2823
      %2825 = vmatprep.mubr.f32.mxu0 %v2708
      %2826 = vmatmul.mubr.f32.gmra.mrb[0].mxu0 %v1994
      %v2827 = vpop.f32.mrb[0].mxu0
      %v2828 = vadd.f32 %v2530, %v2827
      %v2829 = vpop.f32.mrb[0].mxu0
      %v2830 = vadd.f32 %v2532, %v2829
      %2831 = vmatprep.mubr.f32.mxu0 %v2711
      %2832 = vmatmul.mubr.f32.gmra.mrb[0].mxu0 %v1996
      %v2833 = vpop.f32.mrb[0].mxu0
      %v2834 = vadd.f32 %v2536, %v2833
      %v2835 = vpop.f32.mrb[0].mxu0
      %v2836 = vadd.f32 %v2538, %v2835
      %2837 = vmatprep.mubr.f32.mxu0 %v2714
      %2838 = vmatmul.mubr.f32.gmra.mrb[0].mxu0 %v1998
      %v2839 = vpop.f32.mrb[0].mxu0
      %v2840 = vadd.f32 %v2542, %v2839
      %v2841 = vpop.f32.mrb[0].mxu0
      %v2842 = vadd.f32 %v2544, %v2841
      %2843 = vmatprep.mubr.f32.mxu0 %v2717
      %2844 = vmatmul.mubr.f32.gmra.mrb[0].mxu0 %v2000
      %v2845 = vpop.f32.mrb[0].mxu0
      %v2846 = vadd.f32 %v2548, %v2845
      %v2847 = vpop.f32.mrb[0].mxu0
      %v2848 = vadd.f32 %v2550, %v2847
      %2849 = vmatprep.mubr.f32.mxu0 %v2720
      %2850 = vmatmul.mubr.f32.gmra.mrb[0].mxu0 %v2002
      %v2851 = vpop.f32.mrb[0].mxu0
      %v2852 = vadd.f32 %v2554, %v2851
      %v2853 = vpop.f32.mrb[0].mxu0
      %v2854 = vadd.f32 %v2556, %v2853
      %2855 = vmatprep.mubr.f32.mxu0 %v2723
      %2856 = vmatmul.mubr.f32.gmra.mrb[0].mxu0 %v2004
      %v2857 = vpop.f32.mrb[0].mxu0
      %v2858 = vadd.f32 %v2560, %v2857
      %v2859 = vpop.f32.mrb[0].mxu0
      %v2860 = vadd.f32 %v2562, %v2859
      %2861 = vdwg.mxu0
      %2862 = vmatprep.subr.mxu0 0.0
      %2863 = vmatpush1.msra.mxu0 %v1912
      %2864 = vmatprep.subr.mxu0 0.0
      %2865 = vmatpush1.msra.mxu0 %v1915
      %2866 = vmatprep.subr.mxu0 0.0
      %2867 = vmatpush1.msra.mxu0 %v1918
      %2868 = vmatprep.subr.mxu0 0.0
      %2869 = vmatpush1.msra.mxu0 %v1921
      %2870 = vmatprep.subr.mxu0 0.0
      %2871 = vmatpush1.msra.mxu0 %v1924
      %2872 = vmatprep.subr.mxu0 0.0
      %2873 = vmatpush1.msra.mxu0 %v1927
      %2874 = vmatprep.subr.mxu0 0.0
      %2875 = vmatpush1.msra.mxu0 %v1930
      %2876 = vmatprep.subr.mxu0 0.0
      %2877 = vmatpush1.msra.mxu0 %v1933
      %2878 = vmatprep.subr.mxu0 0.0
      %2879 = vmatpush1.msra.mxu0 %v1936
      %2880 = vmatprep.subr.mxu0 0.0
      %2881 = vmatpush1.msra.mxu0 %v1939
      %2882 = vmatprep.subr.mxu0 0.0
      %2883 = vmatpush1.msra.mxu0 %v1942
      %2884 = vmatprep.subr.mxu0 0.0
      %2885 = vmatpush1.msra.mxu0 %v1945
      %2886 = vmatprep.subr.mxu0 0.0
      %2887 = vmatpush1.msra.mxu0 %v1948
      %2888 = vmatprep.subr.mxu0 0.0
      %2889 = vmatpush1.msra.mxu0 %v1951
      %2890 = vmatprep.subr.mxu0 0.0
      %2891 = vmatpush1.msra.mxu0 %v1954
      %2892 = vmatprep.subr.mxu0 0.0
      %2893 = vmatpush1.msra.mxu0 %v1957
      %2894 = vmatprep.subr.mxu0 0.0
      %2895 = vmatpush1.msra.mxu0 %v1960
      %2896 = vmatprep.subr.mxu0 0.0
      %2897 = vmatpush1.msra.mxu0 %v1963
      %2898 = vmatprep.subr.mxu0 0.0
      %2899 = vmatpush1.msra.mxu0 %v1966
      %2900 = vmatprep.subr.mxu0 0.0
      %2901 = vmatpush1.msra.mxu0 %v1969
      %2902 = vmatprep.subr.mxu0 0.0
      %2903 = vmatpush1.msra.mxu0 %v1972
      %2904 = vmatprep.subr.mxu0 0.0
      %2905 = vmatpush1.msra.mxu0 %v1975
      %2906 = vmatprep.subr.mxu0 0.0
      %2907 = vmatpush1.msra.mxu0 %v1978
      %2908 = vmatprep.subr.mxu0 0.0
      %2909 = vmatpush1.msra.mxu0 %v1981
      %2910 = vmatprep.subr.mxu0 0.0
      %2911 = vmatpush1.msra.mxu0 0.0
      %2912 = vmatprep.subr.mxu0 0.0
      %2913 = vmatpush1.msra.mxu0 0.0
      %2914 = vmatprep.subr.mxu0 0.0
      %2915 = vmatpush1.msra.mxu0 0.0
      %2916 = vmatprep.subr.mxu0 0.0
      %2917 = vmatpush1.msra.mxu0 0.0
      %2918 = vmatprep.subr.mxu0 0.0
      %2919 = vmatpush1.msra.mxu0 0.0
      %2920 = vmatprep.subr.mxu0 0.0
      %2921 = vmatpush1.msra.mxu0 0.0
      %2922 = vmatprep.subr.mxu0 0.0
      %2923 = vmatpush1.msra.mxu0 0.0
      %2924 = vmatprep.subr.mxu0 0.0
      %2925 = vmatpush1.msra.mxu0 0.0
      %2926 = vmatprep.mubr.f32.mxu0 %v2690
      %2927 = vmatmul.mubr.f32.gmra.mrb[0].mxu0 %v1982
      %v2928 = vpop.f32.mrb[0].mxu0
      %v2929 = vadd.f32 %v2631, %v2928
      %v2930 = vpop.f32.mrb[0].mxu0
      %2931 = vmatprep.mubr.f32.mxu0 %v2693
      %2932 = vmatmul.mubr.f32.gmra.mrb[0].mxu0 %v1984
      %v2933 = vpop.f32.mrb[0].mxu0
      %v2934 = vadd.f32 %v2636, %v2933
      %v2935 = vpop.f32.mrb[0].mxu0
      %2936 = vmatprep.mubr.f32.mxu0 %v2696
      %2937 = vmatmul.mubr.f32.gmra.mrb[0].mxu0 %v1986
      %v2938 = vpop.f32.mrb[0].mxu0
      %v2939 = vadd.f32 %v2641, %v2938
      %v2940 = vpop.f32.mrb[0].mxu0
      %2941 = vmatprep.mubr.f32.mxu0 %v2699
      %2942 = vmatmul.mubr.f32.gmra.mrb[0].mxu0 %v1988
      %v2943 = vpop.f32.mrb[0].mxu0
      %v2944 = vadd.f32 %v2646, %v2943
      %v2945 = vpop.f32.mrb[0].mxu0
      %2946 = vmatprep.mubr.f32.mxu0 %v2702
      %2947 = vmatmul.mubr.f32.gmra.mrb[0].mxu0 %v1990
      %v2948 = vpop.f32.mrb[0].mxu0
      %v2949 = vadd.f32 %v2651, %v2948
      %v2950 = vpop.f32.mrb[0].mxu0
      %2951 = vmatprep.mubr.f32.mxu0 %v2705
      %2952 = vmatmul.mubr.f32.gmra.mrb[0].mxu0 %v1992
      %v2953 = vpop.f32.mrb[0].mxu0
      %v2954 = vadd.f32 %v2656, %v2953
      %v2955 = vpop.f32.mrb[0].mxu0
      %2956 = vmatprep.mubr.f32.mxu0 %v2708
      %2957 = vmatmul.mubr.f32.gmra.mrb[0].mxu0 %v1994
      %v2958 = vpop.f32.mrb[0].mxu0
      %v2959 = vadd.f32 %v2661, %v2958
      %v2960 = vpop.f32.mrb[0].mxu0
      %2961 = vmatprep.mubr.f32.mxu0 %v2711
      %2962 = vmatmul.mubr.f32.gmra.mrb[0].mxu0 %v1996
      %v2963 = vpop.f32.mrb[0].mxu0
      %v2964 = vadd.f32 %v2666, %v2963
      %v2965 = vpop.f32.mrb[0].mxu0
      %2966 = vmatprep.mubr.f32.mxu0 %v2714
      %2967 = vmatmul.mubr.f32.gmra.mrb[0].mxu0 %v1998
      %v2968 = vpop.f32.mrb[0].mxu0
      %v2969 = vadd.f32 %v2671, %v2968
      %v2970 = vpop.f32.mrb[0].mxu0
      %2971 = vmatprep.mubr.f32.mxu0 %v2717
      %2972 = vmatmul.mubr.f32.gmra.mrb[0].mxu0 %v2000
      %v2973 = vpop.f32.mrb[0].mxu0
      %v2974 = vadd.f32 %v2676, %v2973
      %v2975 = vpop.f32.mrb[0].mxu0
      %2976 = vmatprep.mubr.f32.mxu0 %v2720
      %2977 = vmatmul.mubr.f32.gmra.mrb[0].mxu0 %v2002
      %v2978 = vpop.f32.mrb[0].mxu0
      %v2979 = vadd.f32 %v2681, %v2978
      %v2980 = vpop.f32.mrb[0].mxu0
      %2981 = vmatprep.mubr.f32.mxu0 %v2723
      %2982 = vmatmul.mubr.f32.gmra.mrb[0].mxu0 %v2004
      %v2983 = vpop.f32.mrb[0].mxu0
      %v2984 = vadd.f32 %v2686, %v2983
      %v2985 = vpop.f32.mrb[0].mxu0
      %2986 = vdwg.mxu0
      %v2987 = vld [vmem:[%s6] sm:$0xff]
      %v2988 = vld [vmem:[%s6 + $0x8] sm:$0xff]
      %v2989 = vld [vmem:[%s6 + $0x10] sm:$0xff]
      %v2990 = vld [vmem:[%s6 + $0x18] sm:$0xff]
      %v2991 = vld [vmem:[%s6 + $0x20] sm:$0xff]
      %v2992 = vld [vmem:[%s6 + $0x28] sm:$0xff]
      %v2993 = vld [vmem:[%s6 + $0x30] sm:$0xff]
      %v2994 = vld [vmem:[%s6 + $0x38] sm:$0xff]
      %v2995 = vld [vmem:[%s6 + $0x40] sm:$0xff]
      %v2996 = vld [vmem:[%s6 + $0x48] sm:$0xff]
      %v2997 = vld [vmem:[%s6 + $0x50] sm:$0xff]
      %v2998 = vld [vmem:[%s6 + $0x58] sm:$0xff]
      %3000 = vset.pattern.permute.xlu0 0
      %3001 = vperm.xlu0 %3000, %v2987
      %v3002 = vpop.permute.xlu0 %3001
      %3005 = vset.pattern.permute.xlu0 0
      %3006 = vperm.xlu0 %3005, %v2988
      %v3007 = vpop.permute.xlu0 %3006
      %3010 = vset.pattern.permute.xlu0 0
      %3011 = vperm.xlu0 %3010, %v2989
      %v3012 = vpop.permute.xlu0 %3011
      %3015 = vset.pattern.permute.xlu0 0
      %3016 = vperm.xlu0 %3015, %v2990
      %v3017 = vpop.permute.xlu0 %3016
      %3020 = vset.pattern.permute.xlu0 0
      %3021 = vperm.xlu0 %3020, %v2991
      %v3022 = vpop.permute.xlu0 %3021
      %3025 = vset.pattern.permute.xlu0 0
      %3026 = vperm.xlu0 %3025, %v2992
      %v3027 = vpop.permute.xlu0 %3026
      %3030 = vset.pattern.permute.xlu0 0
      %3031 = vperm.xlu0 %3030, %v2993
      %v3032 = vpop.permute.xlu0 %3031
      %3035 = vset.pattern.permute.xlu0 0
      %3036 = vperm.xlu0 %3035, %v2994
      %v3037 = vpop.permute.xlu0 %3036
      %3040 = vset.pattern.permute.xlu0 0
      %3041 = vperm.xlu0 %3040, %v2995
      %v3042 = vpop.permute.xlu0 %3041
      %3045 = vset.pattern.permute.xlu0 0
      %3046 = vperm.xlu0 %3045, %v2996
      %v3047 = vpop.permute.xlu0 %3046
      %3050 = vset.pattern.permute.xlu0 0
      %3051 = vperm.xlu0 %3050, %v2997
      %v3052 = vpop.permute.xlu0 %3051
      %3055 = vset.pattern.permute.xlu0 0
      %3056 = vperm.xlu0 %3055, %v2998
      %v3057 = vpop.permute.xlu0 %3056
      %v3059 = vadd.f32 %v2792, %v3002
      %v3060 = vadd.f32 %v2794, %v3002
      %v3061 = vadd.f32 %v2929, %v3002
      %v3062 = vadd.f32 %v2798, %v3007
      %v3063 = vadd.f32 %v2800, %v3007
      %v3064 = vadd.f32 %v2934, %v3007
      %v3065 = vadd.f32 %v2804, %v3012
      %v3066 = vadd.f32 %v2806, %v3012
      %v3067 = vadd.f32 %v2939, %v3012
      %v3068 = vadd.f32 %v2810, %v3017
      %v3069 = vadd.f32 %v2812, %v3017
      %v3070 = vadd.f32 %v2944, %v3017
      %v3071 = vadd.f32 %v2816, %v3022
      %v3072 = vadd.f32 %v2818, %v3022
      %v3073 = vadd.f32 %v2949, %v3022
      %v3074 = vadd.f32 %v2822, %v3027
      %v3075 = vadd.f32 %v2824, %v3027
      %v3076 = vadd.f32 %v2954, %v3027
      %v3077 = vadd.f32 %v2828, %v3032
      %v3078 = vadd.f32 %v2830, %v3032
      %v3079 = vadd.f32 %v2959, %v3032
      %v3080 = vadd.f32 %v2834, %v3037
      %v3081 = vadd.f32 %v2836, %v3037
      %v3082 = vadd.f32 %v2964, %v3037
      %v3083 = vadd.f32 %v2840, %v3042
      %v3084 = vadd.f32 %v2842, %v3042
      %v3085 = vadd.f32 %v2969, %v3042
      %v3086 = vadd.f32 %v2846, %v3047
      %v3087 = vadd.f32 %v2848, %v3047
      %v3088 = vadd.f32 %v2974, %v3047
      %v3089 = vadd.f32 %v2852, %v3052
      %v3090 = vadd.f32 %v2854, %v3052
      %v3091 = vadd.f32 %v2979, %v3052
      %v3092 = vadd.f32 %v2858, %v3057
      %v3093 = vadd.f32 %v2860, %v3057
      %v3094 = vadd.f32 %v2984, %v3057
      %v3095 = vmax.f32 %v3059, 0.0
      %v3096 = vmax.f32 %v3060, 0.0
      %v3097 = vmax.f32 %v3061, 0.0
      %v3098 = vmax.f32 %v3062, 0.0
      %v3099 = vmax.f32 %v3063, 0.0
      %v3100 = vmax.f32 %v3064, 0.0
      %v3101 = vmax.f32 %v3065, 0.0
      %v3102 = vmax.f32 %v3066, 0.0
      %v3103 = vmax.f32 %v3067, 0.0
      %v3104 = vmax.f32 %v3068, 0.0
      %v3105 = vmax.f32 %v3069, 0.0
      %v3106 = vmax.f32 %v3070, 0.0
      %v3107 = vmax.f32 %v3071, 0.0
      %v3108 = vmax.f32 %v3072, 0.0
      %v3109 = vmax.f32 %v3073, 0.0
      %v3110 = vmax.f32 %v3074, 0.0
      %v3111 = vmax.f32 %v3075, 0.0
      %v3112 = vmax.f32 %v3076, 0.0
      %v3113 = vmax.f32 %v3077, 0.0
      %v3114 = vmax.f32 %v3078, 0.0
      %v3115 = vmax.f32 %v3079, 0.0
      %v3116 = vmax.f32 %v3080, 0.0
      %v3117 = vmax.f32 %v3081, 0.0
      %v3118 = vmax.f32 %v3082, 0.0
      %v3119 = vmax.f32 %v3083, 0.0
      %v3120 = vmax.f32 %v3084, 0.0
      %v3121 = vmax.f32 %v3085, 0.0
      %v3122 = vmax.f32 %v3086, 0.0
      %v3123 = vmax.f32 %v3087, 0.0
      %v3124 = vmax.f32 %v3088, 0.0
      %v3125 = vmax.f32 %v3089, 0.0
      %v3126 = vmax.f32 %v3090, 0.0
      %v3127 = vmax.f32 %v3091, 0.0
      %v3128 = vmax.f32 %v3092, 0.0
      %v3129 = vmax.f32 %v3093, 0.0
      %v3130 = vmax.f32 %v3094, 0.0
      %v3131 = vld [vmem:[%s7] sm:$0xff]
      %v3132 = vld [vmem:[%s7 + $0x8] sm:$0xff]
      %v3133 = vld [vmem:[%s7 + $0x10] sm:$0xff]
      %v3134 = vld [vmem:[%s7 + $0x18] sm:$0xff]
      %v3135 = vld [vmem:[%s7 + $0x20] sm:$0xff]
      %v3136 = vld [vmem:[%s7 + $0x28] sm:$0xff]
      %v3137 = vld [vmem:[%s8] sm:$0xff]
      %v3138 = vld [vmem:[%s8 + $0x8] sm:$0xff]
      %v3139 = vld [vmem:[%s8 + $0x10] sm:$0xff]
      %v3140 = vld [vmem:[%s8 + $0x18] sm:$0xff]
      %v3141 = vld [vmem:[%s8 + $0x20] sm:$0xff]
      %v3142 = vld [vmem:[%s8 + $0x28] sm:$0xff]
      %3179 = vrot.lane.b32.xlu0 %v3095, 127
      %v3180 = vpop.permute.xlu0 %3179
      %3181 = vrot.lane.b32.xlu0 %v3096, 127
      %v3182 = vpop.permute.xlu0 %3181
      %3183 = vrot.lane.b32.xlu0 %v3097, 127
      %v3184 = vpop.permute.xlu0 %3183
      %3185 = vrot.lane.b32.xlu0 %v3098, 127
      %v3186 = vpop.permute.xlu0 %3185
      %3187 = vrot.lane.b32.xlu0 %v3099, 127
      %v3188 = vpop.permute.xlu0 %3187
      %3189 = vrot.lane.b32.xlu0 %v3100, 127
      %v3190 = vpop.permute.xlu0 %3189
      %3191 = vrot.lane.b32.xlu0 %v3101, 127
      %v3192 = vpop.permute.xlu0 %3191
      %3193 = vrot.lane.b32.xlu0 %v3102, 127
      %v3194 = vpop.permute.xlu0 %3193
      %3195 = vrot.lane.b32.xlu0 %v3103, 127
      %v3196 = vpop.permute.xlu0 %3195
      %3197 = vrot.lane.b32.xlu0 %v3104, 127
      %v3198 = vpop.permute.xlu0 %3197
      %3199 = vrot.lane.b32.xlu0 %v3105, 127
      %v3200 = vpop.permute.xlu0 %3199
      %3201 = vrot.lane.b32.xlu0 %v3106, 127
      %v3202 = vpop.permute.xlu0 %3201
      %3203 = vrot.lane.b32.xlu0 %v3107, 127
      %v3204 = vpop.permute.xlu0 %3203
      %3205 = vrot.lane.b32.xlu0 %v3108, 127
      %v3206 = vpop.permute.xlu0 %3205
      %3207 = vrot.lane.b32.xlu0 %v3109, 127
      %v3208 = vpop.permute.xlu0 %3207
      %3209 = vrot.lane.b32.xlu0 %v3110, 127
      %v3210 = vpop.permute.xlu0 %3209
      %3211 = vrot.lane.b32.xlu0 %v3111, 127
      %v3212 = vpop.permute.xlu0 %3211
      %3213 = vrot.lane.b32.xlu0 %v3112, 127
      %v3214 = vpop.permute.xlu0 %3213
      %3215 = vrot.lane.b32.xlu0 %v3113, 127
      %v3216 = vpop.permute.xlu0 %3215
      %3217 = vrot.lane.b32.xlu0 %v3114, 127
      %v3218 = vpop.permute.xlu0 %3217
      %3219 = vrot.lane.b32.xlu0 %v3115, 127
      %v3220 = vpop.permute.xlu0 %3219
      %3221 = vrot.lane.b32.xlu0 %v3116, 127
      %v3222 = vpop.permute.xlu0 %3221
      %3223 = vrot.lane.b32.xlu0 %v3117, 127
      %v3224 = vpop.permute.xlu0 %3223
      %3225 = vrot.lane.b32.xlu0 %v3118, 127
      %v3226 = vpop.permute.xlu0 %3225
      %3227 = vrot.lane.b32.xlu0 %v3119, 127
      %v3228 = vpop.permute.xlu0 %3227
      %3229 = vrot.lane.b32.xlu0 %v3120, 127
      %v3230 = vpop.permute.xlu0 %3229
      %3231 = vrot.lane.b32.xlu0 %v3121, 127
      %v3232 = vpop.permute.xlu0 %3231
      %3233 = vrot.lane.b32.xlu0 %v3122, 127
      %v3234 = vpop.permute.xlu0 %3233
      %3235 = vrot.lane.b32.xlu0 %v3123, 127
      %v3236 = vpop.permute.xlu0 %3235
      %3237 = vrot.lane.b32.xlu0 %v3124, 127
      %v3238 = vpop.permute.xlu0 %3237
      %3239 = vrot.lane.b32.xlu0 %v3125, 127
      %v3240 = vpop.permute.xlu0 %3239
      %3241 = vrot.lane.b32.xlu0 %v3126, 127
      %v3242 = vpop.permute.xlu0 %3241
      %3243 = vrot.lane.b32.xlu0 %v3127, 127
      %v3244 = vpop.permute.xlu0 %3243
      %3245 = vrot.lane.b32.xlu0 %v3128, 127
      %v3246 = vpop.permute.xlu0 %3245
      %3247 = vrot.lane.b32.xlu0 %v3129, 127
      %v3248 = vpop.permute.xlu0 %3247
      %3249 = vrot.lane.b32.xlu0 %v3130, 127
      %v3250 = vpop.permute.xlu0 %3249
      %v3251 = vsel %vm723, %v3180, %v3182
      %v3252 = vsel %vm723, %v3182, %v3184
      %v3253 = vsel %vm723, %v3186, %v3188
      %v3254 = vsel %vm723, %v3188, %v3190
      %v3255 = vsel %vm723, %v3192, %v3194
      %v3256 = vsel %vm723, %v3194, %v3196
      %v3257 = vsel %vm723, %v3198, %v3200
      %v3258 = vsel %vm723, %v3200, %v3202
      %v3259 = vsel %vm723, %v3204, %v3206
      %v3260 = vsel %vm723, %v3206, %v3208
      %v3261 = vsel %vm723, %v3210, %v3212
      %v3262 = vsel %vm723, %v3212, %v3214
      %v3263 = vsel %vm723, %v3216, %v3218
      %v3264 = vsel %vm723, %v3218, %v3220
      %v3265 = vsel %vm723, %v3222, %v3224
      %v3266 = vsel %vm723, %v3224, %v3226
      %v3267 = vsel %vm723, %v3228, %v3230
      %v3268 = vsel %vm723, %v3230, %v3232
      %v3269 = vsel %vm723, %v3234, %v3236
      %v3270 = vsel %vm723, %v3236, %v3238
      %v3271 = vsel %vm723, %v3240, %v3242
      %v3272 = vsel %vm723, %v3242, %v3244
      %v3273 = vsel %vm723, %v3246, %v3248
      %v3274 = vsel %vm723, %v3248, %v3250
      %v3311 = vsel %vm754, %v3184, 0.0
      %v3312 = vsel %vm754, %v3190, 0.0
      %v3313 = vsel %vm754, %v3196, 0.0
      %v3314 = vsel %vm754, %v3202, 0.0
      %v3315 = vsel %vm754, %v3208, 0.0
      %v3316 = vsel %vm754, %v3214, 0.0
      %v3317 = vsel %vm754, %v3220, 0.0
      %v3318 = vsel %vm754, %v3226, 0.0
      %v3319 = vsel %vm754, %v3232, 0.0
      %v3320 = vsel %vm754, %v3238, 0.0
      %v3321 = vsel %vm754, %v3244, 0.0
      %v3322 = vsel %vm754, %v3250, 0.0
      %vm3323 = vcmask 785408
      %v3325 = vsel %vm3323, %v3137, 0
      %v3328 = vsel %vm3323, %v3138, 0
      %v3331 = vsel %vm3323, %v3139, 0
      %v3334 = vsel %vm3323, %v3140, 0
      %v3337 = vsel %vm3323, %v3141, 0
      %v3340 = vsel %vm3323, %v3142, 0
      %3342 = vmatprep.subr.mxu0 %v3252
      %3343 = vmatpush1.msra.mxu0 %v3251
      %3344 = vmatprep.subr.mxu0 %v3254
      %3345 = vmatpush1.msra.mxu0 %v3253
      %3346 = vmatprep.subr.mxu0 %v3256
      %3347 = vmatpush1.msra.mxu0 %v3255
      %3348 = vmatprep.subr.mxu0 %v3258
      %3349 = vmatpush1.msra.mxu0 %v3257
      %3350 = vmatprep.subr.mxu0 %v3260
      %3351 = vmatpush1.msra.mxu0 %v3259
      %3352 = vmatprep.subr.mxu0 %v3262
      %3353 = vmatpush1.msra.mxu0 %v3261
      %3354 = vmatprep.subr.mxu0 %v3264
      %3355 = vmatpush1.msra.mxu0 %v3263
      %3356 = vmatprep.subr.mxu0 %v3266
      %3357 = vmatpush1.msra.mxu0 %v3265
      %3358 = vmatprep.subr.mxu0 %v3268
      %3359 = vmatpush1.msra.mxu0 %v3267
      %3360 = vmatprep.subr.mxu0 %v3270
      %3361 = vmatpush1.msra.mxu0 %v3269
      %3362 = vmatprep.subr.mxu0 %v3272
      %3363 = vmatpush1.msra.mxu0 %v3271
      %3364 = vmatprep.subr.mxu0 %v3274
      %3365 = vmatpush1.msra.mxu0 %v3273
      %3366 = vmatprep.subr.mxu0 0.0
      %3367 = vmatpush1.msra.mxu0 0.0
      %3368 = vmatprep.subr.mxu0 0.0
      %3369 = vmatpush1.msra.mxu0 0.0
      %3370 = vmatprep.subr.mxu0 0.0
      %3371 = vmatpush1.msra.mxu0 0.0
      %3372 = vmatprep.subr.mxu0 0.0
      %3373 = vmatpush1.msra.mxu0 0.0
      %3374 = vmatprep.subr.mxu0 0.0
      %3375 = vmatpush1.msra.mxu0 0.0
      %3376 = vmatprep.subr.mxu0 0.0
      %3377 = vmatpush1.msra.mxu0 0.0
      %3378 = vmatprep.subr.mxu0 0.0
      %3379 = vmatpush1.msra.mxu0 0.0
      %3380 = vmatprep.subr.mxu0 0.0
      %3381 = vmatpush1.msra.mxu0 0.0
      %3382 = vmatprep.subr.mxu0 0.0
      %3383 = vmatpush1.msra.mxu0 0.0
      %3384 = vmatprep.subr.mxu0 0.0
      %3385 = vmatpush1.msra.mxu0 0.0
      %3386 = vmatprep.subr.mxu0 0.0
      %3387 = vmatpush1.msra.mxu0 0.0
      %3388 = vmatprep.subr.mxu0 0.0
      %3389 = vmatpush1.msra.mxu0 0.0
      %3390 = vmatprep.subr.mxu0 0.0
      %3391 = vmatpush1.msra.mxu0 0.0
      %3392 = vmatprep.subr.mxu0 0.0
      %3393 = vmatpush1.msra.mxu0 0.0
      %3394 = vmatprep.subr.mxu0 0.0
      %3395 = vmatpush1.msra.mxu0 0.0
      %3396 = vmatprep.subr.mxu0 0.0
      %3397 = vmatpush1.msra.mxu0 0.0
      %3398 = vmatprep.subr.mxu0 0.0
      %3399 = vmatpush1.msra.mxu0 0.0
      %3400 = vmatprep.subr.mxu0 0.0
      %3401 = vmatpush1.msra.mxu0 0.0
      %3402 = vmatprep.subr.mxu0 0.0
      %3403 = vmatpush1.msra.mxu0 0.0
      %3404 = vmatprep.subr.mxu0 0.0
      %3405 = vmatpush1.msra.mxu0 0.0
      %3406 = vmatprep.mubr.f32.mxu0 0.0
      %3407 = vmatmul.mubr.f32.gmra.mrb[0].mxu0 %v3325
      %v3408 = vpop.f32.mrb[0].mxu0
      %v3409 = vadd.f32 0.0, %v3408
      %v3410 = vpop.f32.mrb[0].mxu0
      %v3411 = vadd.f32 0.0, %v3410
      %3412 = vmatprep.mubr.f32.mxu0 0.0
      %3413 = vmatmul.mubr.f32.gmra.mrb[0].mxu0 %v3328
      %v3414 = vpop.f32.mrb[0].mxu0
      %v3415 = vadd.f32 0.0, %v3414
      %v3416 = vpop.f32.mrb[0].mxu0
      %v3417 = vadd.f32 0.0, %v3416
      %3418 = vmatprep.mubr.f32.mxu0 0.0
      %3419 = vmatmul.mubr.f32.gmra.mrb[0].mxu0 %v3331
      %v3420 = vpop.f32.mrb[0].mxu0
      %v3421 = vadd.f32 0.0, %v3420
      %v3422 = vpop.f32.mrb[0].mxu0
      %v3423 = vadd.f32 0.0, %v3422
      %3424 = vmatprep.mubr.f32.mxu0 0.0
      %3425 = vmatmul.mubr.f32.gmra.mrb[0].mxu0 %v3334
      %v3426 = vpop.f32.mrb[0].mxu0
      %v3427 = vadd.f32 0.0, %v3426
      %v3428 = vpop.f32.mrb[0].mxu0
      %v3429 = vadd.f32 0.0, %v3428
      %3430 = vmatprep.mubr.f32.mxu0 0.0
      %3431 = vmatmul.mubr.f32.gmra.mrb[0].mxu0 %v3337
      %v3432 = vpop.f32.mrb[0].mxu0
      %v3433 = vadd.f32 0.0, %v3432
      %v3434 = vpop.f32.mrb[0].mxu0
      %v3435 = vadd.f32 0.0, %v3434
      %3436 = vmatprep.mubr.f32.mxu0 0.0
      %3437 = vmatmul.mubr.f32.gmra.mrb[0].mxu0 %v3340
      %v3438 = vpop.f32.mrb[0].mxu0
      %v3439 = vadd.f32 0.0, %v3438
      %v3440 = vpop.f32.mrb[0].mxu0
      %v3441 = vadd.f32 0.0, %v3440
      %3442 = vdwg.mxu0
      %3443 = vmatprep.subr.mxu0 0.0
      %3444 = vmatpush1.msra.mxu0 %v3311
      %3445 = vmatprep.subr.mxu0 0.0
      %3446 = vmatpush1.msra.mxu0 %v3312
      %3447 = vmatprep.subr.mxu0 0.0
      %3448 = vmatpush1.msra.mxu0 %v3313
      %3449 = vmatprep.subr.mxu0 0.0
      %3450 = vmatpush1.msra.mxu0 %v3314
      %3451 = vmatprep.subr.mxu0 0.0
      %3452 = vmatpush1.msra.mxu0 %v3315
      %3453 = vmatprep.subr.mxu0 0.0
      %3454 = vmatpush1.msra.mxu0 %v3316
      %3455 = vmatprep.subr.mxu0 0.0
      %3456 = vmatpush1.msra.mxu0 %v3317
      %3457 = vmatprep.subr.mxu0 0.0
      %3458 = vmatpush1.msra.mxu0 %v3318
      %3459 = vmatprep.subr.mxu0 0.0
      %3460 = vmatpush1.msra.mxu0 %v3319
      %3461 = vmatprep.subr.mxu0 0.0
      %3462 = vmatpush1.msra.mxu0 %v3320
      %3463 = vmatprep.subr.mxu0 0.0
      %3464 = vmatpush1.msra.mxu0 %v3321
      %3465 = vmatprep.subr.mxu0 0.0
      %3466 = vmatpush1.msra.mxu0 %v3322
      %3467 = vmatprep.subr.mxu0 0.0
      %3468 = vmatpush1.msra.mxu0 0.0
      %3469 = vmatprep.subr.mxu0 0.0
      %3470 = vmatpush1.msra.mxu0 0.0
      %3471 = vmatprep.subr.mxu0 0.0
      %3472 = vmatpush1.msra.mxu0 0.0
      %3473 = vmatprep.subr.mxu0 0.0
      %3474 = vmatpush1.msra.mxu0 0.0
      %3475 = vmatprep.subr.mxu0 0.0
      %3476 = vmatpush1.msra.mxu0 0.0
      %3477 = vmatprep.subr.mxu0 0.0
      %3478 = vmatpush1.msra.mxu0 0.0
      %3479 = vmatprep.subr.mxu0 0.0
      %3480 = vmatpush1.msra.mxu0 0.0
      %3481 = vmatprep.subr.mxu0 0.0
      %3482 = vmatpush1.msra.mxu0 0.0
      %3483 = vmatprep.subr.mxu0 0.0
      %3484 = vmatpush1.msra.mxu0 0.0
      %3485 = vmatprep.subr.mxu0 0.0
      %3486 = vmatpush1.msra.mxu0 0.0
      %3487 = vmatprep.subr.mxu0 0.0
      %3488 = vmatpush1.msra.mxu0 0.0
      %3489 = vmatprep.subr.mxu0 0.0
      %3490 = vmatpush1.msra.mxu0 0.0
      %3491 = vmatprep.subr.mxu0 0.0
      %3492 = vmatpush1.msra.mxu0 0.0
      %3493 = vmatprep.subr.mxu0 0.0
      %3494 = vmatpush1.msra.mxu0 0.0
      %3495 = vmatprep.subr.mxu0 0.0
      %3496 = vmatpush1.msra.mxu0 0.0
      %3497 = vmatprep.subr.mxu0 0.0
      %3498 = vmatpush1.msra.mxu0 0.0
      %3499 = vmatprep.subr.mxu0 0.0
      %3500 = vmatpush1.msra.mxu0 0.0
      %3501 = vmatprep.subr.mxu0 0.0
      %3502 = vmatpush1.msra.mxu0 0.0
      %3503 = vmatprep.subr.mxu0 0.0
      %3504 = vmatpush1.msra.mxu0 0.0
      %3505 = vmatprep.subr.mxu0 0.0
      %3506 = vmatpush1.msra.mxu0 0.0
      %3507 = vmatprep.mubr.f32.mxu0 0.0
      %3508 = vmatmul.mubr.f32.gmra.mrb[0].mxu0 %v3325
      %v3509 = vpop.f32.mrb[0].mxu0
      %v3510 = vadd.f32 0.0, %v3509
      %v3511 = vpop.f32.mrb[0].mxu0
      %3512 = vmatprep.mubr.f32.mxu0 0.0
      %3513 = vmatmul.mubr.f32.gmra.mrb[0].mxu0 %v3328
      %v3514 = vpop.f32.mrb[0].mxu0
      %v3515 = vadd.f32 0.0, %v3514
      %v3516 = vpop.f32.mrb[0].mxu0
      %3517 = vmatprep.mubr.f32.mxu0 0.0
      %3518 = vmatmul.mubr.f32.gmra.mrb[0].mxu0 %v3331
      %v3519 = vpop.f32.mrb[0].mxu0
      %v3520 = vadd.f32 0.0, %v3519
      %v3521 = vpop.f32.mrb[0].mxu0
      %3522 = vmatprep.mubr.f32.mxu0 0.0
      %3523 = vmatmul.mubr.f32.gmra.mrb[0].mxu0 %v3334
      %v3524 = vpop.f32.mrb[0].mxu0
      %v3525 = vadd.f32 0.0, %v3524
      %v3526 = vpop.f32.mrb[0].mxu0
      %3527 = vmatprep.mubr.f32.mxu0 0.0
      %3528 = vmatmul.mubr.f32.gmra.mrb[0].mxu0 %v3337
      %v3529 = vpop.f32.mrb[0].mxu0
      %v3530 = vadd.f32 0.0, %v3529
      %v3531 = vpop.f32.mrb[0].mxu0
      %3532 = vmatprep.mubr.f32.mxu0 0.0
      %3533 = vmatmul.mubr.f32.gmra.mrb[0].mxu0 %v3340
      %v3534 = vpop.f32.mrb[0].mxu0
      %v3535 = vadd.f32 0.0, %v3534
      %v3536 = vpop.f32.mrb[0].mxu0
      %3537 = vdwg.mxu0
      %v3539 = vsel %vm3323, %v3131, 0
      %v3542 = vsel %vm3323, %v3132, 0
      %v3545 = vsel %vm3323, %v3133, 0
      %v3548 = vsel %vm3323, %v3134, 0
      %v3551 = vsel %vm3323, %v3135, 0
      %v3554 = vsel %vm3323, %v3136, 0
      %3556 = vmatprep.subr.mxu0 %v3096
      %3557 = vmatpush1.msra.mxu0 %v3095
      %3558 = vmatprep.subr.mxu0 %v3099
      %3559 = vmatpush1.msra.mxu0 %v3098
      %3560 = vmatprep.subr.mxu0 %v3102
      %3561 = vmatpush1.msra.mxu0 %v3101
      %3562 = vmatprep.subr.mxu0 %v3105
      %3563 = vmatpush1.msra.mxu0 %v3104
      %3564 = vmatprep.subr.mxu0 %v3108
      %3565 = vmatpush1.msra.mxu0 %v3107
      %3566 = vmatprep.subr.mxu0 %v3111
      %3567 = vmatpush1.msra.mxu0 %v3110
      %3568 = vmatprep.subr.mxu0 %v3114
      %3569 = vmatpush1.msra.mxu0 %v3113
      %3570 = vmatprep.subr.mxu0 %v3117
      %3571 = vmatpush1.msra.mxu0 %v3116
      %3572 = vmatprep.subr.mxu0 %v3120
      %3573 = vmatpush1.msra.mxu0 %v3119
      %3574 = vmatprep.subr.mxu0 %v3123
      %3575 = vmatpush1.msra.mxu0 %v3122
      %3576 = vmatprep.subr.mxu0 %v3126
      %3577 = vmatpush1.msra.mxu0 %v3125
      %3578 = vmatprep.subr.mxu0 %v3129
      %3579 = vmatpush1.msra.mxu0 %v3128
      %3580 = vmatprep.subr.mxu0 0.0
      %3581 = vmatpush1.msra.mxu0 0.0
      %3582 = vmatprep.subr.mxu0 0.0
      %3583 = vmatpush1.msra.mxu0 0.0
      %3584 = vmatprep.subr.mxu0 0.0
      %3585 = vmatpush1.msra.mxu0 0.0
      %3586 = vmatprep.subr.mxu0 0.0
      %3587 = vmatpush1.msra.mxu0 0.0
      %3588 = vmatprep.subr.mxu0 0.0
      %3589 = vmatpush1.msra.mxu0 0.0
      %3590 = vmatprep.subr.mxu0 0.0
      %3591 = vmatpush1.msra.mxu0 0.0
      %3592 = vmatprep.subr.mxu0 0.0
      %3593 = vmatpush1.msra.mxu0 0.0
      %3594 = vmatprep.subr.mxu0 0.0
      %3595 = vmatpush1.msra.mxu0 0.0
      %3596 = vmatprep.subr.mxu0 0.0
      %3597 = vmatpush1.msra.mxu0 0.0
      %3598 = vmatprep.subr.mxu0 0.0
      %3599 = vmatpush1.msra.mxu0 0.0
      %3600 = vmatprep.subr.mxu0 0.0
      %3601 = vmatpush1.msra.mxu0 0.0
      %3602 = vmatprep.subr.mxu0 0.0
      %3603 = vmatpush1.msra.mxu0 0.0
      %3604 = vmatprep.subr.mxu0 0.0
      %3605 = vmatpush1.msra.mxu0 0.0
      %3606 = vmatprep.subr.mxu0 0.0
      %3607 = vmatpush1.msra.mxu0 0.0
      %3608 = vmatprep.subr.mxu0 0.0
      %3609 = vmatpush1.msra.mxu0 0.0
      %3610 = vmatprep.subr.mxu0 0.0
      %3611 = vmatpush1.msra.mxu0 0.0
      %3612 = vmatprep.subr.mxu0 0.0
      %3613 = vmatpush1.msra.mxu0 0.0
      %3614 = vmatprep.subr.mxu0 0.0
      %3615 = vmatpush1.msra.mxu0 0.0
      %3616 = vmatprep.subr.mxu0 0.0
      %3617 = vmatpush1.msra.mxu0 0.0
      %3618 = vmatprep.subr.mxu0 0.0
      %3619 = vmatpush1.msra.mxu0 0.0
      %3620 = vmatprep.mubr.f32.mxu0 0.0
      %3621 = vmatmul.mubr.f32.gmra.mrb[0].mxu0 %v3539
      %v3622 = vpop.f32.mrb[0].mxu0
      %v3623 = vadd.f32 %v3409, %v3622
      %v3624 = vpop.f32.mrb[0].mxu0
      %v3625 = vadd.f32 %v3411, %v3624
      %3626 = vmatprep.mubr.f32.mxu0 0.0
      %3627 = vmatmul.mubr.f32.gmra.mrb[0].mxu0 %v3542
      %v3628 = vpop.f32.mrb[0].mxu0
      %v3629 = vadd.f32 %v3415, %v3628
      %v3630 = vpop.f32.mrb[0].mxu0
      %v3631 = vadd.f32 %v3417, %v3630
      %3632 = vmatprep.mubr.f32.mxu0 0.0
      %3633 = vmatmul.mubr.f32.gmra.mrb[0].mxu0 %v3545
      %v3634 = vpop.f32.mrb[0].mxu0
      %v3635 = vadd.f32 %v3421, %v3634
      %v3636 = vpop.f32.mrb[0].mxu0
      %v3637 = vadd.f32 %v3423, %v3636
      %3638 = vmatprep.mubr.f32.mxu0 0.0
      %3639 = vmatmul.mubr.f32.gmra.mrb[0].mxu0 %v3548
      %v3640 = vpop.f32.mrb[0].mxu0
      %v3641 = vadd.f32 %v3427, %v3640
      %v3642 = vpop.f32.mrb[0].mxu0
      %v3643 = vadd.f32 %v3429, %v3642
      %3644 = vmatprep.mubr.f32.mxu0 0.0
      %3645 = vmatmul.mubr.f32.gmra.mrb[0].mxu0 %v3551
      %v3646 = vpop.f32.mrb[0].mxu0
      %v3647 = vadd.f32 %v3433, %v3646
      %v3648 = vpop.f32.mrb[0].mxu0
      %v3649 = vadd.f32 %v3435, %v3648
      %3650 = vmatprep.mubr.f32.mxu0 0.0
      %3651 = vmatmul.mubr.f32.gmra.mrb[0].mxu0 %v3554
      %v3652 = vpop.f32.mrb[0].mxu0
      %v3653 = vadd.f32 %v3439, %v3652
      %v3654 = vpop.f32.mrb[0].mxu0
      %v3655 = vadd.f32 %v3441, %v3654
      %3656 = vdwg.mxu0
      %3657 = vmatprep.subr.mxu0 0.0
      %3658 = vmatpush1.msra.mxu0 %v3097
      %3659 = vmatprep.subr.mxu0 0.0
      %3660 = vmatpush1.msra.mxu0 %v3100
      %3661 = vmatprep.subr.mxu0 0.0
      %3662 = vmatpush1.msra.mxu0 %v3103
      %3663 = vmatprep.subr.mxu0 0.0
      %3664 = vmatpush1.msra.mxu0 %v3106
      %3665 = vmatprep.subr.mxu0 0.0
      %3666 = vmatpush1.msra.mxu0 %v3109
      %3667 = vmatprep.subr.mxu0 0.0
      %3668 = vmatpush1.msra.mxu0 %v3112
      %3669 = vmatprep.subr.mxu0 0.0
      %3670 = vmatpush1.msra.mxu0 %v3115
      %3671 = vmatprep.subr.mxu0 0.0
      %3672 = vmatpush1.msra.mxu0 %v3118
      %3673 = vmatprep.subr.mxu0 0.0
      %3674 = vmatpush1.msra.mxu0 %v3121
      %3675 = vmatprep.subr.mxu0 0.0
      %3676 = vmatpush1.msra.mxu0 %v3124
      %3677 = vmatprep.subr.mxu0 0.0
      %3678 = vmatpush1.msra.mxu0 %v3127
      %3679 = vmatprep.subr.mxu0 0.0
      %3680 = vmatpush1.msra.mxu0 %v3130
      %3681 = vmatprep.subr.mxu0 0.0
      %3682 = vmatpush1.msra.mxu0 0.0
      %3683 = vmatprep.subr.mxu0 0.0
      %3684 = vmatpush1.msra.mxu0 0.0
      %3685 = vmatprep.subr.mxu0 0.0
      %3686 = vmatpush1.msra.mxu0 0.0
      %3687 = vmatprep.subr.mxu0 0.0
      %3688 = vmatpush1.msra.mxu0 0.0
      %3689 = vmatprep.subr.mxu0 0.0
      %3690 = vmatpush1.msra.mxu0 0.0
      %3691 = vmatprep.subr.mxu0 0.0
      %3692 = vmatpush1.msra.mxu0 0.0
      %3693 = vmatprep.subr.mxu0 0.0
      %3694 = vmatpush1.msra.mxu0 0.0
      %3695 = vmatprep.subr.mxu0 0.0
      %3696 = vmatpush1.msra.mxu0 0.0
      %3697 = vmatprep.subr.mxu0 0.0
      %3698 = vmatpush1.msra.mxu0 0.0
      %3699 = vmatprep.subr.mxu0 0.0
      %3700 = vmatpush1.msra.mxu0 0.0
      %3701 = vmatprep.subr.mxu0 0.0
      %3702 = vmatpush1.msra.mxu0 0.0
      %3703 = vmatprep.subr.mxu0 0.0
      %3704 = vmatpush1.msra.mxu0 0.0
      %3705 = vmatprep.subr.mxu0 0.0
      %3706 = vmatpush1.msra.mxu0 0.0
      %3707 = vmatprep.subr.mxu0 0.0
      %3708 = vmatpush1.msra.mxu0 0.0
      %3709 = vmatprep.subr.mxu0 0.0
      %3710 = vmatpush1.msra.mxu0 0.0
      %3711 = vmatprep.subr.mxu0 0.0
      %3712 = vmatpush1.msra.mxu0 0.0
      %3713 = vmatprep.subr.mxu0 0.0
      %3714 = vmatpush1.msra.mxu0 0.0
      %3715 = vmatprep.subr.mxu0 0.0
      %3716 = vmatpush1.msra.mxu0 0.0
      %3717 = vmatprep.subr.mxu0 0.0
      %3718 = vmatpush1.msra.mxu0 0.0
      %3719 = vmatprep.subr.mxu0 0.0
      %3720 = vmatpush1.msra.mxu0 0.0
      %3721 = vmatprep.mubr.f32.mxu0 0.0
      %3722 = vmatmul.mubr.f32.gmra.mrb[0].mxu0 %v3539
      %v3723 = vpop.f32.mrb[0].mxu0
      %v3724 = vadd.f32 %v3510, %v3723
      %v3725 = vpop.f32.mrb[0].mxu0
      %3726 = vmatprep.mubr.f32.mxu0 0.0
      %3727 = vmatmul.mubr.f32.gmra.mrb[0].mxu0 %v3542
      %v3728 = vpop.f32.mrb[0].mxu0
      %v3729 = vadd.f32 %v3515, %v3728
      %v3730 = vpop.f32.mrb[0].mxu0
      %3731 = vmatprep.mubr.f32.mxu0 0.0
      %3732 = vmatmul.mubr.f32.gmra.mrb[0].mxu0 %v3545
      %v3733 = vpop.f32.mrb[0].mxu0
      %v3734 = vadd.f32 %v3520, %v3733
      %v3735 = vpop.f32.mrb[0].mxu0
      %3736 = vmatprep.mubr.f32.mxu0 0.0
      %3737 = vmatmul.mubr.f32.gmra.mrb[0].mxu0 %v3548
      %v3738 = vpop.f32.mrb[0].mxu0
      %v3739 = vadd.f32 %v3525, %v3738
      %v3740 = vpop.f32.mrb[0].mxu0
      %3741 = vmatprep.mubr.f32.mxu0 0.0
      %3742 = vmatmul.mubr.f32.gmra.mrb[0].mxu0 %v3551
      %v3743 = vpop.f32.mrb[0].mxu0
      %v3744 = vadd.f32 %v3530, %v3743
      %v3745 = vpop.f32.mrb[0].mxu0
      %3746 = vmatprep.mubr.f32.mxu0 0.0
      %3747 = vmatmul.mubr.f32.gmra.mrb[0].mxu0 %v3554
      %v3748 = vpop.f32.mrb[0].mxu0
      %v3749 = vadd.f32 %v3535, %v3748
      %v3750 = vpop.f32.mrb[0].mxu0
      %3751 = vdwg.mxu0
      %v3752 = vld [vmem:[%s9] sm:$0xff]
      %v3753 = vld [vmem:[%s9 + $0x8] sm:$0xff]
      %v3754 = vld [vmem:[%s9 + $0x10] sm:$0xff]
      %v3755 = vld [vmem:[%s9 + $0x18] sm:$0xff]
      %v3756 = vld [vmem:[%s9 + $0x20] sm:$0xff]
      %v3757 = vld [vmem:[%s9 + $0x28] sm:$0xff]
      %3759 = vset.pattern.permute.xlu0 0
      %3760 = vperm.xlu0 %3759, %v3752
      %v3761 = vpop.permute.xlu0 %3760
      %3764 = vset.pattern.permute.xlu0 0
      %3765 = vperm.xlu0 %3764, %v3753
      %v3766 = vpop.permute.xlu0 %3765
      %3769 = vset.pattern.permute.xlu0 0
      %3770 = vperm.xlu0 %3769, %v3754
      %v3771 = vpop.permute.xlu0 %3770
      %3774 = vset.pattern.permute.xlu0 0
      %3775 = vperm.xlu0 %3774, %v3755
      %v3776 = vpop.permute.xlu0 %3775
      %3779 = vset.pattern.permute.xlu0 0
      %3780 = vperm.xlu0 %3779, %v3756
      %v3781 = vpop.permute.xlu0 %3780
      %3784 = vset.pattern.permute.xlu0 0
      %3785 = vperm.xlu0 %3784, %v3757
      %v3786 = vpop.permute.xlu0 %3785
      %v3788 = vadd.f32 %v3623, %v3761
      %v3789 = vadd.f32 %v3625, %v3761
      %v3790 = vadd.f32 %v3724, %v3761
      %v3791 = vadd.f32 %v3629, %v3766
      %v3792 = vadd.f32 %v3631, %v3766
      %v3793 = vadd.f32 %v3729, %v3766
      %v3794 = vadd.f32 %v3635, %v3771
      %v3795 = vadd.f32 %v3637, %v3771
      %v3796 = vadd.f32 %v3734, %v3771
      %v3797 = vadd.f32 %v3641, %v3776
      %v3798 = vadd.f32 %v3643, %v3776
      %v3799 = vadd.f32 %v3739, %v3776
      %v3800 = vadd.f32 %v3647, %v3781
      %v3801 = vadd.f32 %v3649, %v3781
      %v3802 = vadd.f32 %v3744, %v3781
      %v3803 = vadd.f32 %v3653, %v3786
      %v3804 = vadd.f32 %v3655, %v3786
      %v3805 = vadd.f32 %v3749, %v3786
      %v3806 = vmax.f32 %v3788, 0.0
      %v3807 = vmax.f32 %v3789, 0.0
      %v3808 = vmax.f32 %v3790, 0.0
      %v3809 = vmax.f32 %v3791, 0.0
      %v3810 = vmax.f32 %v3792, 0.0
      %v3811 = vmax.f32 %v3793, 0.0
      %v3812 = vmax.f32 %v3794, 0.0
      %v3813 = vmax.f32 %v3795, 0.0
      %v3814 = vmax.f32 %v3796, 0.0
      %v3815 = vmax.f32 %v3797, 0.0
      %v3816 = vmax.f32 %v3798, 0.0
      %v3817 = vmax.f32 %v3799, 0.0
      %v3818 = vmax.f32 %v3800, 0.0
      %v3819 = vmax.f32 %v3801, 0.0
      %v3820 = vmax.f32 %v3802, 0.0
      %v3821 = vmax.f32 %v3803, 0.0
      %v3822 = vmax.f32 %v3804, 0.0
      %v3823 = vmax.f32 %v3805, 0.0
      %v3824 = vld [vmem:[%s10] sm:$0xff]
      %v3825 = vld [vmem:[%s10 + $0x8] sm:$0xff]
      %v3826 = vld [vmem:[%s10 + $0x10] sm:$0xff]
      %v3827 = vld [vmem:[%s10 + $0x18] sm:$0xff]
      %v3828 = vld [vmem:[%s10 + $0x20] sm:$0xff]
      %v3829 = vld [vmem:[%s10 + $0x28] sm:$0xff]
      %v3830 = vld [vmem:[%s11] sm:$0xff]
      %v3831 = vld [vmem:[%s11 + $0x8] sm:$0xff]
      %v3832 = vld [vmem:[%s11 + $0x10] sm:$0xff]
      %v3833 = vld [vmem:[%s11 + $0x18] sm:$0xff]
      %v3834 = vld [vmem:[%s11 + $0x20] sm:$0xff]
      %v3835 = vld [vmem:[%s11 + $0x28] sm:$0xff]
      %3854 = vrot.lane.b32.xlu0 %v3806, 127
      %v3855 = vpop.permute.xlu0 %3854
      %3856 = vrot.lane.b32.xlu0 %v3807, 127
      %v3857 = vpop.permute.xlu0 %3856
      %3858 = vrot.lane.b32.xlu0 %v3808, 127
      %v3859 = vpop.permute.xlu0 %3858
      %3860 = vrot.lane.b32.xlu0 %v3809, 127
      %v3861 = vpop.permute.xlu0 %3860
      %3862 = vrot.lane.b32.xlu0 %v3810, 127
      %v3863 = vpop.permute.xlu0 %3862
      %3864 = vrot.lane.b32.xlu0 %v3811, 127
      %v3865 = vpop.permute.xlu0 %3864
      %3866 = vrot.lane.b32.xlu0 %v3812, 127
      %v3867 = vpop.permute.xlu0 %3866
      %3868 = vrot.lane.b32.xlu0 %v3813, 127
      %v3869 = vpop.permute.xlu0 %3868
      %3870 = vrot.lane.b32.xlu0 %v3814, 127
      %v3871 = vpop.permute.xlu0 %3870
      %3872 = vrot.lane.b32.xlu0 %v3815, 127
      %v3873 = vpop.permute.xlu0 %3872
      %3874 = vrot.lane.b32.xlu0 %v3816, 127
      %v3875 = vpop.permute.xlu0 %3874
      %3876 = vrot.lane.b32.xlu0 %v3817, 127
      %v3877 = vpop.permute.xlu0 %3876
      %3878 = vrot.lane.b32.xlu0 %v3818, 127
      %v3879 = vpop.permute.xlu0 %3878
      %3880 = vrot.lane.b32.xlu0 %v3819, 127
      %v3881 = vpop.permute.xlu0 %3880
      %3882 = vrot.lane.b32.xlu0 %v3820, 127
      %v3883 = vpop.permute.xlu0 %3882
      %3884 = vrot.lane.b32.xlu0 %v3821, 127
      %v3885 = vpop.permute.xlu0 %3884
      %3886 = vrot.lane.b32.xlu0 %v3822, 127
      %v3887 = vpop.permute.xlu0 %3886
      %3888 = vrot.lane.b32.xlu0 %v3823, 127
      %v3889 = vpop.permute.xlu0 %3888
      %v3890 = vsel %vm723, %v3855, %v3857
      %v3891 = vsel %vm723, %v3857, %v3859
      %v3892 = vsel %vm723, %v3861, %v3863
      %v3893 = vsel %vm723, %v3863, %v3865
      %v3894 = vsel %vm723, %v3867, %v3869
      %v3895 = vsel %vm723, %v3869, %v3871
      %v3896 = vsel %vm723, %v3873, %v3875
      %v3897 = vsel %vm723, %v3875, %v3877
      %v3898 = vsel %vm723, %v3879, %v3881
      %v3899 = vsel %vm723, %v3881, %v3883
      %v3900 = vsel %vm723, %v3885, %v3887
      %v3901 = vsel %vm723, %v3887, %v3889
      %v3920 = vsel %vm754, %v3859, 0.0
      %v3921 = vsel %vm754, %v3865, 0.0
      %v3922 = vsel %vm754, %v3871, 0.0
      %v3923 = vsel %vm754, %v3877, 0.0
      %v3924 = vsel %vm754, %v3883, 0.0
      %v3925 = vsel %vm754, %v3889, 0.0
      %v3927 = vsel %vm761, %v3830, 0
      %v3930 = vsel %vm761, %v3831, 0
      %v3933 = vsel %vm761, %v3832, 0
      %v3936 = vsel %vm761, %v3833, 0
      %v3939 = vsel %vm761, %v3834, 0
      %v3942 = vsel %vm761, %v3835, 0
      %3944 = vmatprep.subr.mxu0 %v3891
      %3945 = vmatpush1.msra.mxu0 %v3890
      %3946 = vmatprep.subr.mxu0 %v3893
      %3947 = vmatpush1.msra.mxu0 %v3892
      %3948 = vmatprep.subr.mxu0 %v3895
      %3949 = vmatpush1.msra.mxu0 %v3894
      %3950 = vmatprep.subr.mxu0 %v3897
      %3951 = vmatpush1.msra.mxu0 %v3896
      %3952 = vmatprep.subr.mxu0 %v3899
      %3953 = vmatpush1.msra.mxu0 %v3898
      %3954 = vmatprep.subr.mxu0 %v3901
      %3955 = vmatpush1.msra.mxu0 %v3900
      %3956 = vmatprep.subr.mxu0 0.0
      %3957 = vmatpush1.msra.mxu0 0.0
      %3958 = vmatprep.subr.mxu0 0.0
      %3959 = vmatpush1.msra.mxu0 0.0
      %3960 = vmatprep.subr.mxu0 0.0
      %3961 = vmatpush1.msra.mxu0 0.0
      %3962 = vmatprep.subr.mxu0 0.0
      %3963 = vmatpush1.msra.mxu0 0.0
      %3964 = vmatprep.subr.mxu0 0.0
      %3965 = vmatpush1.msra.mxu0 0.0
      %3966 = vmatprep.subr.mxu0 0.0
      %3967 = vmatpush1.msra.mxu0 0.0
      %3968 = vmatprep.subr.mxu0 0.0
      %3969 = vmatpush1.msra.mxu0 0.0
      %3970 = vmatprep.subr.mxu0 0.0
      %3971 = vmatpush1.msra.mxu0 0.0
      %3972 = vmatprep.subr.mxu0 0.0
      %3973 = vmatpush1.msra.mxu0 0.0
      %3974 = vmatprep.subr.mxu0 0.0
      %3975 = vmatpush1.msra.mxu0 0.0
      %3976 = vmatprep.subr.mxu0 0.0
      %3977 = vmatpush1.msra.mxu0 0.0
      %3978 = vmatprep.subr.mxu0 0.0
      %3979 = vmatpush1.msra.mxu0 0.0
      %3980 = vmatprep.subr.mxu0 0.0
      %3981 = vmatpush1.msra.mxu0 0.0
      %3982 = vmatprep.subr.mxu0 0.0
      %3983 = vmatpush1.msra.mxu0 0.0
      %3984 = vmatprep.subr.mxu0 0.0
      %3985 = vmatpush1.msra.mxu0 0.0
      %3986 = vmatprep.subr.mxu0 0.0
      %3987 = vmatpush1.msra.mxu0 0.0
      %3988 = vmatprep.subr.mxu0 0.0
      %3989 = vmatpush1.msra.mxu0 0.0
      %3990 = vmatprep.subr.mxu0 0.0
      %3991 = vmatpush1.msra.mxu0 0.0
      %3992 = vmatprep.subr.mxu0 0.0
      %3993 = vmatpush1.msra.mxu0 0.0
      %3994 = vmatprep.subr.mxu0 0.0
      %3995 = vmatpush1.msra.mxu0 0.0
      %3996 = vmatprep.subr.mxu0 0.0
      %3997 = vmatpush1.msra.mxu0 0.0
      %3998 = vmatprep.subr.mxu0 0.0
      %3999 = vmatpush1.msra.mxu0 0.0
      %4000 = vmatprep.subr.mxu0 0.0
      %4001 = vmatpush1.msra.mxu0 0.0
      %4002 = vmatprep.subr.mxu0 0.0
      %4003 = vmatpush1.msra.mxu0 0.0
      %4004 = vmatprep.subr.mxu0 0.0
      %4005 = vmatpush1.msra.mxu0 0.0
      %4006 = vmatprep.subr.mxu0 0.0
      %4007 = vmatpush1.msra.mxu0 0.0
      %4008 = vmatprep.mubr.f32.mxu0 0.0
      %4009 = vmatmul.mubr.f32.gmra.mrb[0].mxu0 %v3927
      %v4010 = vpop.f32.mrb[0].mxu0
      %v4011 = vadd.f32 0.0, %v4010
      %v4012 = vpop.f32.mrb[0].mxu0
      %v4013 = vadd.f32 0.0, %v4012
      %4014 = vmatprep.mubr.f32.mxu0 0.0
      %4015 = vmatmul.mubr.f32.gmra.mrb[0].mxu0 %v3930
      %v4016 = vpop.f32.mrb[0].mxu0
      %v4017 = vadd.f32 0.0, %v4016
      %v4018 = vpop.f32.mrb[0].mxu0
      %v4019 = vadd.f32 0.0, %v4018
      %4020 = vmatprep.mubr.f32.mxu0 0.0
      %4021 = vmatmul.mubr.f32.gmra.mrb[0].mxu0 %v3933
      %v4022 = vpop.f32.mrb[0].mxu0
      %v4023 = vadd.f32 0.0, %v4022
      %v4024 = vpop.f32.mrb[0].mxu0
      %v4025 = vadd.f32 0.0, %v4024
      %4026 = vmatprep.mubr.f32.mxu0 0.0
      %4027 = vmatmul.mubr.f32.gmra.mrb[0].mxu0 %v3936
      %v4028 = vpop.f32.mrb[0].mxu0
      %v4029 = vadd.f32 0.0, %v4028
      %v4030 = vpop.f32.mrb[0].mxu0
      %v4031 = vadd.f32 0.0, %v4030
      %4032 = vmatprep.mubr.f32.mxu0 0.0
      %4033 = vmatmul.mubr.f32.gmra.mrb[0].mxu0 %v3939
      %v4034 = vpop.f32.mrb[0].mxu0
      %v4035 = vadd.f32 0.0, %v4034
      %v4036 = vpop.f32.mrb[0].mxu0
      %v4037 = vadd.f32 0.0, %v4036
      %4038 = vmatprep.mubr.f32.mxu0 0.0
      %4039 = vmatmul.mubr.f32.gmra.mrb[0].mxu0 %v3942
      %v4040 = vpop.f32.mrb[0].mxu0
      %v4041 = vadd.f32 0.0, %v4040
      %v4042 = vpop.f32.mrb[0].mxu0
      %v4043 = vadd.f32 0.0, %v4042
      %4044 = vdwg.mxu0
      %4045 = vmatprep.subr.mxu0 0.0
      %4046 = vmatpush1.msra.mxu0 %v3920
      %4047 = vmatprep.subr.mxu0 0.0
      %4048 = vmatpush1.msra.mxu0 %v3921
      %4049 = vmatprep.subr.mxu0 0.0
      %4050 = vmatpush1.msra.mxu0 %v3922
      %4051 = vmatprep.subr.mxu0 0.0
      %4052 = vmatpush1.msra.mxu0 %v3923
      %4053 = vmatprep.subr.mxu0 0.0
      %4054 = vmatpush1.msra.mxu0 %v3924
      %4055 = vmatprep.subr.mxu0 0.0
      %4056 = vmatpush1.msra.mxu0 %v3925
      %4057 = vmatprep.subr.mxu0 0.0
      %4058 = vmatpush1.msra.mxu0 0.0
      %4059 = vmatprep.subr.mxu0 0.0
      %4060 = vmatpush1.msra.mxu0 0.0
      %4061 = vmatprep.subr.mxu0 0.0
      %4062 = vmatpush1.msra.mxu0 0.0
      %4063 = vmatprep.subr.mxu0 0.0
      %4064 = vmatpush1.msra.mxu0 0.0
      %4065 = vmatprep.subr.mxu0 0.0
      %4066 = vmatpush1.msra.mxu0 0.0
      %4067 = vmatprep.subr.mxu0 0.0
      %4068 = vmatpush1.msra.mxu0 0.0
      %4069 = vmatprep.subr.mxu0 0.0
      %4070 = vmatpush1.msra.mxu0 0.0
      %4071 = vmatprep.subr.mxu0 0.0
      %4072 = vmatpush1.msra.mxu0 0.0
      %4073 = vmatprep.subr.mxu0 0.0
      %4074 = vmatpush1.msra.mxu0 0.0
      %4075 = vmatprep.subr.mxu0 0.0
      %4076 = vmatpush1.msra.mxu0 0.0
      %4077 = vmatprep.subr.mxu0 0.0
      %4078 = vmatpush1.msra.mxu0 0.0
      %4079 = vmatprep.subr.mxu0 0.0
      %4080 = vmatpush1.msra.mxu0 0.0
      %4081 = vmatprep.subr.mxu0 0.0
      %4082 = vmatpush1.msra.mxu0 0.0
      %4083 = vmatprep.subr.mxu0 0.0
      %4084 = vmatpush1.msra.mxu0 0.0
      %4085 = vmatprep.subr.mxu0 0.0
      %4086 = vmatpush1.msra.mxu0 0.0
      %4087 = vmatprep.subr.mxu0 0.0
      %4088 = vmatpush1.msra.mxu0 0.0
      %4089 = vmatprep.subr.mxu0 0.0
      %4090 = vmatpush1.msra.mxu0 0.0
      %4091 = vmatprep.subr.mxu0 0.0
      %4092 = vmatpush1.msra.mxu0 0.0
      %4093 = vmatprep.subr.mxu0 0.0
      %4094 = vmatpush1.msra.mxu0 0.0
      %4095 = vmatprep.subr.mxu0 0.0
      %4096 = vmatpush1.msra.mxu0 0.0
      %4097 = vmatprep.subr.mxu0 0.0
      %4098 = vmatpush1.msra.mxu0 0.0
      %4099 = vmatprep.subr.mxu0 0.0
      %4100 = vmatpush1.msra.mxu0 0.0
      %4101 = vmatprep.subr.mxu0 0.0
      %4102 = vmatpush1.msra.mxu0 0.0
      %4103 = vmatprep.subr.mxu0 0.0
      %4104 = vmatpush1.msra.mxu0 0.0
      %4105 = vmatprep.subr.mxu0 0.0
      %4106 = vmatpush1.msra.mxu0 0.0
      %4107 = vmatprep.subr.mxu0 0.0
      %4108 = vmatpush1.msra.mxu0 0.0
      %4109 = vmatprep.mubr.f32.mxu0 0.0
      %4110 = vmatmul.mubr.f32.gmra.mrb[0].mxu0 %v3927
      %v4111 = vpop.f32.mrb[0].mxu0
      %v4112 = vadd.f32 0.0, %v4111
      %v4113 = vpop.f32.mrb[0].mxu0
      %4114 = vmatprep.mubr.f32.mxu0 0.0
      %4115 = vmatmul.mubr.f32.gmra.mrb[0].mxu0 %v3930
      %v4116 = vpop.f32.mrb[0].mxu0
      %v4117 = vadd.f32 0.0, %v4116
      %v4118 = vpop.f32.mrb[0].mxu0
      %4119 = vmatprep.mubr.f32.mxu0 0.0
      %4120 = vmatmul.mubr.f32.gmra.mrb[0].mxu0 %v3933
      %v4121 = vpop.f32.mrb[0].mxu0
      %v4122 = vadd.f32 0.0, %v4121
      %v4123 = vpop.f32.mrb[0].mxu0
      %4124 = vmatprep.mubr.f32.mxu0 0.0
      %4125 = vmatmul.mubr.f32.gmra.mrb[0].mxu0 %v3936
      %v4126 = vpop.f32.mrb[0].mxu0
      %v4127 = vadd.f32 0.0, %v4126
      %v4128 = vpop.f32.mrb[0].mxu0
      %4129 = vmatprep.mubr.f32.mxu0 0.0
      %4130 = vmatmul.mubr.f32.gmra.mrb[0].mxu0 %v3939
      %v4131 = vpop.f32.mrb[0].mxu0
      %v4132 = vadd.f32 0.0, %v4131
      %v4133 = vpop.f32.mrb[0].mxu0
      %4134 = vmatprep.mubr.f32.mxu0 0.0
      %4135 = vmatmul.mubr.f32.gmra.mrb[0].mxu0 %v3942
      %v4136 = vpop.f32.mrb[0].mxu0
      %v4137 = vadd.f32 0.0, %v4136
      %v4138 = vpop.f32.mrb[0].mxu0
      %4139 = vdwg.mxu0
      %v4141 = vsel %vm761, %v3824, 0
      %v4144 = vsel %vm761, %v3825, 0
      %v4147 = vsel %vm761, %v3826, 0
      %v4150 = vsel %vm761, %v3827, 0
      %v4153 = vsel %vm761, %v3828, 0
      %v4156 = vsel %vm761, %v3829, 0
      %4158 = vmatprep.subr.mxu0 %v3807
      %4159 = vmatpush1.msra.mxu0 %v3806
      %4160 = vmatprep.subr.mxu0 %v3810
      %4161 = vmatpush1.msra.mxu0 %v3809
      %4162 = vmatprep.subr.mxu0 %v3813
      %4163 = vmatpush1.msra.mxu0 %v3812
      %4164 = vmatprep.subr.mxu0 %v3816
      %4165 = vmatpush1.msra.mxu0 %v3815
      %4166 = vmatprep.subr.mxu0 %v3819
      %4167 = vmatpush1.msra.mxu0 %v3818
      %4168 = vmatprep.subr.mxu0 %v3822
      %4169 = vmatpush1.msra.mxu0 %v3821
      %4170 = vmatprep.subr.mxu0 0.0
      %4171 = vmatpush1.msra.mxu0 0.0
      %4172 = vmatprep.subr.mxu0 0.0
      %4173 = vmatpush1.msra.mxu0 0.0
      %4174 = vmatprep.subr.mxu0 0.0
      %4175 = vmatpush1.msra.mxu0 0.0
      %4176 = vmatprep.subr.mxu0 0.0
      %4177 = vmatpush1.msra.mxu0 0.0
      %4178 = vmatprep.subr.mxu0 0.0
      %4179 = vmatpush1.msra.mxu0 0.0
      %4180 = vmatprep.subr.mxu0 0.0
      %4181 = vmatpush1.msra.mxu0 0.0
      %4182 = vmatprep.subr.mxu0 0.0
      %4183 = vmatpush1.msra.mxu0 0.0
      %4184 = vmatprep.subr.mxu0 0.0
      %4185 = vmatpush1.msra.mxu0 0.0
      %4186 = vmatprep.subr.mxu0 0.0
      %4187 = vmatpush1.msra.mxu0 0.0
      %4188 = vmatprep.subr.mxu0 0.0
      %4189 = vmatpush1.msra.mxu0 0.0
      %4190 = vmatprep.subr.mxu0 0.0
      %4191 = vmatpush1.msra.mxu0 0.0
      %4192 = vmatprep.subr.mxu0 0.0
      %4193 = vmatpush1.msra.mxu0 0.0
      %4194 = vmatprep.subr.mxu0 0.0
      %4195 = vmatpush1.msra.mxu0 0.0
      %4196 = vmatprep.subr.mxu0 0.0
      %4197 = vmatpush1.msra.mxu0 0.0
      %4198 = vmatprep.subr.mxu0 0.0
      %4199 = vmatpush1.msra.mxu0 0.0
      %4200 = vmatprep.subr.mxu0 0.0
      %4201 = vmatpush1.msra.mxu0 0.0
      %4202 = vmatprep.subr.mxu0 0.0
      %4203 = vmatpush1.msra.mxu0 0.0
      %4204 = vmatprep.subr.mxu0 0.0
      %4205 = vmatpush1.msra.mxu0 0.0
      %4206 = vmatprep.subr.mxu0 0.0
      %4207 = vmatpush1.msra.mxu0 0.0
      %4208 = vmatprep.subr.mxu0 0.0
      %4209 = vmatpush1.msra.mxu0 0.0
      %4210 = vmatprep.subr.mxu0 0.0
      %4211 = vmatpush1.msra.mxu0 0.0
      %4212 = vmatprep.subr.mxu0 0.0
      %4213 = vmatpush1.msra.mxu0 0.0
      %4214 = vmatprep.subr.mxu0 0.0
      %4215 = vmatpush1.msra.mxu0 0.0
      %4216 = vmatprep.subr.mxu0 0.0
      %4217 = vmatpush1.msra.mxu0 0.0
      %4218 = vmatprep.subr.mxu0 0.0
      %4219 = vmatpush1.msra.mxu0 0.0
      %4220 = vmatprep.subr.mxu0 0.0
      %4221 = vmatpush1.msra.mxu0 0.0
      %4222 = vmatprep.mubr.f32.mxu0 0.0
      %4223 = vmatmul.mubr.f32.gmra.mrb[0].mxu0 %v4141
      %v4224 = vpop.f32.mrb[0].mxu0
      %v4225 = vadd.f32 %v4011, %v4224
      %v4226 = vpop.f32.mrb[0].mxu0
      %v4227 = vadd.f32 %v4013, %v4226
      %4228 = vmatprep.mubr.f32.mxu0 0.0
      %4229 = vmatmul.mubr.f32.gmra.mrb[0].mxu0 %v4144
      %v4230 = vpop.f32.mrb[0].mxu0
      %v4231 = vadd.f32 %v4017, %v4230
      %v4232 = vpop.f32.mrb[0].mxu0
      %v4233 = vadd.f32 %v4019, %v4232
      %4234 = vmatprep.mubr.f32.mxu0 0.0
      %4235 = vmatmul.mubr.f32.gmra.mrb[0].mxu0 %v4147
      %v4236 = vpop.f32.mrb[0].mxu0
      %v4237 = vadd.f32 %v4023, %v4236
      %v4238 = vpop.f32.mrb[0].mxu0
      %v4239 = vadd.f32 %v4025, %v4238
      %4240 = vmatprep.mubr.f32.mxu0 0.0
      %4241 = vmatmul.mubr.f32.gmra.mrb[0].mxu0 %v4150
      %v4242 = vpop.f32.mrb[0].mxu0
      %v4243 = vadd.f32 %v4029, %v4242
      %v4244 = vpop.f32.mrb[0].mxu0
      %v4245 = vadd.f32 %v4031, %v4244
      %4246 = vmatprep.mubr.f32.mxu0 0.0
      %4247 = vmatmul.mubr.f32.gmra.mrb[0].mxu0 %v4153
      %v4248 = vpop.f32.mrb[0].mxu0
      %v4249 = vadd.f32 %v4035, %v4248
      %v4250 = vpop.f32.mrb[0].mxu0
      %v4251 = vadd.f32 %v4037, %v4250
      %4252 = vmatprep.mubr.f32.mxu0 0.0
      %4253 = vmatmul.mubr.f32.gmra.mrb[0].mxu0 %v4156
      %v4254 = vpop.f32.mrb[0].mxu0
      %v4255 = vadd.f32 %v4041, %v4254
      %v4256 = vpop.f32.mrb[0].mxu0
      %v4257 = vadd.f32 %v4043, %v4256
      %4258 = vdwg.mxu0
      %4259 = vmatprep.subr.mxu0 0.0
      %4260 = vmatpush1.msra.mxu0 %v3808
      %4261 = vmatprep.subr.mxu0 0.0
      %4262 = vmatpush1.msra.mxu0 %v3811
      %4263 = vmatprep.subr.mxu0 0.0
      %4264 = vmatpush1.msra.mxu0 %v3814
      %4265 = vmatprep.subr.mxu0 0.0
      %4266 = vmatpush1.msra.mxu0 %v3817
      %4267 = vmatprep.subr.mxu0 0.0
      %4268 = vmatpush1.msra.mxu0 %v3820
      %4269 = vmatprep.subr.mxu0 0.0
      %4270 = vmatpush1.msra.mxu0 %v3823
      %4271 = vmatprep.subr.mxu0 0.0
      %4272 = vmatpush1.msra.mxu0 0.0
      %4273 = vmatprep.subr.mxu0 0.0
      %4274 = vmatpush1.msra.mxu0 0.0
      %4275 = vmatprep.subr.mxu0 0.0
      %4276 = vmatpush1.msra.mxu0 0.0
      %4277 = vmatprep.subr.mxu0 0.0
      %4278 = vmatpush1.msra.mxu0 0.0
      %4279 = vmatprep.subr.mxu0 0.0
      %4280 = vmatpush1.msra.mxu0 0.0
      %4281 = vmatprep.subr.mxu0 0.0
      %4282 = vmatpush1.msra.mxu0 0.0
      %4283 = vmatprep.subr.mxu0 0.0
      %4284 = vmatpush1.msra.mxu0 0.0
      %4285 = vmatprep.subr.mxu0 0.0
      %4286 = vmatpush1.msra.mxu0 0.0
      %4287 = vmatprep.subr.mxu0 0.0
      %4288 = vmatpush1.msra.mxu0 0.0
      %4289 = vmatprep.subr.mxu0 0.0
      %4290 = vmatpush1.msra.mxu0 0.0
      %4291 = vmatprep.subr.mxu0 0.0
      %4292 = vmatpush1.msra.mxu0 0.0
      %4293 = vmatprep.subr.mxu0 0.0
      %4294 = vmatpush1.msra.mxu0 0.0
      %4295 = vmatprep.subr.mxu0 0.0
      %4296 = vmatpush1.msra.mxu0 0.0
      %4297 = vmatprep.subr.mxu0 0.0
      %4298 = vmatpush1.msra.mxu0 0.0
      %4299 = vmatprep.subr.mxu0 0.0
      %4300 = vmatpush1.msra.mxu0 0.0
      %4301 = vmatprep.subr.mxu0 0.0
      %4302 = vmatpush1.msra.mxu0 0.0
      %4303 = vmatprep.subr.mxu0 0.0
      %4304 = vmatpush1.msra.mxu0 0.0
      %4305 = vmatprep.subr.mxu0 0.0
      %4306 = vmatpush1.msra.mxu0 0.0
      %4307 = vmatprep.subr.mxu0 0.0
      %4308 = vmatpush1.msra.mxu0 0.0
      %4309 = vmatprep.subr.mxu0 0.0
      %4310 = vmatpush1.msra.mxu0 0.0
      %4311 = vmatprep.subr.mxu0 0.0
      %4312 = vmatpush1.msra.mxu0 0.0
      %4313 = vmatprep.subr.mxu0 0.0
      %4314 = vmatpush1.msra.mxu0 0.0
      %4315 = vmatprep.subr.mxu0 0.0
      %4316 = vmatpush1.msra.mxu0 0.0
      %4317 = vmatprep.subr.mxu0 0.0
      %4318 = vmatpush1.msra.mxu0 0.0
      %4319 = vmatprep.subr.mxu0 0.0
      %4320 = vmatpush1.msra.mxu0 0.0
      %4321 = vmatprep.subr.mxu0 0.0
      %4322 = vmatpush1.msra.mxu0 0.0
      %4323 = vmatprep.mubr.f32.mxu0 0.0
      %4324 = vmatmul.mubr.f32.gmra.mrb[0].mxu0 %v4141
      %v4325 = vpop.f32.mrb[0].mxu0
      %v4326 = vadd.f32 %v4112, %v4325
      %v4327 = vpop.f32.mrb[0].mxu0
      %4328 = vmatprep.mubr.f32.mxu0 0.0
      %4329 = vmatmul.mubr.f32.gmra.mrb[0].mxu0 %v4144
      %v4330 = vpop.f32.mrb[0].mxu0
      %v4331 = vadd.f32 %v4117, %v4330
      %v4332 = vpop.f32.mrb[0].mxu0
      %4333 = vmatprep.mubr.f32.mxu0 0.0
      %4334 = vmatmul.mubr.f32.gmra.mrb[0].mxu0 %v4147
      %v4335 = vpop.f32.mrb[0].mxu0
      %v4336 = vadd.f32 %v4122, %v4335
      %v4337 = vpop.f32.mrb[0].mxu0
      %4338 = vmatprep.mubr.f32.mxu0 0.0
      %4339 = vmatmul.mubr.f32.gmra.mrb[0].mxu0 %v4150
      %v4340 = vpop.f32.mrb[0].mxu0
      %v4341 = vadd.f32 %v4127, %v4340
      %v4342 = vpop.f32.mrb[0].mxu0
      %4343 = vmatprep.mubr.f32.mxu0 0.0
      %4344 = vmatmul.mubr.f32.gmra.mrb[0].mxu0 %v4153
      %v4345 = vpop.f32.mrb[0].mxu0
      %v4346 = vadd.f32 %v4132, %v4345
      %v4347 = vpop.f32.mrb[0].mxu0
      %4348 = vmatprep.mubr.f32.mxu0 0.0
      %4349 = vmatmul.mubr.f32.gmra.mrb[0].mxu0 %v4156
      %v4350 = vpop.f32.mrb[0].mxu0
      %v4351 = vadd.f32 %v4137, %v4350
      %v4352 = vpop.f32.mrb[0].mxu0
      %4353 = vdwg.mxu0
      %v4354 = vld [vmem:[%s12] sm:$0xff]
      %v4355 = vld [vmem:[%s12 + $0x8] sm:$0xff]
      %v4356 = vld [vmem:[%s12 + $0x10] sm:$0xff]
      %v4357 = vld [vmem:[%s12 + $0x18] sm:$0xff]
      %v4358 = vld [vmem:[%s12 + $0x20] sm:$0xff]
      %v4359 = vld [vmem:[%s12 + $0x28] sm:$0xff]
      %4361 = vset.pattern.permute.xlu0 0
      %4362 = vperm.xlu0 %4361, %v4354
      %v4363 = vpop.permute.xlu0 %4362
      %4366 = vset.pattern.permute.xlu0 0
      %4367 = vperm.xlu0 %4366, %v4355
      %v4368 = vpop.permute.xlu0 %4367
      %4371 = vset.pattern.permute.xlu0 0
      %4372 = vperm.xlu0 %4371, %v4356
      %v4373 = vpop.permute.xlu0 %4372
      %4376 = vset.pattern.permute.xlu0 0
      %4377 = vperm.xlu0 %4376, %v4357
      %v4378 = vpop.permute.xlu0 %4377
      %4381 = vset.pattern.permute.xlu0 0
      %4382 = vperm.xlu0 %4381, %v4358
      %v4383 = vpop.permute.xlu0 %4382
      %4386 = vset.pattern.permute.xlu0 0
      %4387 = vperm.xlu0 %4386, %v4359
      %v4388 = vpop.permute.xlu0 %4387
      %v4390 = vadd.f32 %v4225, %v4363
      %v4391 = vadd.f32 %v4227, %v4363
      %v4392 = vadd.f32 %v4326, %v4363
      %v4393 = vadd.f32 %v4231, %v4368
      %v4394 = vadd.f32 %v4233, %v4368
      %v4395 = vadd.f32 %v4331, %v4368
      %v4396 = vadd.f32 %v4237, %v4373
      %v4397 = vadd.f32 %v4239, %v4373
      %v4398 = vadd.f32 %v4336, %v4373
      %v4399 = vadd.f32 %v4243, %v4378
      %v4400 = vadd.f32 %v4245, %v4378
      %v4401 = vadd.f32 %v4341, %v4378
      %v4402 = vadd.f32 %v4249, %v4383
      %v4403 = vadd.f32 %v4251, %v4383
      %v4404 = vadd.f32 %v4346, %v4383
      %v4405 = vadd.f32 %v4255, %v4388
      %v4406 = vadd.f32 %v4257, %v4388
      %v4407 = vadd.f32 %v4351, %v4388
      %v4408 = vmax.f32 %v4390, 0.0
      %v4409 = vmax.f32 %v4391, 0.0
      %v4410 = vmax.f32 %v4392, 0.0
      %v4411 = vmax.f32 %v4393, 0.0
      %v4412 = vmax.f32 %v4394, 0.0
      %v4413 = vmax.f32 %v4395, 0.0
      %v4414 = vmax.f32 %v4396, 0.0
      %v4415 = vmax.f32 %v4397, 0.0
      %v4416 = vmax.f32 %v4398, 0.0
      %v4417 = vmax.f32 %v4399, 0.0
      %v4418 = vmax.f32 %v4400, 0.0
      %v4419 = vmax.f32 %v4401, 0.0
      %v4420 = vmax.f32 %v4402, 0.0
      %v4421 = vmax.f32 %v4403, 0.0
      %v4422 = vmax.f32 %v4404, 0.0
      %v4423 = vmax.f32 %v4405, 0.0
      %v4424 = vmax.f32 %v4406, 0.0
      %v4425 = vmax.f32 %v4407, 0.0
      %v4426 = vld [vmem:[%s13] sm:$0x1]
      %v4427 = vld [vmem:[#allocation2] sm:$0x1]
      %4429 = vset.pattern.permute.xlu0 0
      %4430 = vperm.xlu0 %4429, %v4427
      %v4431 = vpop.permute.xlu0 %4430
      %v4433 = vlaneseq
      %v4434 = vshrl.u32 %v4433, 7
      %v4435 = vsub.s32 0, %v4434
      %v4436 = vrot.slane %v4431, %v4435
      %v4438 = vsel %vm761, %v4426, 0
      %4440 = vmatprep.subr.mxu0 %v4409
      %4441 = vmatpush1.msra.mxu0 %v4408
      %4442 = vmatprep.subr.mxu0 %v4412
      %4443 = vmatpush1.msra.mxu0 %v4411
      %4444 = vmatprep.subr.mxu0 %v4415
      %4445 = vmatpush1.msra.mxu0 %v4414
      %4446 = vmatprep.subr.mxu0 %v4418
      %4447 = vmatpush1.msra.mxu0 %v4417
      %4448 = vmatprep.subr.mxu0 %v4421
      %4449 = vmatpush1.msra.mxu0 %v4420
      %4450 = vmatprep.subr.mxu0 %v4424
      %4451 = vmatpush1.msra.mxu0 %v4423
      %4452 = vmatprep.subr.mxu0 0.0
      %4453 = vmatpush1.msra.mxu0 0.0
      %4454 = vmatprep.subr.mxu0 0.0
      %4455 = vmatpush1.msra.mxu0 0.0
      %4456 = vmatprep.subr.mxu0 0.0
      %4457 = vmatpush1.msra.mxu0 0.0
      %4458 = vmatprep.subr.mxu0 0.0
      %4459 = vmatpush1.msra.mxu0 0.0
      %4460 = vmatprep.subr.mxu0 0.0
      %4461 = vmatpush1.msra.mxu0 0.0
      %4462 = vmatprep.subr.mxu0 0.0
      %4463 = vmatpush1.msra.mxu0 0.0
      %4464 = vmatprep.subr.mxu0 0.0
      %4465 = vmatpush1.msra.mxu0 0.0
      %4466 = vmatprep.subr.mxu0 0.0
      %4467 = vmatpush1.msra.mxu0 0.0
      %4468 = vmatprep.subr.mxu0 0.0
      %4469 = vmatpush1.msra.mxu0 0.0
      %4470 = vmatprep.subr.mxu0 0.0
      %4471 = vmatpush1.msra.mxu0 0.0
      %4472 = vmatprep.subr.mxu0 0.0
      %4473 = vmatpush1.msra.mxu0 0.0
      %4474 = vmatprep.subr.mxu0 0.0
      %4475 = vmatpush1.msra.mxu0 0.0
      %4476 = vmatprep.subr.mxu0 0.0
      %4477 = vmatpush1.msra.mxu0 0.0
      %4478 = vmatprep.subr.mxu0 0.0
      %4479 = vmatpush1.msra.mxu0 0.0
      %4480 = vmatprep.subr.mxu0 0.0
      %4481 = vmatpush1.msra.mxu0 0.0
      %4482 = vmatprep.subr.mxu0 0.0
      %4483 = vmatpush1.msra.mxu0 0.0
      %4484 = vmatprep.subr.mxu0 0.0
      %4485 = vmatpush1.msra.mxu0 0.0
      %4486 = vmatprep.subr.mxu0 0.0
      %4487 = vmatpush1.msra.mxu0 0.0
      %4488 = vmatprep.subr.mxu0 0.0
      %4489 = vmatpush1.msra.mxu0 0.0
      %4490 = vmatprep.subr.mxu0 0.0
      %4491 = vmatpush1.msra.mxu0 0.0
      %4492 = vmatprep.subr.mxu0 0.0
      %4493 = vmatpush1.msra.mxu0 0.0
      %4494 = vmatprep.subr.mxu0 0.0
      %4495 = vmatpush1.msra.mxu0 0.0
      %4496 = vmatprep.subr.mxu0 0.0
      %4497 = vmatpush1.msra.mxu0 0.0
      %4498 = vmatprep.subr.mxu0 0.0
      %4499 = vmatpush1.msra.mxu0 0.0
      %4500 = vmatprep.subr.mxu0 0.0
      %4501 = vmatpush1.msra.mxu0 0.0
      %4502 = vmatprep.subr.mxu0 0.0
      %4503 = vmatpush1.msra.mxu0 0.0
      %4504 = vmatprep.mubr.f32.mxu0 0.0
      %4505 = vmatmul.mubr.f32.gmra.mrb[0].mxu0 %v4438
      %v4506 = vpop.f32.mrb[0].mxu0
      %v4507 = vadd.f32 %v4436, %v4506
      %v4508 = vpop.f32.mrb[0].mxu0
      %v4509 = vadd.f32 %v4436, %v4508
      %4510 = vdwg.mxu0
      %4511 = vmatprep.subr.mxu0 0.0
      %4512 = vmatpush1.msra.mxu0 %v4410
      %4513 = vmatprep.subr.mxu0 0.0
      %4514 = vmatpush1.msra.mxu0 %v4413
      %4515 = vmatprep.subr.mxu0 0.0
      %4516 = vmatpush1.msra.mxu0 %v4416
      %4517 = vmatprep.subr.mxu0 0.0
      %4518 = vmatpush1.msra.mxu0 %v4419
      %4519 = vmatprep.subr.mxu0 0.0
      %4520 = vmatpush1.msra.mxu0 %v4422
      %4521 = vmatprep.subr.mxu0 0.0
      %4522 = vmatpush1.msra.mxu0 %v4425
      %4523 = vmatprep.subr.mxu0 0.0
      %4524 = vmatpush1.msra.mxu0 0.0
      %4525 = vmatprep.subr.mxu0 0.0
      %4526 = vmatpush1.msra.mxu0 0.0
      %4527 = vmatprep.subr.mxu0 0.0
      %4528 = vmatpush1.msra.mxu0 0.0
      %4529 = vmatprep.subr.mxu0 0.0
      %4530 = vmatpush1.msra.mxu0 0.0
      %4531 = vmatprep.subr.mxu0 0.0
      %4532 = vmatpush1.msra.mxu0 0.0
      %4533 = vmatprep.subr.mxu0 0.0
      %4534 = vmatpush1.msra.mxu0 0.0
      %4535 = vmatprep.subr.mxu0 0.0
      %4536 = vmatpush1.msra.mxu0 0.0
      %4537 = vmatprep.subr.mxu0 0.0
      %4538 = vmatpush1.msra.mxu0 0.0
      %4539 = vmatprep.subr.mxu0 0.0
      %4540 = vmatpush1.msra.mxu0 0.0
      %4541 = vmatprep.subr.mxu0 0.0
      %4542 = vmatpush1.msra.mxu0 0.0
      %4543 = vmatprep.subr.mxu0 0.0
      %4544 = vmatpush1.msra.mxu0 0.0
      %4545 = vmatprep.subr.mxu0 0.0
      %4546 = vmatpush1.msra.mxu0 0.0
      %4547 = vmatprep.subr.mxu0 0.0
      %4548 = vmatpush1.msra.mxu0 0.0
      %4549 = vmatprep.subr.mxu0 0.0
      %4550 = vmatpush1.msra.mxu0 0.0
      %4551 = vmatprep.subr.mxu0 0.0
      %4552 = vmatpush1.msra.mxu0 0.0
      %4553 = vmatprep.subr.mxu0 0.0
      %4554 = vmatpush1.msra.mxu0 0.0
      %4555 = vmatprep.subr.mxu0 0.0
      %4556 = vmatpush1.msra.mxu0 0.0
      %4557 = vmatprep.subr.mxu0 0.0
      %4558 = vmatpush1.msra.mxu0 0.0
      %4559 = vmatprep.subr.mxu0 0.0
      %4560 = vmatpush1.msra.mxu0 0.0
      %4561 = vmatprep.subr.mxu0 0.0
      %4562 = vmatpush1.msra.mxu0 0.0
      %4563 = vmatprep.subr.mxu0 0.0
      %4564 = vmatpush1.msra.mxu0 0.0
      %4565 = vmatprep.subr.mxu0 0.0
      %4566 = vmatpush1.msra.mxu0 0.0
      %4567 = vmatprep.subr.mxu0 0.0
      %4568 = vmatpush1.msra.mxu0 0.0
      %4569 = vmatprep.subr.mxu0 0.0
      %4570 = vmatpush1.msra.mxu0 0.0
      %4571 = vmatprep.subr.mxu0 0.0
      %4572 = vmatpush1.msra.mxu0 0.0
      %4573 = vmatprep.subr.mxu0 0.0
      %4574 = vmatpush1.msra.mxu0 0.0
      %4575 = vmatprep.mubr.f32.mxu0 0.0
      %4576 = vmatmul.mubr.f32.gmra.mrb[0].mxu0 %v4438
      %v4577 = vpop.f32.mrb[0].mxu0
      %v4578 = vadd.f32 %v4436, %v4577
      %v4579 = vpop.f32.mrb[0].mxu0
      %4580 = vdwg.mxu0
      %v4581 = vmax.f32 %v4507, 0.0
      %v4582 = vmax.f32 %v4509, 0.0
      %v4583 = vmax.f32 %v4578, 0.0
      %v4584 = vld [vmem:[%s15] sm:$0xff]
      %v4585 = vld [vmem:[%s15 + $0x8] sm:$0xff]
      %v4586 = vld [vmem:[%s15 + $0x10] sm:$0xff]
      %v4587 = vld [vmem:[%s15 + $0x18] sm:$0xff]
      %v4588 = vld [vmem:[%s15 + $0x20] sm:$0xff]
      %v4589 = vld [vmem:[%s15 + $0x28] sm:$0xff]
      %v4590 = vld [vmem:[%s15 + $0x30] sm:$0xff]
      %v4591 = vld [vmem:[%s15 + $0x38] sm:$0xff]
      %v4592 = vld [vmem:[%s15 + $0x40] sm:$0xff]
      %v4593 = vld [vmem:[%s15 + $0x48] sm:$0xff]
      %v4594 = vld [vmem:[%s15 + $0x50] sm:$0xff]
      %v4595 = vld [vmem:[%s15 + $0x58] sm:$0xff]
      %v4596 = vld [vmem:[%s15 + $0x60] sm:$0xff]
      %v4597 = vld [vmem:[%s15 + $0x68] sm:$0xff]
      %v4598 = vld [vmem:[%s15 + $0x70] sm:$0xff]
      %v4599 = vld [vmem:[%s15 + $0x78] sm:$0xff]
      %v4600 = vld [vmem:[%s15 + $0x80] sm:$0xff]
      %v4601 = vld [vmem:[%s15 + $0x88] sm:$0xff]
      %v4602 = vld [vmem:[%s15 + $0x90] sm:$0xff]
      %v4603 = vld [vmem:[%s15 + $0x98] sm:$0xff]
      %v4604 = vld [vmem:[%s15 + $0xa0] sm:$0xff]
      %v4605 = vld [vmem:[%s15 + $0xa8] sm:$0xff]
      %v4606 = vld [vmem:[%s15 + $0xb0] sm:$0xff]
      %v4607 = vld [vmem:[%s15 + $0xb8] sm:$0xff]
      %v4608 = vld [vmem:[%s15 + $0xc0] sm:$0xff]
      %v4609 = vld [vmem:[%s15 + $0xc8] sm:$0xff]
      %v4610 = vld [vmem:[%s15 + $0xd0] sm:$0xff]
      %v4611 = vld [vmem:[%s15 + $0xd8] sm:$0xff]
      %v4612 = vld [vmem:[%s15 + $0xe0] sm:$0xff]
      %v4613 = vld [vmem:[%s15 + $0xe8] sm:$0xff]
      %v4614 = vld [vmem:[%s15 + $0xf0] sm:$0xff]
      %v4615 = vld [vmem:[%s15 + $0xf8] sm:$0xff]
      %v4616 = vld [vmem:[%s15 + $0x100] sm:$0xff]
      %v4617 = vld [vmem:[%s15 + $0x108] sm:$0xff]
      %v4618 = vld [vmem:[%s15 + $0x110] sm:$0xff]
      %v4619 = vld [vmem:[%s15 + $0x118] sm:$0xff]
      %v4620 = vld [vmem:[%s15 + $0x120] sm:$0xff]
      %v4621 = vld [vmem:[%s15 + $0x128] sm:$0xff]
      %v4622 = vld [vmem:[%s15 + $0x130] sm:$0xff]
      %v4623 = vld [vmem:[%s15 + $0x138] sm:$0xff]
      %v4624 = vld [vmem:[%s15 + $0x140] sm:$0xff]
      %v4625 = vld [vmem:[%s15 + $0x148] sm:$0x3f]
      %v4626 = vld [vmem:[%s16] sm:$0x1]
      %vm4627 = vcmask 637952
      %v4629 = vsel %vm4627, %v4583, 0
      %vm4631 = vcmask 1045504
      %v4633 = vsel %vm4631, %v4625, 0
      %4635 = vmatprep.subr.mxu0 0.0
      %4636 = vmatpush1.msra.mxu0 %v4584
      %4637 = vmatprep.subr.mxu0 0.0
      %4638 = vmatpush1.msra.mxu0 %v4585
      %4639 = vmatprep.subr.mxu0 0.0
      %4640 = vmatpush1.msra.mxu0 %v4586
      %4641 = vmatprep.subr.mxu0 0.0
      %4642 = vmatpush1.msra.mxu0 %v4587
      %4643 = vmatprep.subr.mxu0 0.0
      %4644 = vmatpush1.msra.mxu0 %v4588
      %4645 = vmatprep.subr.mxu0 0.0
      %4646 = vmatpush1.msra.mxu0 %v4589
      %4647 = vmatprep.subr.mxu0 0.0
      %4648 = vmatpush1.msra.mxu0 %v4590
      %4649 = vmatprep.subr.mxu0 0.0
      %4650 = vmatpush1.msra.mxu0 %v4591
      %4651 = vmatprep.subr.mxu0 0.0
      %4652 = vmatpush1.msra.mxu0 %v4592
      %4653 = vmatprep.subr.mxu0 0.0
      %4654 = vmatpush1.msra.mxu0 %v4593
      %4655 = vmatprep.subr.mxu0 0.0
      %4656 = vmatpush1.msra.mxu0 %v4594
      %4657 = vmatprep.subr.mxu0 0.0
      %4658 = vmatpush1.msra.mxu0 %v4595
      %4659 = vmatprep.subr.mxu0 0.0
      %4660 = vmatpush1.msra.mxu0 %v4596
      %4661 = vmatprep.subr.mxu0 0.0
      %4662 = vmatpush1.msra.mxu0 %v4597
      %4663 = vmatprep.subr.mxu0 0.0
      %4664 = vmatpush1.msra.mxu0 %v4598
      %4665 = vmatprep.subr.mxu0 0.0
      %4666 = vmatpush1.msra.mxu0 %v4599
      %4667 = vmatprep.subr.mxu0 0.0
      %4668 = vmatpush1.msra.mxu0 %v4600
      %4669 = vmatprep.subr.mxu0 0.0
      %4670 = vmatpush1.msra.mxu0 %v4601
      %4671 = vmatprep.subr.mxu0 0.0
      %4672 = vmatpush1.msra.mxu0 %v4602
      %4673 = vmatprep.subr.mxu0 0.0
      %4674 = vmatpush1.msra.mxu0 %v4603
      %4675 = vmatprep.subr.mxu0 0.0
      %4676 = vmatpush1.msra.mxu0 %v4604
      %4677 = vmatprep.subr.mxu0 0.0
      %4678 = vmatpush1.msra.mxu0 %v4605
      %4679 = vmatprep.subr.mxu0 0.0
      %4680 = vmatpush1.msra.mxu0 %v4606
      %4681 = vmatprep.subr.mxu0 0.0
      %4682 = vmatpush1.msra.mxu0 %v4607
      %4683 = vmatprep.subr.mxu0 0.0
      %4684 = vmatpush1.msra.mxu0 %v4608
      %4685 = vmatprep.subr.mxu0 0.0
      %4686 = vmatpush1.msra.mxu0 %v4609
      %4687 = vmatprep.subr.mxu0 0.0
      %4688 = vmatpush1.msra.mxu0 %v4610
      %4689 = vmatprep.subr.mxu0 0.0
      %4690 = vmatpush1.msra.mxu0 %v4611
      %4691 = vmatprep.subr.mxu0 0.0
      %4692 = vmatpush1.msra.mxu0 %v4612
      %4693 = vmatprep.subr.mxu0 0.0
      %4694 = vmatpush1.msra.mxu0 %v4613
      %4695 = vmatprep.subr.mxu0 0.0
      %4696 = vmatpush1.msra.mxu0 %v4614
      %4697 = vmatprep.subr.mxu0 0.0
      %4698 = vmatpush1.msra.mxu0 %v4615
      %4699 = vmatprep.mubr.f32.mxu0 %v4582
      %4700 = vmatmul.mubr.f32.gmra.mrb[0].mxu0 %v4581
      %v4701 = vpop.f32.mrb[0].mxu0
      %v4702 = vadd.f32 %v4626, %v4701
      %v4703 = vpop.f32.mrb[0].mxu0
      %4704 = vdwg.mxu0
      %4705 = vmatprep.subr.mxu0 0.0
      %4706 = vmatpush1.msra.mxu0 %v4616
      %4707 = vmatprep.subr.mxu0 0.0
      %4708 = vmatpush1.msra.mxu0 %v4617
      %4709 = vmatprep.subr.mxu0 0.0
      %4710 = vmatpush1.msra.mxu0 %v4618
      %4711 = vmatprep.subr.mxu0 0.0
      %4712 = vmatpush1.msra.mxu0 %v4619
      %4713 = vmatprep.subr.mxu0 0.0
      %4714 = vmatpush1.msra.mxu0 %v4620
      %4715 = vmatprep.subr.mxu0 0.0
      %4716 = vmatpush1.msra.mxu0 %v4621
      %4717 = vmatprep.subr.mxu0 0.0
      %4718 = vmatpush1.msra.mxu0 %v4622
      %4719 = vmatprep.subr.mxu0 0.0
      %4720 = vmatpush1.msra.mxu0 %v4623
      %4721 = vmatprep.subr.mxu0 0.0
      %4722 = vmatpush1.msra.mxu0 %v4624
      %4723 = vmatprep.subr.mxu0 0.0
      %4724 = vmatpush1.msra.mxu0 %v4633
      %4725 = vmatprep.subr.mxu0 0.0
      %4726 = vmatpush1.msra.mxu0 0.0
      %4727 = vmatprep.subr.mxu0 0.0
      %4728 = vmatpush1.msra.mxu0 0.0
      %4729 = vmatprep.subr.mxu0 0.0
      %4730 = vmatpush1.msra.mxu0 0.0
      %4731 = vmatprep.subr.mxu0 0.0
      %4732 = vmatpush1.msra.mxu0 0.0
      %4733 = vmatprep.subr.mxu0 0.0
      %4734 = vmatpush1.msra.mxu0 0.0
      %4735 = vmatprep.subr.mxu0 0.0
      %4736 = vmatpush1.msra.mxu0 0.0
      %4737 = vmatprep.subr.mxu0 0.0
      %4738 = vmatpush1.msra.mxu0 0.0
      %4739 = vmatprep.subr.mxu0 0.0
      %4740 = vmatpush1.msra.mxu0 0.0
      %4741 = vmatprep.subr.mxu0 0.0
      %4742 = vmatpush1.msra.mxu0 0.0
      %4743 = vmatprep.subr.mxu0 0.0
      %4744 = vmatpush1.msra.mxu0 0.0
      %4745 = vmatprep.subr.mxu0 0.0
      %4746 = vmatpush1.msra.mxu0 0.0
      %4747 = vmatprep.subr.mxu0 0.0
      %4748 = vmatpush1.msra.mxu0 0.0
      %4749 = vmatprep.subr.mxu0 0.0
      %4750 = vmatpush1.msra.mxu0 0.0
      %4751 = vmatprep.subr.mxu0 0.0
      %4752 = vmatpush1.msra.mxu0 0.0
      %4753 = vmatprep.subr.mxu0 0.0
      %4754 = vmatpush1.msra.mxu0 0.0
      %4755 = vmatprep.subr.mxu0 0.0
      %4756 = vmatpush1.msra.mxu0 0.0
      %4757 = vmatprep.subr.mxu0 0.0
      %4758 = vmatpush1.msra.mxu0 0.0
      %4759 = vmatprep.subr.mxu0 0.0
      %4760 = vmatpush1.msra.mxu0 0.0
      %4761 = vmatprep.subr.mxu0 0.0
      %4762 = vmatpush1.msra.mxu0 0.0
      %4763 = vmatprep.subr.mxu0 0.0
      %4764 = vmatpush1.msra.mxu0 0.0
      %4765 = vmatprep.subr.mxu0 0.0
      %4766 = vmatpush1.msra.mxu0 0.0
      %4767 = vmatprep.subr.mxu0 0.0
      %4768 = vmatpush1.msra.mxu0 0.0
      %4769 = vmatprep.mubr.f32.mxu0 0.0
      %4770 = vmatmul.mubr.f32.gmra.mrb[0].mxu0 %v4629
      %v4771 = vpop.f32.mrb[0].mxu0
      %v4772 = vadd.f32 %v4702, %v4771
      %v4773 = vpop.f32.mrb[0].mxu0
      %4774 = vdwg.mxu0
      %v4775 = vmax.f32 %v4772, 0.0
      %v4776 = vld [vmem:[%s17] sm:$0xff]
      %v4777 = vld [vmem:[%s17 + $0x8] sm:$0xff]
      %v4778 = vld [vmem:[%s17 + $0x10] sm:$0xff]
      %v4779 = vld [vmem:[%s17 + $0x18] sm:$0xff]
      %v4780 = vld [vmem:[%s17 + $0x20] sm:$0xff]
      %v4781 = vld [vmem:[%s17 + $0x28] sm:$0xff]
      %v4782 = vld [vmem:[%s17 + $0x30] sm:$0xff]
      %v4783 = vld [vmem:[%s17 + $0x38] sm:$0xff]
      %v4784 = vld [vmem:[%s17 + $0x40] sm:$0xff]
      %v4785 = vld [vmem:[%s17 + $0x48] sm:$0xff]
      %v4786 = vld [vmem:[%s17 + $0x50] sm:$0xff]
      %v4787 = vld [vmem:[%s17 + $0x58] sm:$0xff]
      %v4788 = vld [vmem:[%s17 + $0x60] sm:$0xf]
      %v4789 = vld [vmem:[#allocation3] sm:$0x1]
      %vm4790 = vcmask 818176
      %v4792 = vsel %vm4790, %v4775, 0
      %vm4794 = vcmask 1043456
      %v4796 = vsel %vm4794, %v4788, 0
      %4798 = vmatprep.subr.mxu0 0.0
      %4799 = vmatpush1.msra.mxu0 %v4776
      %4800 = vmatprep.subr.mxu0 0.0
      %4801 = vmatpush1.msra.mxu0 %v4777
      %4802 = vmatprep.subr.mxu0 0.0
      %4803 = vmatpush1.msra.mxu0 %v4778
      %4804 = vmatprep.subr.mxu0 0.0
      %4805 = vmatpush1.msra.mxu0 %v4779
      %4806 = vmatprep.subr.mxu0 0.0
      %4807 = vmatpush1.msra.mxu0 %v4780
      %4808 = vmatprep.subr.mxu0 0.0
      %4809 = vmatpush1.msra.mxu0 %v4781
      %4810 = vmatprep.subr.mxu0 0.0
      %4811 = vmatpush1.msra.mxu0 %v4782
      %4812 = vmatprep.subr.mxu0 0.0
      %4813 = vmatpush1.msra.mxu0 %v4783
      %4814 = vmatprep.subr.mxu0 0.0
      %4815 = vmatpush1.msra.mxu0 %v4784
      %4816 = vmatprep.subr.mxu0 0.0
      %4817 = vmatpush1.msra.mxu0 %v4785
      %4818 = vmatprep.subr.mxu0 0.0
      %4819 = vmatpush1.msra.mxu0 %v4786
      %4820 = vmatprep.subr.mxu0 0.0
      %4821 = vmatpush1.msra.mxu0 %v4787
      %4822 = vmatprep.subr.mxu0 0.0
      %4823 = vmatpush1.msra.mxu0 %v4796
      %4824 = vmatprep.subr.mxu0 0.0
      %4825 = vmatpush1.msra.mxu0 0.0
      %4826 = vmatprep.subr.mxu0 0.0
      %4827 = vmatpush1.msra.mxu0 0.0
      %4828 = vmatprep.subr.mxu0 0.0
      %4829 = vmatpush1.msra.mxu0 0.0
      %4830 = vmatprep.subr.mxu0 0.0
      %4831 = vmatpush1.msra.mxu0 0.0
      %4832 = vmatprep.subr.mxu0 0.0
      %4833 = vmatpush1.msra.mxu0 0.0
      %4834 = vmatprep.subr.mxu0 0.0
      %4835 = vmatpush1.msra.mxu0 0.0
      %4836 = vmatprep.subr.mxu0 0.0
      %4837 = vmatpush1.msra.mxu0 0.0
      %4838 = vmatprep.subr.mxu0 0.0
      %4839 = vmatpush1.msra.mxu0 0.0
      %4840 = vmatprep.subr.mxu0 0.0
      %4841 = vmatpush1.msra.mxu0 0.0
      %4842 = vmatprep.subr.mxu0 0.0
      %4843 = vmatpush1.msra.mxu0 0.0
      %4844 = vmatprep.subr.mxu0 0.0
      %4845 = vmatpush1.msra.mxu0 0.0
      %4846 = vmatprep.subr.mxu0 0.0
      %4847 = vmatpush1.msra.mxu0 0.0
      %4848 = vmatprep.subr.mxu0 0.0
      %4849 = vmatpush1.msra.mxu0 0.0
      %4850 = vmatprep.subr.mxu0 0.0
      %4851 = vmatpush1.msra.mxu0 0.0
      %4852 = vmatprep.subr.mxu0 0.0
      %4853 = vmatpush1.msra.mxu0 0.0
      %4854 = vmatprep.subr.mxu0 0.0
      %4855 = vmatpush1.msra.mxu0 0.0
      %4856 = vmatprep.subr.mxu0 0.0
      %4857 = vmatpush1.msra.mxu0 0.0
      %4858 = vmatprep.subr.mxu0 0.0
      %4859 = vmatpush1.msra.mxu0 0.0
      %4860 = vmatprep.subr.mxu0 0.0
      %4861 = vmatpush1.msra.mxu0 0.0
      %4862 = vmatprep.mubr.f32.mxu0 0.0
      %4863 = vmatmul.mubr.f32.gmra.mrb[0].mxu0 %v4792
      %v4864 = vpop.f32.mrb[0].mxu0
      %v4865 = vadd.f32 %v4789, %v4864
      %v4866 = vpop.f32.mrb[0].mxu0
      %4867 = vdwg.mxu0
      %vm4868 = vcmask 0
      %4869 = vst.msk [vmem:[%s602] sm:$0x1] %vm4868, %v4865
      %p4870 = scmp.lt.s32.totalorder %s34, 1
      %s4871 = scalar_select %p4870, %s34, 1
      %s4872 = scalar_lea.vmem %s19, %s4871
      // Predicated region
      $region97: #{_forward_device.1} parent=95 // pred_check
        %p4873 = pneg %p456
      $region98: #{_forward_device.1} parent=95 // pred_check_branch
        %4875 = sbr.rel (%p4873) target = $region100
      $region99: #{_forward_device.1} parent=95 // pred_region
        _
      $region100: #{_forward_device.1} parent=95 // pred_fallthru
        _
    $region96: #{_forward_device.1} parent=5 // pred_fallthru
      _
    %p4876 = scmp.le.s32.totalorder 2, %s29
    // Predicated region
    $region101: #{_forward_device.1} parent=5 // pred_check
      %p4877 = pneg %p4876
    $region102: #{_forward_device.1} parent=5 // pred_check_branch
      %4879 = sbr.rel (%p4877) target = $region104
    $region103: #{_forward_device.1} parent=5 // pred_region
      %s4880 = ssub.s32 %s29, 2
      // Predicated region
      $region105: #{_forward_device.1} parent=103 // pred_check
        %p4881 = pneg %p462
      $region106: #{_forward_device.1} parent=103 // pred_check_branch
        %4883 = sbr.rel (%p4881) target = $region108
      $region107: #{_forward_device.1} parent=103 // pred_region
        %p4884 = scmp.lt.s32.totalorder %s35, 1
        %s4885 = scalar_select %p4884, %s35, 1
        %s4886 = scalar_lea.vmem %s19, %s4885
      $region108: #{_forward_device.1} parent=103 // pred_fallthru
        _
    $region104: #{_forward_device.1} parent=5 // pred_fallthru
      _
  $region6: #{_forward_device.1} parent=0 // loop_footer
    %s33 = sadd.s32 1, %s29
  $region7: #{_forward_device.1} parent=0 // loop_footer_branch
    %28 = sbr.rel target = $region3
  $region8: #{_forward_device.1} parent=0 // loop_exit
    _

</llo_original>
